<compile_context>
chip_gen: v6e
topology: v6e:2x2x1
jax: 0.10.0
libtpu: 0.0.40
codegen_flags: <defaults>
</compile_context>

<pallas_src>
import functools

import jax
import jax.numpy as jnp
from jax.experimental import pallas as pl
from jax.experimental.pallas import tpu as pltpu


# ------------------------------ fused kernel --------------------------------

def _rbgroup_kernel(x_ref, w_ref, b_ref, g_ref, be_ref, gmat_ref, prelu_ref,
                    o_ref, *, B, H, W, C, n_blocks):
    """Fused RBGroup forward for B images; activations are (B*H, W*C) slabs."""
    WC = W * C
    BH = B * H
    inv_hw = 1.0 / float(H * W)

    # Row-within-image index (hoisted, reused by every conv).  Rows whose
    # rolled neighbour wrapped across an image boundary are zeroed -> 'same'
    # zero padding along H.
    h_idx = jnp.tile(jax.lax.broadcasted_iota(jnp.int32, (H, WC), 0), (B, 1))
    not_first = h_idx != 0             # row h-1 exists inside the image
    not_last = h_idx != (H - 1)        # row h+1 exists inside the image

    gm_bf = gmat_ref[...]              # (WC, WC) bf16, 0/1 entries (exact)

    def conv3x3(cur, ci):
        """3x3 'same' conv of all B images as ONE (BH,3WC)@(3WC,WC) MXU dot."""
        cur_bf = cur.astype(jnp.bfloat16)
        prev_tap = jnp.where(not_first, pltpu.roll(cur, shift=1, axis=0),
                             0.0).astype(jnp.bfloat16)           # x[h-1]
        next_tap = jnp.where(not_last, pltpu.roll(cur, shift=BH - 1, axis=0),
                             0.0).astype(jnp.bfloat16)           # x[h+1]
        patches = jnp.concatenate([prev_tap, cur_bf, next_tap], axis=1)
        acc = jnp.dot(patches, w_ref[ci], preferred_element_type=jnp.float32)
        return acc + b_ref[ci]                                   # (BH, WC) f32

    def instance_norm(acc, ci):
        """Per-image InstanceNorm2d (affine=True, biased var, eps=1e-5)."""
        # One bf16 MXU dot gives per-channel W-sums of [x ; x*x] at once
        # (gmat also broadcasts the sums back across the W lane positions).
        stats_in = jnp.concatenate([acc, acc * acc], axis=0).astype(jnp.bfloat16)
        csum = jnp.dot(stats_in, gm_bf, preferred_element_type=jnp.float32)
        # Per-image H reduction on the XLU (sublane sum), not the MXU.
        tot = jnp.sum(csum.reshape(2 * B, H, WC), axis=1, keepdims=True) * inv_hw
        mean = tot[:B]                                           # (B, 1, WC)
        var = jnp.maximum(tot[B:] - mean * mean, 0.0)            # E[x^2]-mean^2
        scale = jax.lax.rsqrt(var + 1e-5) * g_ref[ci].reshape(1, 1, WC)
        shift = be_ref[ci].reshape(1, 1, WC) - mean * scale
        return (acc.reshape(B, H, WC) * scale + shift).reshape(BH, WC)

    res = x_ref[...].reshape(BH, WC)                             # f32 slab
    ci = 0
    for bi in range(n_blocks):
        inp = res
        h = instance_norm(conv3x3(inp, ci), ci); ci += 1
        alpha = prelu_ref[bi]                                    # scalar (SMEM)
        h = jnp.where(h > 0, h, alpha * h)                       # PReLU
        h = instance_norm(conv3x3(h, ci), ci); ci += 1
        res = h + inp                                            # RB residual
    out = conv3x3(res, ci)                                       # trailing conv
    # RBGroup residual: re-read x_ref instead of holding x0 live in vregs.
    o_ref[...] = (out.reshape(B, H, WC) + x_ref[...]).astype(o_ref.dtype)


# --------------------------- host-side weight prep ---------------------------

def _conv_to_banded_im2col(w, W_sp, C):
    """(3,3,Cin,Cout) HWIO conv kernel -> (3*W*C, W*C) block-banded weight.

    Row t*W*C + w'*C + ci multiplies activation x[h + t - 1, w', ci]; the dx
    taps are encoded in the block band (w' == w + dx - 1), which also realizes
    the zero padding along W.
    NOTE: real PyTorch Conv2d weights are OIHW; permute with (2, 3, 1, 0) first.
    """
    mats = []
    for dy in range(3):
        m = jnp.zeros((W_sp * C, W_sp * C), jnp.float32)
        for dx in range(3):
            band = jnp.eye(W_sp, W_sp, k=-(dx - 1), dtype=jnp.float32)
            m = m + jnp.kron(band, w[dy, dx].astype(jnp.float32))
        mats.append(m)
    return jnp.concatenate(mats, axis=0)


# ------------------------------ forward wrappers -----------------------------

def rbgroup_forward_nhwc(x, params, *, images_per_step=4):
    """x: (N, H, W, C) float32.  Whole RBGroup in one pallas_call."""
    N, H, W, C = x.shape
    WC = W * C
    n_blocks = len(params["blocks"])
    n_convs = 2 * n_blocks + 1

    B = max(1, min(images_per_step, N))        # images per step (MXU M = B*H)
    n_steps = -(-N // B)
    N_pad = n_steps * B

    big_w, b_rows, g_rows, be_rows, prelu = [], [], [], [], []
    for blk in params["blocks"]:
        big_w += [_conv_to_banded_im2col(blk["w1"], W, C),
                  _conv_to_banded_im2col(blk["w2"], W, C)]
        b_rows += [jnp.tile(blk["b1"], W), jnp.tile(blk["b2"], W)]
        g_rows += [jnp.tile(blk["g1"], W), jnp.tile(blk["g2"], W)]
        be_rows += [jnp.tile(blk["be1"], W), jnp.tile(blk["be2"], W)]
        prelu.append(jnp.asarray(blk["prelu"], jnp.float32))
    big_w.append(_conv_to_banded_im2col(params["wf"], W, C))
    b_rows.append(jnp.tile(params["bf"], W))

    w_all = jnp.stack(big_w).astype(jnp.bfloat16)                  # (n_convs, 3WC, WC)
    b_all = jnp.stack(b_rows).reshape(n_convs, 1, WC).astype(jnp.float32)
    g_all = jnp.stack(g_rows).reshape(2 * n_blocks, 1, WC).astype(jnp.float32)
    be_all = jnp.stack(be_rows).reshape(2 * n_blocks, 1, WC).astype(jnp.float32)
    prelu_all = jnp.stack(prelu)                                   # (n_blocks,) -> SMEM
    gmat = jnp.kron(jnp.ones((W, W), jnp.float32),
                    jnp.eye(C, dtype=jnp.float32)).astype(jnp.bfloat16)  # 0/1: exact

    x3 = x.reshape(N, H, WC).astype(jnp.float32)                   # lane-dense slabs
    if N_pad != N:
        x3 = jnp.concatenate(
            [x3, jnp.zeros((N_pad - N, H, WC), jnp.float32)], axis=0)

    kernel = functools.partial(_rbgroup_kernel, B=B, H=H, W=W, C=C,
                               n_blocks=n_blocks)

    y3 = pl.pallas_call(
        kernel,
        out_shape=jax.ShapeDtypeStruct((N_pad, H, WC), jnp.float32),
        grid_spec=pltpu.PrefetchScalarGridSpec(
            num_scalar_prefetch=0,
            grid=(n_steps,),
            in_specs=[
                pl.BlockSpec((B, H, WC), lambda n: (n, 0, 0)),             # activations
                pl.BlockSpec((n_convs, 3 * WC, WC), lambda n: (0, 0, 0)),  # conv weights
                pl.BlockSpec((n_convs, 1, WC), lambda n: (0, 0, 0)),       # bias rows
                pl.BlockSpec((2 * n_blocks, 1, WC), lambda n: (0, 0, 0)),  # IN gamma rows
                pl.BlockSpec((2 * n_blocks, 1, WC), lambda n: (0, 0, 0)),  # IN beta rows
                pl.BlockSpec((WC, WC), lambda n: (0, 0)),                  # channel-sum mat
                pl.BlockSpec(memory_space=pltpu.MemorySpace.SMEM),         # PReLU scalars
            ],
            out_specs=pl.BlockSpec((B, H, WC), lambda n: (n, 0, 0)),
        ),
        compiler_params=pltpu.CompilerParams(
            dimension_semantics=("parallel",)),
    )(x3, w_all, b_all, g_all, be_all, gmat, prelu_all)

    return y3[:N].reshape(N, H, W, C)


def rbgroup_forward_nchw(x_nchw, params):
    """PyTorch-compatible entry point: x is (N, C, H, W)."""
    x = jnp.transpose(x_nchw, (0, 2, 3, 1)).astype(jnp.float32)    # NCHW -> NHWC
    y = rbgroup_forward_nhwc(x, params)
    return jnp.transpose(y, (0, 3, 1, 2))                          # NHWC -> NCHW


# --------------------------- pure-JAX reference ------------------------------

def rbgroup_reference_nchw(x_nchw, params):
    x = jnp.transpose(x_nchw, (0, 2, 3, 1)).astype(jnp.float32)

    def conv(t, w, b):
        y = jax.lax.conv_general_dilated(
            t, w, window_strides=(1, 1), padding="SAME",
            dimension_numbers=("NHWC", "HWIO", "NHWC"))
        return y + b

    def inorm(t, g, be):
        m = jnp.mean(t, axis=(1, 2), keepdims=True)
        v = jnp.mean((t - m) ** 2, axis=(1, 2), keepdims=True)
        return (t - m) * jax.lax.rsqrt(v + 1e-5) * g + be

    h = x
    for blk in params["blocks"]:
        inp = h
        t = conv(inp, blk["w1"], blk["b1"])
        t = inorm(t, blk["g1"], blk["be1"])
        t = jnp.where(t > 0, t, blk["prelu"] * t)
        t = conv(t, blk["w2"], blk["b2"])
        t = inorm(t, blk["g2"], blk["be2"])
        h = t + inp
    out = conv(h, params["wf"], params["bf"]) + x
    return jnp.transpose(out, (0, 3, 1, 2))


# --------------------------- synthetic parameters ----------------------------

def _conv_params(key, c):
    fan_in = c * 3 * 3
    bound = 1.0 / jnp.sqrt(fan_in)  # PyTorch Conv2d default init bounds
    kw, kb = jax.random.split(key)
    w = jax.random.uniform(kw, (3, 3, c, c), jnp.float32, -bound, bound)  # HWIO
    b = jax.random.uniform(kb, (c,), jnp.float32, -bound, bound)
    return w, b


def init_rbgroup_params(key, n_feats, n_blocks):
    params = {"blocks": []}
    for _ in range(n_blocks):
        k1, k2, key = jax.random.split(key, 3)
        w1, b1 = _conv_params(k1, n_feats)
        w2, b2 = _conv_params(k2, n_feats)
        params["blocks"].append({
            "w1": w1, "b1": b1,
            "g1": jnp.ones((n_feats,), jnp.float32),
            "be1": jnp.zeros((n_feats,), jnp.float32),
            "prelu": jnp.float32(0.25),  # nn.PReLU() default scalar
            "w2": w2, "b2": b2,
            "g2": jnp.ones((n_feats,), jnp.float32),
            "be2": jnp.zeros((n_feats,), jnp.float32),
        })
    kf, _ = jax.random.split(key)
    wf, bf = _conv_params(kf, n_feats)
    params["wf"] = wf
    params["bf"] = bf
    return params


# ------------------------------------ demo -----------------------------------

if __name__ == "__main__":
    n_feats, n_blocks = 8, 2
    N, H, W = 8, 16, 16          # W * n_feats = 128 -> lane-dense last dim

    key = jax.random.PRNGKey(0)
    kx, kp = jax.random.split(key)
    x = jax.random.normal(kx, (N, n_feats, H, W), jnp.float32)   # NCHW like PyTorch
    params = init_rbgroup_params(kp, n_feats, n_blocks)

    out = jax.block_until_ready(jax.jit(rbgroup_forward_nchw)(x, params))
    ref = jax.block_until_ready(rbgroup_reference_nchw(x, params))

    assert out.shape == (N, n_feats, H, W)
    assert bool(jnp.all(jnp.isfinite(out)))
    # bf16 MXU conv/stat path vs f32 XLA reference -> loose tolerance.
    assert bool(jnp.allclose(out, ref, atol=1.5e-1, rtol=1e-1)), \
        float(jnp.max(jnp.abs(out - ref)))
    print("KERNEL_OK")
</pallas_src>

<mosaic_0001>
module attributes {stable_mosaic.version = 11 : i64} {
  func.func @_rbgroup_kernel(%arg0: i32, %arg1: memref<4x16x128xf32, #tpu.memory_space<vmem>>, %arg2: memref<5x384x128xbf16, #tpu.memory_space<vmem>>, %arg3: memref<5x1x128xf32, #tpu.memory_space<vmem>>, %arg4: memref<4x1x128xf32, #tpu.memory_space<vmem>>, %arg5: memref<4x1x128xf32, #tpu.memory_space<vmem>>, %arg6: memref<128x128xbf16, #tpu.memory_space<vmem>>, %arg7: memref<2xf32, #tpu.memory_space<smem>>, %arg8: memref<4x16x128xf32, #tpu.memory_space<vmem>>) attributes {dimension_semantics = [#tpu.dimension_semantics<parallel>], iteration_bounds = array<i64: 2>, scalar_prefetch = 0 : i64, scratch_operands = 0 : i64, tpu.core_type = #tpu.core_type<tc>, window_params = [{transform_indices = @transform_0, window_bounds = array<i64: 4, 16, 128>}, {pipeline_mode = #tpu.pipeline_mode<synchronous>, transform_indices = @transform_1, window_bounds = array<i64: 5, 384, 128>}, {pipeline_mode = #tpu.pipeline_mode<synchronous>, transform_indices = @transform_2, window_bounds = array<i64: 5, 1, 128>}, {pipeline_mode = #tpu.pipeline_mode<synchronous>, transform_indices = @transform_3, window_bounds = array<i64: 4, 1, 128>}, {pipeline_mode = #tpu.pipeline_mode<synchronous>, transform_indices = @transform_4, window_bounds = array<i64: 4, 1, 128>}, {pipeline_mode = #tpu.pipeline_mode<synchronous>, transform_indices = @transform_5, window_bounds = array<i64: 128, 128>}, {transform_indices = @transform_6, window_bounds = array<i64: 2>}, {transform_indices = @transform_7, window_bounds = array<i64: 4, 16, 128>}]} {
    %0 = tpu.iota {dimensions = array<i32: 0>} : vector<16x128xi32>
    %1 = tpu.concatenate %0, %0, %0, %0 in 0 : vector<16x128xi32>, vector<16x128xi32>, vector<16x128xi32>, vector<16x128xi32> -> vector<64x128xi32>
    %c0_i32 = arith.constant 0 : i32
    %2 = vector.broadcast %c0_i32 : i32 to vector<64x128xi32>
    %3 = arith.cmpi ne, %1, %2 : vector<64x128xi32>
    %c15_i32 = arith.constant 15 : i32
    %4 = vector.broadcast %c15_i32 : i32 to vector<64x128xi32>
    %5 = arith.cmpi ne, %1, %4 : vector<64x128xi32>
    %c0 = arith.constant 0 : index
    %c0_0 = arith.constant 0 : index
    %6 = vector.load %arg6[%c0, %c0_0] : memref<128x128xbf16, #tpu.memory_space<vmem>>, vector<128x128xbf16>
    %c0_1 = arith.constant 0 : index
    %c0_2 = arith.constant 0 : index
    %c0_3 = arith.constant 0 : index
    %7 = vector.load %arg1[%c0_1, %c0_2, %c0_3] : memref<4x16x128xf32, #tpu.memory_space<vmem>>, vector<4x16x128xf32>
    %8 = vector.shape_cast %7 : vector<4x16x128xf32> to vector<64x128xf32>
    %9 = arith.truncf %8 : vector<64x128xf32> to vector<64x128xbf16>
    %c1_i32 = arith.constant 1 : i32
    %10 = tpu.dynamic_rotate %8 by %c1_i32 dim 0 : vector<64x128xf32>, i32 -> vector<64x128xf32>
    %cst = arith.constant 0.000000e+00 : f32
    %11 = vector.broadcast %cst : f32 to vector<64x128xf32>
    %12 = arith.select %3, %10, %11 : vector<64x128xi1>, vector<64x128xf32>
    %13 = arith.truncf %12 : vector<64x128xf32> to vector<64x128xbf16>
    %c63_i32 = arith.constant 63 : i32
    %14 = tpu.dynamic_rotate %8 by %c63_i32 dim 0 : vector<64x128xf32>, i32 -> vector<64x128xf32>
    %cst_4 = arith.constant 0.000000e+00 : f32
    %15 = vector.broadcast %cst_4 : f32 to vector<64x128xf32>
    %16 = arith.select %5, %14, %15 : vector<64x128xi1>, vector<64x128xf32>
    %17 = arith.truncf %16 : vector<64x128xf32> to vector<64x128xbf16>
    %18 = tpu.concatenate %13, %9, %17 in 1 : vector<64x128xbf16>, vector<64x128xbf16>, vector<64x128xbf16> -> vector<64x384xbf16>
    %c0_5 = arith.constant 0 : index
    %c0_6 = arith.constant 0 : index
    %c0_7 = arith.constant 0 : index
    %19 = vector.load %arg2[%c0_5, %c0_6, %c0_7] : memref<5x384x128xbf16, #tpu.memory_space<vmem>>, vector<1x384x128xbf16>
    %20 = vector.shape_cast %19 : vector<1x384x128xbf16> to vector<384x128xbf16>
    %cst_8 = arith.constant dense<0.000000e+00> : vector<64x128xf32>
    %21 = tpu.matmul %18, %20, %cst_8 {dimension_numbers = #tpu.dot_dimension_numbers<[1], [0], [0], [1], [0, 0, 1, 1], [], []>} : vector<64x384xbf16>, vector<384x128xbf16>, vector<64x128xf32> -> vector<64x128xf32>
    %c0_9 = arith.constant 0 : index
    %c0_10 = arith.constant 0 : index
    %c0_11 = arith.constant 0 : index
    %22 = vector.load %arg3[%c0_9, %c0_10, %c0_11] : memref<5x1x128xf32, #tpu.memory_space<vmem>>, vector<1x1x128xf32>
    %23 = vector.shape_cast %22 : vector<1x1x128xf32> to vector<1x128xf32>
    %24 = vector.broadcast %23 : vector<1x128xf32> to vector<64x128xf32>
    %25 = arith.addf %21, %24 : vector<64x128xf32>
    %26 = arith.mulf %25, %25 : vector<64x128xf32>
    %27 = tpu.concatenate %25, %26 in 0 : vector<64x128xf32>, vector<64x128xf32> -> vector<128x128xf32>
    %28 = arith.truncf %27 : vector<128x128xf32> to vector<128x128xbf16>
    %cst_12 = arith.constant dense<0.000000e+00> : vector<128x128xf32>
    %29 = tpu.matmul %28, %6, %cst_12 {dimension_numbers = #tpu.dot_dimension_numbers<[1], [0], [0], [1], [0, 0, 1, 1], [], []>} : vector<128x128xbf16>, vector<128x128xbf16>, vector<128x128xf32> -> vector<128x128xf32>
    %30 = vector.shape_cast %29 : vector<128x128xf32> to vector<8x16x128xf32>
    %cst_13 = arith.constant dense<0.000000e+00> : vector<8x128xf32>
    %31 = vector.multi_reduction <add>, %30, %cst_13 [1] : vector<8x16x128xf32> to vector<8x128xf32>
    %32 = vector.shape_cast %31 : vector<8x128xf32> to vector<8x1x128xf32>
    %cst_14 = arith.constant 3.906250e-03 : f32
    %33 = vector.broadcast %cst_14 : f32 to vector<8x1x128xf32>
    %34 = arith.mulf %32, %33 : vector<8x1x128xf32>
    %35 = vector.extract_strided_slice %34 {offsets = [0, 0, 0], sizes = [4, 1, 128], strides = [1, 1, 1]} : vector<8x1x128xf32> to vector<4x1x128xf32>
    %36 = vector.extract_strided_slice %34 {offsets = [4, 0, 0], sizes = [4, 1, 128], strides = [1, 1, 1]} : vector<8x1x128xf32> to vector<4x1x128xf32>
    %37 = arith.mulf %35, %35 : vector<4x1x128xf32>
    %38 = arith.subf %36, %37 : vector<4x1x128xf32>
    %cst_15 = arith.constant 0.000000e+00 : f32
    %39 = vector.broadcast %cst_15 : f32 to vector<4x1x128xf32>
    %40 = arith.maximumf %38, %39 : vector<4x1x128xf32>
    %cst_16 = arith.constant 9.99999974E-6 : f32
    %41 = vector.broadcast %cst_16 : f32 to vector<4x1x128xf32>
    %42 = arith.addf %40, %41 : vector<4x1x128xf32>
    %43 = math.rsqrt %42 : vector<4x1x128xf32>
    %c0_17 = arith.constant 0 : index
    %c0_18 = arith.constant 0 : index
    %c0_19 = arith.constant 0 : index
    %44 = vector.load %arg4[%c0_17, %c0_18, %c0_19] : memref<4x1x128xf32, #tpu.memory_space<vmem>>, vector<1x1x128xf32>
    %45 = vector.shape_cast %44 : vector<1x1x128xf32> to vector<1x128xf32>
    %46 = vector.shape_cast %45 : vector<1x128xf32> to vector<1x1x128xf32>
    %47 = vector.broadcast %46 : vector<1x1x128xf32> to vector<4x1x128xf32>
    %48 = arith.mulf %43, %47 : vector<4x1x128xf32>
    %c0_20 = arith.constant 0 : index
    %c0_21 = arith.constant 0 : index
    %c0_22 = arith.constant 0 : index
    %49 = vector.load %arg5[%c0_20, %c0_21, %c0_22] : memref<4x1x128xf32, #tpu.memory_space<vmem>>, vector<1x1x128xf32>
    %50 = vector.shape_cast %49 : vector<1x1x128xf32> to vector<1x128xf32>
    %51 = vector.shape_cast %50 : vector<1x128xf32> to vector<1x1x128xf32>
    %52 = arith.mulf %35, %48 : vector<4x1x128xf32>
    %53 = vector.broadcast %51 : vector<1x1x128xf32> to vector<4x1x128xf32>
    %54 = arith.subf %53, %52 : vector<4x1x128xf32>
    %55 = vector.shape_cast %25 : vector<64x128xf32> to vector<4x16x128xf32>
    %56 = vector.broadcast %48 : vector<4x1x128xf32> to vector<4x16x128xf32>
    %57 = arith.mulf %55, %56 : vector<4x16x128xf32>
    %58 = vector.broadcast %54 : vector<4x1x128xf32> to vector<4x16x128xf32>
    %59 = arith.addf %57, %58 : vector<4x16x128xf32>
    %60 = vector.shape_cast %59 : vector<4x16x128xf32> to vector<64x128xf32>
    %c0_23 = arith.constant 0 : index
    %61 = memref.load %arg7[%c0_23] : memref<2xf32, #tpu.memory_space<smem>>
    %cst_24 = arith.constant 0.000000e+00 : f32
    %62 = vector.broadcast %cst_24 : f32 to vector<64x128xf32>
    %63 = arith.cmpf ogt, %60, %62 : vector<64x128xf32>
    %64 = vector.broadcast %61 : f32 to vector<64x128xf32>
    %65 = arith.mulf %64, %60 : vector<64x128xf32>
    %66 = arith.select %63, %60, %65 : vector<64x128xi1>, vector<64x128xf32>
    %67 = arith.truncf %66 : vector<64x128xf32> to vector<64x128xbf16>
    %c1_i32_25 = arith.constant 1 : i32
    %68 = tpu.dynamic_rotate %66 by %c1_i32_25 dim 0 : vector<64x128xf32>, i32 -> vector<64x128xf32>
    %cst_26 = arith.constant 0.000000e+00 : f32
    %69 = vector.broadcast %cst_26 : f32 to vector<64x128xf32>
    %70 = arith.select %3, %68, %69 : vector<64x128xi1>, vector<64x128xf32>
    %71 = arith.truncf %70 : vector<64x128xf32> to vector<64x128xbf16>
    %c63_i32_27 = arith.constant 63 : i32
    %72 = tpu.dynamic_rotate %66 by %c63_i32_27 dim 0 : vector<64x128xf32>, i32 -> vector<64x128xf32>
    %cst_28 = arith.constant 0.000000e+00 : f32
    %73 = vector.broadcast %cst_28 : f32 to vector<64x128xf32>
    %74 = arith.select %5, %72, %73 : vector<64x128xi1>, vector<64x128xf32>
    %75 = arith.truncf %74 : vector<64x128xf32> to vector<64x128xbf16>
    %76 = tpu.concatenate %71, %67, %75 in 1 : vector<64x128xbf16>, vector<64x128xbf16>, vector<64x128xbf16> -> vector<64x384xbf16>
    %c1 = arith.constant 1 : index
    %c0_29 = arith.constant 0 : index
    %c0_30 = arith.constant 0 : index
    %77 = vector.load %arg2[%c1, %c0_29, %c0_30] : memref<5x384x128xbf16, #tpu.memory_space<vmem>>, vector<1x384x128xbf16>
    %78 = vector.shape_cast %77 : vector<1x384x128xbf16> to vector<384x128xbf16>
    %cst_31 = arith.constant dense<0.000000e+00> : vector<64x128xf32>
    %79 = tpu.matmul %76, %78, %cst_31 {dimension_numbers = #tpu.dot_dimension_numbers<[1], [0], [0], [1], [0, 0, 1, 1], [], []>} : vector<64x384xbf16>, vector<384x128xbf16>, vector<64x128xf32> -> vector<64x128xf32>
    %c1_32 = arith.constant 1 : index
    %c0_33 = arith.constant 0 : index
    %c0_34 = arith.constant 0 : index
    %80 = vector.load %arg3[%c1_32, %c0_33, %c0_34] : memref<5x1x128xf32, #tpu.memory_space<vmem>>, vector<1x1x128xf32>
    %81 = vector.shape_cast %80 : vector<1x1x128xf32> to vector<1x128xf32>
    %82 = vector.broadcast %81 : vector<1x128xf32> to vector<64x128xf32>
    %83 = arith.addf %79, %82 : vector<64x128xf32>
    %84 = arith.mulf %83, %83 : vector<64x128xf32>
    %85 = tpu.concatenate %83, %84 in 0 : vector<64x128xf32>, vector<64x128xf32> -> vector<128x128xf32>
    %86 = arith.truncf %85 : vector<128x128xf32> to vector<128x128xbf16>
    %cst_35 = arith.constant dense<0.000000e+00> : vector<128x128xf32>
    %87 = tpu.matmul %86, %6, %cst_35 {dimension_numbers = #tpu.dot_dimension_numbers<[1], [0], [0], [1], [0, 0, 1, 1], [], []>} : vector<128x128xbf16>, vector<128x128xbf16>, vector<128x128xf32> -> vector<128x128xf32>
    %88 = vector.shape_cast %87 : vector<128x128xf32> to vector<8x16x128xf32>
    %cst_36 = arith.constant dense<0.000000e+00> : vector<8x128xf32>
    %89 = vector.multi_reduction <add>, %88, %cst_36 [1] : vector<8x16x128xf32> to vector<8x128xf32>
    %90 = vector.shape_cast %89 : vector<8x128xf32> to vector<8x1x128xf32>
    %cst_37 = arith.constant 3.906250e-03 : f32
    %91 = vector.broadcast %cst_37 : f32 to vector<8x1x128xf32>
    %92 = arith.mulf %90, %91 : vector<8x1x128xf32>
    %93 = vector.extract_strided_slice %92 {offsets = [0, 0, 0], sizes = [4, 1, 128], strides = [1, 1, 1]} : vector<8x1x128xf32> to vector<4x1x128xf32>
    %94 = vector.extract_strided_slice %92 {offsets = [4, 0, 0], sizes = [4, 1, 128], strides = [1, 1, 1]} : vector<8x1x128xf32> to vector<4x1x128xf32>
    %95 = arith.mulf %93, %93 : vector<4x1x128xf32>
    %96 = arith.subf %94, %95 : vector<4x1x128xf32>
    %cst_38 = arith.constant 0.000000e+00 : f32
    %97 = vector.broadcast %cst_38 : f32 to vector<4x1x128xf32>
    %98 = arith.maximumf %96, %97 : vector<4x1x128xf32>
    %cst_39 = arith.constant 9.99999974E-6 : f32
    %99 = vector.broadcast %cst_39 : f32 to vector<4x1x128xf32>
    %100 = arith.addf %98, %99 : vector<4x1x128xf32>
    %101 = math.rsqrt %100 : vector<4x1x128xf32>
    %c1_40 = arith.constant 1 : index
    %c0_41 = arith.constant 0 : index
    %c0_42 = arith.constant 0 : index
    %102 = vector.load %arg4[%c1_40, %c0_41, %c0_42] : memref<4x1x128xf32, #tpu.memory_space<vmem>>, vector<1x1x128xf32>
    %103 = vector.shape_cast %102 : vector<1x1x128xf32> to vector<1x128xf32>
    %104 = vector.shape_cast %103 : vector<1x128xf32> to vector<1x1x128xf32>
    %105 = vector.broadcast %104 : vector<1x1x128xf32> to vector<4x1x128xf32>
    %106 = arith.mulf %101, %105 : vector<4x1x128xf32>
    %c1_43 = arith.constant 1 : index
    %c0_44 = arith.constant 0 : index
    %c0_45 = arith.constant 0 : index
    %107 = vector.load %arg5[%c1_43, %c0_44, %c0_45] : memref<4x1x128xf32, #tpu.memory_space<vmem>>, vector<1x1x128xf32>
    %108 = vector.shape_cast %107 : vector<1x1x128xf32> to vector<1x128xf32>
    %109 = vector.shape_cast %108 : vector<1x128xf32> to vector<1x1x128xf32>
    %110 = arith.mulf %93, %106 : vector<4x1x128xf32>
    %111 = vector.broadcast %109 : vector<1x1x128xf32> to vector<4x1x128xf32>
    %112 = arith.subf %111, %110 : vector<4x1x128xf32>
    %113 = vector.shape_cast %83 : vector<64x128xf32> to vector<4x16x128xf32>
    %114 = vector.broadcast %106 : vector<4x1x128xf32> to vector<4x16x128xf32>
    %115 = arith.mulf %113, %114 : vector<4x16x128xf32>
    %116 = vector.broadcast %112 : vector<4x1x128xf32> to vector<4x16x128xf32>
    %117 = arith.addf %115, %116 : vector<4x16x128xf32>
    %118 = vector.shape_cast %117 : vector<4x16x128xf32> to vector<64x128xf32>
    %119 = arith.addf %118, %8 : vector<64x128xf32>
    %120 = arith.truncf %119 : vector<64x128xf32> to vector<64x128xbf16>
    %c1_i32_46 = arith.constant 1 : i32
    %121 = tpu.dynamic_rotate %119 by %c1_i32_46 dim 0 : vector<64x128xf32>, i32 -> vector<64x128xf32>
    %cst_47 = arith.constant 0.000000e+00 : f32
    %122 = vector.broadcast %cst_47 : f32 to vector<64x128xf32>
    %123 = arith.select %3, %121, %122 : vector<64x128xi1>, vector<64x128xf32>
    %124 = arith.truncf %123 : vector<64x128xf32> to vector<64x128xbf16>
    %c63_i32_48 = arith.constant 63 : i32
    %125 = tpu.dynamic_rotate %119 by %c63_i32_48 dim 0 : vector<64x128xf32>, i32 -> vector<64x128xf32>
    %cst_49 = arith.constant 0.000000e+00 : f32
    %126 = vector.broadcast %cst_49 : f32 to vector<64x128xf32>
    %127 = arith.select %5, %125, %126 : vector<64x128xi1>, vector<64x128xf32>
    %128 = arith.truncf %127 : vector<64x128xf32> to vector<64x128xbf16>
    %129 = tpu.concatenate %124, %120, %128 in 1 : vector<64x128xbf16>, vector<64x128xbf16>, vector<64x128xbf16> -> vector<64x384xbf16>
    %c2 = arith.constant 2 : index
    %c0_50 = arith.constant 0 : index
    %c0_51 = arith.constant 0 : index
    %130 = vector.load %arg2[%c2, %c0_50, %c0_51] : memref<5x384x128xbf16, #tpu.memory_space<vmem>>, vector<1x384x128xbf16>
    %131 = vector.shape_cast %130 : vector<1x384x128xbf16> to vector<384x128xbf16>
    %cst_52 = arith.constant dense<0.000000e+00> : vector<64x128xf32>
    %132 = tpu.matmul %129, %131, %cst_52 {dimension_numbers = #tpu.dot_dimension_numbers<[1], [0], [0], [1], [0, 0, 1, 1], [], []>} : vector<64x384xbf16>, vector<384x128xbf16>, vector<64x128xf32> -> vector<64x128xf32>
    %c2_53 = arith.constant 2 : index
    %c0_54 = arith.constant 0 : index
    %c0_55 = arith.constant 0 : index
    %133 = vector.load %arg3[%c2_53, %c0_54, %c0_55] : memref<5x1x128xf32, #tpu.memory_space<vmem>>, vector<1x1x128xf32>
    %134 = vector.shape_cast %133 : vector<1x1x128xf32> to vector<1x128xf32>
    %135 = vector.broadcast %134 : vector<1x128xf32> to vector<64x128xf32>
    %136 = arith.addf %132, %135 : vector<64x128xf32>
    %137 = arith.mulf %136, %136 : vector<64x128xf32>
    %138 = tpu.concatenate %136, %137 in 0 : vector<64x128xf32>, vector<64x128xf32> -> vector<128x128xf32>
    %139 = arith.truncf %138 : vector<128x128xf32> to vector<128x128xbf16>
    %cst_56 = arith.constant dense<0.000000e+00> : vector<128x128xf32>
    %140 = tpu.matmul %139, %6, %cst_56 {dimension_numbers = #tpu.dot_dimension_numbers<[1], [0], [0], [1], [0, 0, 1, 1], [], []>} : vector<128x128xbf16>, vector<128x128xbf16>, vector<128x128xf32> -> vector<128x128xf32>
    %141 = vector.shape_cast %140 : vector<128x128xf32> to vector<8x16x128xf32>
    %cst_57 = arith.constant dense<0.000000e+00> : vector<8x128xf32>
    %142 = vector.multi_reduction <add>, %141, %cst_57 [1] : vector<8x16x128xf32> to vector<8x128xf32>
    %143 = vector.shape_cast %142 : vector<8x128xf32> to vector<8x1x128xf32>
    %cst_58 = arith.constant 3.906250e-03 : f32
    %144 = vector.broadcast %cst_58 : f32 to vector<8x1x128xf32>
    %145 = arith.mulf %143, %144 : vector<8x1x128xf32>
    %146 = vector.extract_strided_slice %145 {offsets = [0, 0, 0], sizes = [4, 1, 128], strides = [1, 1, 1]} : vector<8x1x128xf32> to vector<4x1x128xf32>
    %147 = vector.extract_strided_slice %145 {offsets = [4, 0, 0], sizes = [4, 1, 128], strides = [1, 1, 1]} : vector<8x1x128xf32> to vector<4x1x128xf32>
    %148 = arith.mulf %146, %146 : vector<4x1x128xf32>
    %149 = arith.subf %147, %148 : vector<4x1x128xf32>
    %cst_59 = arith.constant 0.000000e+00 : f32
    %150 = vector.broadcast %cst_59 : f32 to vector<4x1x128xf32>
    %151 = arith.maximumf %149, %150 : vector<4x1x128xf32>
    %cst_60 = arith.constant 9.99999974E-6 : f32
    %152 = vector.broadcast %cst_60 : f32 to vector<4x1x128xf32>
    %153 = arith.addf %151, %152 : vector<4x1x128xf32>
    %154 = math.rsqrt %153 : vector<4x1x128xf32>
    %c2_61 = arith.constant 2 : index
    %c0_62 = arith.constant 0 : index
    %c0_63 = arith.constant 0 : index
    %155 = vector.load %arg4[%c2_61, %c0_62, %c0_63] : memref<4x1x128xf32, #tpu.memory_space<vmem>>, vector<1x1x128xf32>
    %156 = vector.shape_cast %155 : vector<1x1x128xf32> to vector<1x128xf32>
    %157 = vector.shape_cast %156 : vector<1x128xf32> to vector<1x1x128xf32>
    %158 = vector.broadcast %157 : vector<1x1x128xf32> to vector<4x1x128xf32>
    %159 = arith.mulf %154, %158 : vector<4x1x128xf32>
    %c2_64 = arith.constant 2 : index
    %c0_65 = arith.constant 0 : index
    %c0_66 = arith.constant 0 : index
    %160 = vector.load %arg5[%c2_64, %c0_65, %c0_66] : memref<4x1x128xf32, #tpu.memory_space<vmem>>, vector<1x1x128xf32>
    %161 = vector.shape_cast %160 : vector<1x1x128xf32> to vector<1x128xf32>
    %162 = vector.shape_cast %161 : vector<1x128xf32> to vector<1x1x128xf32>
    %163 = arith.mulf %146, %159 : vector<4x1x128xf32>
    %164 = vector.broadcast %162 : vector<1x1x128xf32> to vector<4x1x128xf32>
    %165 = arith.subf %164, %163 : vector<4x1x128xf32>
    %166 = vector.shape_cast %136 : vector<64x128xf32> to vector<4x16x128xf32>
    %167 = vector.broadcast %159 : vector<4x1x128xf32> to vector<4x16x128xf32>
    %168 = arith.mulf %166, %167 : vector<4x16x128xf32>
    %169 = vector.broadcast %165 : vector<4x1x128xf32> to vector<4x16x128xf32>
    %170 = arith.addf %168, %169 : vector<4x16x128xf32>
    %171 = vector.shape_cast %170 : vector<4x16x128xf32> to vector<64x128xf32>
    %c1_67 = arith.constant 1 : index
    %172 = memref.load %arg7[%c1_67] : memref<2xf32, #tpu.memory_space<smem>>
    %cst_68 = arith.constant 0.000000e+00 : f32
    %173 = vector.broadcast %cst_68 : f32 to vector<64x128xf32>
    %174 = arith.cmpf ogt, %171, %173 : vector<64x128xf32>
    %175 = vector.broadcast %172 : f32 to vector<64x128xf32>
    %176 = arith.mulf %175, %171 : vector<64x128xf32>
    %177 = arith.select %174, %171, %176 : vector<64x128xi1>, vector<64x128xf32>
    %178 = arith.truncf %177 : vector<64x128xf32> to vector<64x128xbf16>
    %c1_i32_69 = arith.constant 1 : i32
    %179 = tpu.dynamic_rotate %177 by %c1_i32_69 dim 0 : vector<64x128xf32>, i32 -> vector<64x128xf32>
    %cst_70 = arith.constant 0.000000e+00 : f32
    %180 = vector.broadcast %cst_70 : f32 to vector<64x128xf32>
    %181 = arith.select %3, %179, %180 : vector<64x128xi1>, vector<64x128xf32>
    %182 = arith.truncf %181 : vector<64x128xf32> to vector<64x128xbf16>
    %c63_i32_71 = arith.constant 63 : i32
    %183 = tpu.dynamic_rotate %177 by %c63_i32_71 dim 0 : vector<64x128xf32>, i32 -> vector<64x128xf32>
    %cst_72 = arith.constant 0.000000e+00 : f32
    %184 = vector.broadcast %cst_72 : f32 to vector<64x128xf32>
    %185 = arith.select %5, %183, %184 : vector<64x128xi1>, vector<64x128xf32>
    %186 = arith.truncf %185 : vector<64x128xf32> to vector<64x128xbf16>
    %187 = tpu.concatenate %182, %178, %186 in 1 : vector<64x128xbf16>, vector<64x128xbf16>, vector<64x128xbf16> -> vector<64x384xbf16>
    %c3 = arith.constant 3 : index
    %c0_73 = arith.constant 0 : index
    %c0_74 = arith.constant 0 : index
    %188 = vector.load %arg2[%c3, %c0_73, %c0_74] : memref<5x384x128xbf16, #tpu.memory_space<vmem>>, vector<1x384x128xbf16>
    %189 = vector.shape_cast %188 : vector<1x384x128xbf16> to vector<384x128xbf16>
    %cst_75 = arith.constant dense<0.000000e+00> : vector<64x128xf32>
    %190 = tpu.matmul %187, %189, %cst_75 {dimension_numbers = #tpu.dot_dimension_numbers<[1], [0], [0], [1], [0, 0, 1, 1], [], []>} : vector<64x384xbf16>, vector<384x128xbf16>, vector<64x128xf32> -> vector<64x128xf32>
    %c3_76 = arith.constant 3 : index
    %c0_77 = arith.constant 0 : index
    %c0_78 = arith.constant 0 : index
    %191 = vector.load %arg3[%c3_76, %c0_77, %c0_78] : memref<5x1x128xf32, #tpu.memory_space<vmem>>, vector<1x1x128xf32>
    %192 = vector.shape_cast %191 : vector<1x1x128xf32> to vector<1x128xf32>
    %193 = vector.broadcast %192 : vector<1x128xf32> to vector<64x128xf32>
    %194 = arith.addf %190, %193 : vector<64x128xf32>
    %195 = arith.mulf %194, %194 : vector<64x128xf32>
    %196 = tpu.concatenate %194, %195 in 0 : vector<64x128xf32>, vector<64x128xf32> -> vector<128x128xf32>
    %197 = arith.truncf %196 : vector<128x128xf32> to vector<128x128xbf16>
    %cst_79 = arith.constant dense<0.000000e+00> : vector<128x128xf32>
    %198 = tpu.matmul %197, %6, %cst_79 {dimension_numbers = #tpu.dot_dimension_numbers<[1], [0], [0], [1], [0, 0, 1, 1], [], []>} : vector<128x128xbf16>, vector<128x128xbf16>, vector<128x128xf32> -> vector<128x128xf32>
    %199 = vector.shape_cast %198 : vector<128x128xf32> to vector<8x16x128xf32>
    %cst_80 = arith.constant dense<0.000000e+00> : vector<8x128xf32>
    %200 = vector.multi_reduction <add>, %199, %cst_80 [1] : vector<8x16x128xf32> to vector<8x128xf32>
    %201 = vector.shape_cast %200 : vector<8x128xf32> to vector<8x1x128xf32>
    %cst_81 = arith.constant 3.906250e-03 : f32
    %202 = vector.broadcast %cst_81 : f32 to vector<8x1x128xf32>
    %203 = arith.mulf %201, %202 : vector<8x1x128xf32>
    %204 = vector.extract_strided_slice %203 {offsets = [0, 0, 0], sizes = [4, 1, 128], strides = [1, 1, 1]} : vector<8x1x128xf32> to vector<4x1x128xf32>
    %205 = vector.extract_strided_slice %203 {offsets = [4, 0, 0], sizes = [4, 1, 128], strides = [1, 1, 1]} : vector<8x1x128xf32> to vector<4x1x128xf32>
    %206 = arith.mulf %204, %204 : vector<4x1x128xf32>
    %207 = arith.subf %205, %206 : vector<4x1x128xf32>
    %cst_82 = arith.constant 0.000000e+00 : f32
    %208 = vector.broadcast %cst_82 : f32 to vector<4x1x128xf32>
    %209 = arith.maximumf %207, %208 : vector<4x1x128xf32>
    %cst_83 = arith.constant 9.99999974E-6 : f32
    %210 = vector.broadcast %cst_83 : f32 to vector<4x1x128xf32>
    %211 = arith.addf %209, %210 : vector<4x1x128xf32>
    %212 = math.rsqrt %211 : vector<4x1x128xf32>
    %c3_84 = arith.constant 3 : index
    %c0_85 = arith.constant 0 : index
    %c0_86 = arith.constant 0 : index
    %213 = vector.load %arg4[%c3_84, %c0_85, %c0_86] : memref<4x1x128xf32, #tpu.memory_space<vmem>>, vector<1x1x128xf32>
    %214 = vector.shape_cast %213 : vector<1x1x128xf32> to vector<1x128xf32>
    %215 = vector.shape_cast %214 : vector<1x128xf32> to vector<1x1x128xf32>
    %216 = vector.broadcast %215 : vector<1x1x128xf32> to vector<4x1x128xf32>
    %217 = arith.mulf %212, %216 : vector<4x1x128xf32>
    %c3_87 = arith.constant 3 : index
    %c0_88 = arith.constant 0 : index
    %c0_89 = arith.constant 0 : index
    %218 = vector.load %arg5[%c3_87, %c0_88, %c0_89] : memref<4x1x128xf32, #tpu.memory_space<vmem>>, vector<1x1x128xf32>
    %219 = vector.shape_cast %218 : vector<1x1x128xf32> to vector<1x128xf32>
    %220 = vector.shape_cast %219 : vector<1x128xf32> to vector<1x1x128xf32>
    %221 = arith.mulf %204, %217 : vector<4x1x128xf32>
    %222 = vector.broadcast %220 : vector<1x1x128xf32> to vector<4x1x128xf32>
    %223 = arith.subf %222, %221 : vector<4x1x128xf32>
    %224 = vector.shape_cast %194 : vector<64x128xf32> to vector<4x16x128xf32>
    %225 = vector.broadcast %217 : vector<4x1x128xf32> to vector<4x16x128xf32>
    %226 = arith.mulf %224, %225 : vector<4x16x128xf32>
    %227 = vector.broadcast %223 : vector<4x1x128xf32> to vector<4x16x128xf32>
    %228 = arith.addf %226, %227 : vector<4x16x128xf32>
    %229 = vector.shape_cast %228 : vector<4x16x128xf32> to vector<64x128xf32>
    %230 = arith.addf %229, %119 : vector<64x128xf32>
    %231 = arith.truncf %230 : vector<64x128xf32> to vector<64x128xbf16>
    %c1_i32_90 = arith.constant 1 : i32
    %232 = tpu.dynamic_rotate %230 by %c1_i32_90 dim 0 : vector<64x128xf32>, i32 -> vector<64x128xf32>
    %cst_91 = arith.constant 0.000000e+00 : f32
    %233 = vector.broadcast %cst_91 : f32 to vector<64x128xf32>
    %234 = arith.select %3, %232, %233 : vector<64x128xi1>, vector<64x128xf32>
    %235 = arith.truncf %234 : vector<64x128xf32> to vector<64x128xbf16>
    %c63_i32_92 = arith.constant 63 : i32
    %236 = tpu.dynamic_rotate %230 by %c63_i32_92 dim 0 : vector<64x128xf32>, i32 -> vector<64x128xf32>
    %cst_93 = arith.constant 0.000000e+00 : f32
    %237 = vector.broadcast %cst_93 : f32 to vector<64x128xf32>
    %238 = arith.select %5, %236, %237 : vector<64x128xi1>, vector<64x128xf32>
    %239 = arith.truncf %238 : vector<64x128xf32> to vector<64x128xbf16>
    %240 = tpu.concatenate %235, %231, %239 in 1 : vector<64x128xbf16>, vector<64x128xbf16>, vector<64x128xbf16> -> vector<64x384xbf16>
    %c4 = arith.constant 4 : index
    %c0_94 = arith.constant 0 : index
    %c0_95 = arith.constant 0 : index
    %241 = vector.load %arg2[%c4, %c0_94, %c0_95] : memref<5x384x128xbf16, #tpu.memory_space<vmem>>, vector<1x384x128xbf16>
    %242 = vector.shape_cast %241 : vector<1x384x128xbf16> to vector<384x128xbf16>
    %cst_96 = arith.constant dense<0.000000e+00> : vector<64x128xf32>
    %243 = tpu.matmul %240, %242, %cst_96 {dimension_numbers = #tpu.dot_dimension_numbers<[1], [0], [0], [1], [0, 0, 1, 1], [], []>} : vector<64x384xbf16>, vector<384x128xbf16>, vector<64x128xf32> -> vector<64x128xf32>
    %c4_97 = arith.constant 4 : index
    %c0_98 = arith.constant 0 : index
    %c0_99 = arith.constant 0 : index
    %244 = vector.load %arg3[%c4_97, %c0_98, %c0_99] : memref<5x1x128xf32, #tpu.memory_space<vmem>>, vector<1x1x128xf32>
    %245 = vector.shape_cast %244 : vector<1x1x128xf32> to vector<1x128xf32>
    %246 = vector.broadcast %245 : vector<1x128xf32> to vector<64x128xf32>
    %247 = arith.addf %243, %246 : vector<64x128xf32>
    %248 = vector.shape_cast %247 : vector<64x128xf32> to vector<4x16x128xf32>
    %c0_100 = arith.constant 0 : index
    %c0_101 = arith.constant 0 : index
    %c0_102 = arith.constant 0 : index
    %249 = vector.load %arg1[%c0_100, %c0_101, %c0_102] : memref<4x16x128xf32, #tpu.memory_space<vmem>>, vector<4x16x128xf32>
    %250 = arith.addf %248, %249 : vector<4x16x128xf32>
    %c0_103 = arith.constant 0 : index
    %c0_104 = arith.constant 0 : index
    %c0_105 = arith.constant 0 : index
    %251 = vector.load %arg8[%c0_103, %c0_104, %c0_105] : memref<4x16x128xf32, #tpu.memory_space<vmem>>, vector<4x16x128xf32>
    tpu.vector_store %arg8[%c0_103, %c0_104, %c0_105], %250 {strides = array<i32>} : memref<4x16x128xf32, #tpu.memory_space<vmem>>, vector<4x16x128xf32>,
    return
  }
  func.func @transform_0(%arg0: i32) -> (i32, i32, i32) {
    %c0_i32 = arith.constant 0 : i32
    %c0_i32_0 = arith.constant 0 : i32
    %c0_i32_1 = arith.constant 0 : i32
    return %arg0, %c0_i32, %c0_i32_0 : i32, i32, i32
  }
  func.func @transform_1(%arg0: i32) -> (i32, i32, i32) {
    %c0_i32 = arith.constant 0 : i32
    %c0_i32_0 = arith.constant 0 : i32
    %c0_i32_1 = arith.constant 0 : i32
    %c0_i32_2 = arith.constant 0 : i32
    return %c0_i32, %c0_i32_0, %c0_i32_1 : i32, i32, i32
  }
  func.func @transform_2(%arg0: i32) -> (i32, i32, i32) {
    %c0_i32 = arith.constant 0 : i32
    %c0_i32_0 = arith.constant 0 : i32
    %c0_i32_1 = arith.constant 0 : i32
    %c0_i32_2 = arith.constant 0 : i32
    return %c0_i32, %c0_i32_0, %c0_i32_1 : i32, i32, i32
  }
  func.func @transform_3(%arg0: i32) -> (i32, i32, i32) {
    %c0_i32 = arith.constant 0 : i32
    %c0_i32_0 = arith.constant 0 : i32
    %c0_i32_1 = arith.constant 0 : i32
    %c0_i32_2 = arith.constant 0 : i32
    return %c0_i32, %c0_i32_0, %c0_i32_1 : i32, i32, i32
  }
  func.func @transform_4(%arg0: i32) -> (i32, i32, i32) {
    %c0_i32 = arith.constant 0 : i32
    %c0_i32_0 = arith.constant 0 : i32
    %c0_i32_1 = arith.constant 0 : i32
    %c0_i32_2 = arith.constant 0 : i32
    return %c0_i32, %c0_i32_0, %c0_i32_1 : i32, i32, i32
  }
  func.func @transform_5(%arg0: i32) -> (i32, i32) {
    %c0_i32 = arith.constant 0 : i32
    %c0_i32_0 = arith.constant 0 : i32
    %c0_i32_1 = arith.constant 0 : i32
    return %c0_i32, %c0_i32_0 : i32, i32
  }
  func.func @transform_6(%arg0: i32) -> i32 {
    %c0_i32 = arith.constant 0 : i32
    %c0_i32_0 = arith.constant 0 : i32
    return %c0_i32 : i32
  }
  func.func @transform_7(%arg0: i32) -> (i32, i32, i32) {
    %c0_i32 = arith.constant 0 : i32
    %c0_i32_0 = arith.constant 0 : i32
    %c0_i32_1 = arith.constant 0 : i32
    return %arg0, %c0_i32, %c0_i32_0 : i32, i32, i32
  }
}

</mosaic_0001>

<llo_original>
// kernel: tile.116
$region0: #{tile.116}
  #allocation0 [shape = 's32[1]{0}', space=sflag, size = 0x4, scoped, tag = 'scoped memory for tile.116']
  %s0 = inlined_call_operand.vmem [shape: f32[8], index: 0, kind: input, shape index: {}]
  %s1 = inlined_call_operand.vmem [shape: f32[16,8], index: 1, kind: output, shape index: {}]
  // Predicated region
  $region2: #{tile.116} parent=0 // pred_check
    _
  $region3: #{tile.116} parent=0 // pred_check_branch
    %3 = sbr.rel (0) target = $region5
  $region4: #{tile.116} parent=0 // pred_region
    _
  $region5: #{tile.116} parent=0 // pred_fallthru
    _
  %v4 = vld [vmem:[%s0] ss:$0 sm:$0xff]
  %5 = vst [vmem:[%s1] sm:$0xff] %v4
  %s6 = scalar_lea.vmem %s1, 8
  %7 = vst [vmem:[%s6] sm:$0xff] %v4

// kernel: tile.121
$region0: #{tile.121}
  %s0 = inlined_call_operand.vmem [shape: f32[16,8], index: 0, kind: input, shape index: {}]
  %s1 = inlined_call_operand.vmem [shape: f32[1,128], index: 1, kind: output, shape index: {}]
  $region1: #{tile.121} parent=0
    #allocation0 [shape = 'u8[4096]{0}', space=vmem, size = 0x1000, scoped, tag = 'scoped mem for output reshape']
    %v2 = vld [vmem:[%s0] sm:$0x1]
    %vm3 = vcmask 64512
    %4 = vst.msk [vmem:[#allocation0] sm:$0x1] %vm3, %v2
    %s5 = scalar_lea.vmem %s0, 15
    %v6 = vld [vmem:[%s5] sm:$0x1]
    %7 = vrot.lane.b32.xlu0 %v6, 120
    %v8 = vpop.permute.xlu0 %7
    %vm9 = vcmask 1048512
    %10 = vst.msk [vmem:[#allocation0] sm:$0x1] %vm9, %v8
    %s11 = scalar_lea.vmem %s0, 14
    %v12 = vld [vmem:[%s11] sm:$0x1]
    %13 = vrot.lane.b32.xlu0 %v12, 112
    %v14 = vpop.permute.xlu0 %13
    %vm15 = vcmask 982912
    %16 = vst.msk [vmem:[#allocation0] sm:$0x1] %vm15, %v14
    %s17 = scalar_lea.vmem %s0, 13
    %v18 = vld [vmem:[%s17] sm:$0x1]
    %19 = vrot.lane.b32.xlu0 %v18, 104
    %v20 = vpop.permute.xlu0 %19
    %vm21 = vcmask 917312
    %22 = vst.msk [vmem:[#allocation0] sm:$0x1] %vm21, %v20
    %s23 = scalar_lea.vmem %s0, 12
    %v24 = vld [vmem:[%s23] sm:$0x1]
    %25 = vrot.lane.b32.xlu0 %v24, 96
    %v26 = vpop.permute.xlu0 %25
    %vm27 = vcmask 851712
    %28 = vst.msk [vmem:[#allocation0] sm:$0x1] %vm27, %v26
    %s29 = scalar_lea.vmem %s0, 11
    %v30 = vld [vmem:[%s29] sm:$0x1]
    %31 = vrot.lane.b32.xlu0 %v30, 88
    %v32 = vpop.permute.xlu0 %31
    %vm33 = vcmask 786112
    %34 = vst.msk [vmem:[#allocation0] sm:$0x1] %vm33, %v32
    %s35 = scalar_lea.vmem %s0, 10
    %v36 = vld [vmem:[%s35] sm:$0x1]
    %37 = vrot.lane.b32.xlu0 %v36, 80
    %v38 = vpop.permute.xlu0 %37
    %vm39 = vcmask 720512
    %40 = vst.msk [vmem:[#allocation0] sm:$0x1] %vm39, %v38
    %s41 = scalar_lea.vmem %s0, 9
    %v42 = vld [vmem:[%s41] sm:$0x1]
    %43 = vrot.lane.b32.xlu0 %v42, 72
    %v44 = vpop.permute.xlu0 %43
    %vm45 = vcmask 654912
    %46 = vst.msk [vmem:[#allocation0] sm:$0x1] %vm45, %v44
    %s47 = scalar_lea.vmem %s0, 8
    %v48 = vld [vmem:[%s47] sm:$0x1]
    %49 = vrot.lane.b32.xlu0 %v48, 64
    %v50 = vpop.permute.xlu0 %49
    %vm51 = vcmask 589312
    %52 = vst.msk [vmem:[#allocation0] sm:$0x1] %vm51, %v50
    %s53 = scalar_lea.vmem %s0, 7
    %v54 = vld [vmem:[%s53] sm:$0x1]
    %55 = vrot.lane.b32.xlu0 %v54, 56
    %v56 = vpop.permute.xlu0 %55
    %vm57 = vcmask 523712
    %58 = vst.msk [vmem:[#allocation0] sm:$0x1] %vm57, %v56
    %s59 = scalar_lea.vmem %s0, 6
    %v60 = vld [vmem:[%s59] sm:$0x1]
    %61 = vrot.lane.b32.xlu0 %v60, 48
    %v62 = vpop.permute.xlu0 %61
    %vm63 = vcmask 458112
    %64 = vst.msk [vmem:[#allocation0] sm:$0x1] %vm63, %v62
    %s65 = scalar_lea.vmem %s0, 5
    %v66 = vld [vmem:[%s65] sm:$0x1]
    %67 = vrot.lane.b32.xlu0 %v66, 40
    %v68 = vpop.permute.xlu0 %67
    %vm69 = vcmask 392512
    %70 = vst.msk [vmem:[#allocation0] sm:$0x1] %vm69, %v68
    %s71 = scalar_lea.vmem %s0, 4
    %v72 = vld [vmem:[%s71] sm:$0x1]
    %73 = vrot.lane.b32.xlu0 %v72, 32
    %v74 = vpop.permute.xlu0 %73
    %vm75 = vcmask 326912
    %76 = vst.msk [vmem:[#allocation0] sm:$0x1] %vm75, %v74
    %s77 = scalar_lea.vmem %s0, 3
    %v78 = vld [vmem:[%s77] sm:$0x1]
    %79 = vrot.lane.b32.xlu0 %v78, 24
    %v80 = vpop.permute.xlu0 %79
    %vm81 = vcmask 261312
    %82 = vst.msk [vmem:[#allocation0] sm:$0x1] %vm81, %v80
    %s83 = scalar_lea.vmem %s0, 2
    %v84 = vld [vmem:[%s83] sm:$0x1]
    %85 = vrot.lane.b32.xlu0 %v84, 16
    %v86 = vpop.permute.xlu0 %85
    %vm87 = vcmask 195712
    %88 = vst.msk [vmem:[#allocation0] sm:$0x1] %vm87, %v86
    %s89 = scalar_lea.vmem %s0, 1
    %v90 = vld [vmem:[%s89] sm:$0x1]
    %91 = vrot.lane.b32.xlu0 %v90, 8
    %v92 = vpop.permute.xlu0 %91
    %vm93 = vcmask 130112
    %94 = vst.msk [vmem:[#allocation0] sm:$0x1] %vm93, %v92
    %s96 = sshll.u32 1, 1
    %s97 = ssub.s32 %s96, 1
    %v99 = vld [vmem:[#allocation0] sm:%s97]
    %s100 = sshll.u32 1, 1
    %s101 = ssub.s32 %s100, 1
    %102 = vst [vmem:[%s1] sm:%s101] %v99

// kernel: rbgroup_forward_nchw.1
$region0: #{rbgroup_forward_nchw.1}
  #allocation0 [shape = 'u32[]', space=smem, size = 0x4, offset = 0x4, fixed_abs, tag = 'smem constant byte address 0x4 - core index']
  #allocation1 [shape = 'u32[144,128]{1,0:T(1,128)}', space=vmem, size = 0x12000, scoped, tag = 'internal scratch']
  %s0 = inlined_call_operand.vmem [shape: f32[8,16,128], index: 0, kind: input, shape index: {}]
  %s1 = inlined_call_operand.vmem [shape: bf16[5,384,128], index: 1, kind: input, shape index: {}]
  %s2 = inlined_call_operand.vmem [shape: f32[5,1,128], index: 2, kind: input, shape index: {}]
  %s3 = inlined_call_operand.vmem [shape: f32[4,1,128], index: 3, kind: input, shape index: {}]
  %s4 = inlined_call_operand.vmem [shape: f32[4,1,128], index: 4, kind: input, shape index: {}]
  %s5 = inlined_call_operand.vmem [shape: bf16[128,128], index: 5, kind: input, shape index: {}]
  %s6 = inlined_call_operand.vmem [shape: f32[2], index: 6, kind: input, shape index: {}]
  %s7 = inlined_call_operand.vmem [shape: f32[8,16,128], index: 7, kind: output, shape index: {}]
  %s8 = sld [smem:[#allocation0]]
  $region65: #{rbgroup_forward_nchw.1} parent=0
    _
  %s10 = ssub.s32 1, %s8
  %s11 = scalar_select 0, %s10, %s8
  $region1: #{rbgroup_forward_nchw.1} parent=0
    #allocation2 [shape = 'u8[512]{0}', space=smem, size = 0x200, scoped, tag = 'input window, operand 6, single buffered']
    #allocation3 [shape = 's32[2]{0}', space=sflag, size = 0x8, scoped, tag = 'scoped memory for rbgroup_forward_nchw.1']
    %12 = vsyncpa [#allocation3], 0
    loop: start=0, step=1, limit=4
    $region2: #{rbgroup_forward_nchw.1} parent=1 // loop_pre_header
      _
    $region3: #{rbgroup_forward_nchw.1} parent=1 // loop_header
      %s14 = sphi 0, %s18
      %p15 = scmp.ge.s32.totalorder %s14, 4
      %s24 = sphi 0, %s26
      %s27 = sphi 0, %s24
      %s28 = sphi 0, %s27
      %s44 = sphi 0, %s28
      %s48 = sphi 0, %s48
      %s50 = sphi 0, %s48
      %s51 = sphi 0, %s50
      %s65 = sphi 0, %s51
      %s69 = sphi 0, %s69
      %s71 = sphi 0, %s69
      %s72 = sphi 0, %s71
      %s86 = sphi 0, %s72
      %s90 = sphi 0, %s90
      %s92 = sphi 0, %s90
      %s93 = sphi 0, %s92
      %s107 = sphi 0, %s93
      %s111 = sphi 0, %s111
      %s113 = sphi 0, %s111
      %s114 = sphi 0, %s113
      %s128 = sphi 0, %s114
      %s132 = sphi 0, %s132
      %s134 = sphi 0, %s132
      %s135 = sphi 0, %s134
      %s149 = sphi 0, %s135
      %s153 = sphi 0, %s153
      %s155 = sphi 0, %s153
      %s156 = sphi 0, %s155
      %s170 = sphi 0, %s156
      %s176 = sphi 0, %s178
      %s179 = sphi 0, %s176
      %s180 = sphi 0, %s179
      %s196 = sphi 0, %s180
    $region4: #{rbgroup_forward_nchw.1} parent=1 // loop_header_branch
      %17 = sbr.rel (%p15) target = $region8
    $region5: #{rbgroup_forward_nchw.1} parent=1 // loop_body
      %s19 = ssub.s32 %s14, 1
      %s20 = ssub.s32 %s14, 2
      %s21 = sadd.s32 %s14, 1
      %s22 = ssub.s32 %s14, %s21
      %p23 = scmp.eq.s32.totalorder %s22, 0
      %s25 = sadd.s32 %s24, 1
      %s26 = scalar_select %p23, %s24, %s25
      %p29 = pneg %p23
      %p30 = scmp.eq.s32.totalorder %s14, 1
      %p31 = por %p29, %p30
      %p32 = scmp.ne.s32.totalorder %s24, %s27
      %p33 = scmp.eq.s32.totalorder %s14, 0
      %p34 = por %p32, %p33
      %p35 = scmp.ne.s32.totalorder %s24, %s27
      %p36 = scmp.eq.s32.totalorder %s19, 1
      %p37 = por %p35, %p36
      %p38 = scmp.ne.s32.totalorder %s27, %s28
      %p39 = scmp.eq.s32.totalorder %s19, 0
      %p40 = por %p38, %p39
      %p41 = scmp.ne.s32.totalorder %s27, %s28
      %p42 = scmp.eq.s32.totalorder %s20, 1
      %p43 = por %p41, %p42
      %p45 = scmp.ne.s32.totalorder %s28, %s44
      %p46 = scmp.eq.s32.totalorder %s20, 0
      %p47 = por %p45, %p46
      %s49 = sadd.s32 %s48, 1
      %p52 = scmp.eq.s32.totalorder %s14, 1
      %p53 = scmp.ne.s32.totalorder %s48, %s50
      %p54 = scmp.eq.s32.totalorder %s14, 0
      %p55 = por %p53, %p54
      %p56 = scmp.ne.s32.totalorder %s48, %s50
      %p57 = scmp.eq.s32.totalorder %s19, 1
      %p58 = por %p56, %p57
      %p59 = scmp.ne.s32.totalorder %s50, %s51
      %p60 = scmp.eq.s32.totalorder %s19, 0
      %p61 = por %p59, %p60
      %p62 = scmp.ne.s32.totalorder %s50, %s51
      %p63 = scmp.eq.s32.totalorder %s20, 1
      %p64 = por %p62, %p63
      %p66 = scmp.ne.s32.totalorder %s51, %s65
      %p67 = scmp.eq.s32.totalorder %s20, 0
      %p68 = por %p66, %p67
      %s70 = sadd.s32 %s69, 1
      %p73 = scmp.eq.s32.totalorder %s14, 1
      %p74 = scmp.ne.s32.totalorder %s69, %s71
      %p75 = scmp.eq.s32.totalorder %s14, 0
      %p76 = por %p74, %p75
      %p77 = scmp.ne.s32.totalorder %s69, %s71
      %p78 = scmp.eq.s32.totalorder %s19, 1
      %p79 = por %p77, %p78
      %p80 = scmp.ne.s32.totalorder %s71, %s72
      %p81 = scmp.eq.s32.totalorder %s19, 0
      %p82 = por %p80, %p81
      %p83 = scmp.ne.s32.totalorder %s71, %s72
      %p84 = scmp.eq.s32.totalorder %s20, 1
      %p85 = por %p83, %p84
      %p87 = scmp.ne.s32.totalorder %s72, %s86
      %p88 = scmp.eq.s32.totalorder %s20, 0
      %p89 = por %p87, %p88
      %s91 = sadd.s32 %s90, 1
      %p94 = scmp.eq.s32.totalorder %s14, 1
      %p95 = scmp.ne.s32.totalorder %s90, %s92
      %p96 = scmp.eq.s32.totalorder %s14, 0
      %p97 = por %p95, %p96
      %p98 = scmp.ne.s32.totalorder %s90, %s92
      %p99 = scmp.eq.s32.totalorder %s19, 1
      %p100 = por %p98, %p99
      %p101 = scmp.ne.s32.totalorder %s92, %s93
      %p102 = scmp.eq.s32.totalorder %s19, 0
      %p103 = por %p101, %p102
      %p104 = scmp.ne.s32.totalorder %s92, %s93
      %p105 = scmp.eq.s32.totalorder %s20, 1
      %p106 = por %p104, %p105
      %p108 = scmp.ne.s32.totalorder %s93, %s107
      %p109 = scmp.eq.s32.totalorder %s20, 0
      %p110 = por %p108, %p109
      %s112 = sadd.s32 %s111, 1
      %p115 = scmp.eq.s32.totalorder %s14, 1
      %p116 = scmp.ne.s32.totalorder %s111, %s113
      %p117 = scmp.eq.s32.totalorder %s14, 0
      %p118 = por %p116, %p117
      %p119 = scmp.ne.s32.totalorder %s111, %s113
      %p120 = scmp.eq.s32.totalorder %s19, 1
      %p121 = por %p119, %p120
      %p122 = scmp.ne.s32.totalorder %s113, %s114
      %p123 = scmp.eq.s32.totalorder %s19, 0
      %p124 = por %p122, %p123
      %p125 = scmp.ne.s32.totalorder %s113, %s114
      %p126 = scmp.eq.s32.totalorder %s20, 1
      %p127 = por %p125, %p126
      %p129 = scmp.ne.s32.totalorder %s114, %s128
      %p130 = scmp.eq.s32.totalorder %s20, 0
      %p131 = por %p129, %p130
      %s133 = sadd.s32 %s132, 1
      %p136 = scmp.eq.s32.totalorder %s14, 1
      %p137 = scmp.ne.s32.totalorder %s132, %s134
      %p138 = scmp.eq.s32.totalorder %s14, 0
      %p139 = por %p137, %p138
      %p140 = scmp.ne.s32.totalorder %s132, %s134
      %p141 = scmp.eq.s32.totalorder %s19, 1
      %p142 = por %p140, %p141
      %p143 = scmp.ne.s32.totalorder %s134, %s135
      %p144 = scmp.eq.s32.totalorder %s19, 0
      %p145 = por %p143, %p144
      %p146 = scmp.ne.s32.totalorder %s134, %s135
      %p147 = scmp.eq.s32.totalorder %s20, 1
      %p148 = por %p146, %p147
      %p150 = scmp.ne.s32.totalorder %s135, %s149
      %p151 = scmp.eq.s32.totalorder %s20, 0
      %p152 = por %p150, %p151
      %s154 = sadd.s32 %s153, 1
      %p157 = scmp.eq.s32.totalorder %s14, 1
      %p158 = scmp.ne.s32.totalorder %s153, %s155
      %p159 = scmp.eq.s32.totalorder %s14, 0
      %p160 = por %p158, %p159
      %p161 = scmp.ne.s32.totalorder %s153, %s155
      %p162 = scmp.eq.s32.totalorder %s19, 1
      %p163 = por %p161, %p162
      %p164 = scmp.ne.s32.totalorder %s155, %s156
      %p165 = scmp.eq.s32.totalorder %s19, 0
      %p166 = por %p164, %p165
      %p167 = scmp.ne.s32.totalorder %s155, %s156
      %p168 = scmp.eq.s32.totalorder %s20, 1
      %p169 = por %p167, %p168
      %p171 = scmp.ne.s32.totalorder %s156, %s170
      %p172 = scmp.eq.s32.totalorder %s20, 0
      %p173 = por %p171, %p172
      %s174 = ssub.s32 %s14, %s21
      %p175 = scmp.eq.s32.totalorder %s174, 0
      %s177 = sadd.s32 %s176, 1
      %s178 = scalar_select %p175, %s176, %s177
      %p181 = pneg %p175
      %p182 = scmp.eq.s32.totalorder %s14, 1
      %p183 = por %p181, %p182
      %p184 = scmp.ne.s32.totalorder %s176, %s179
      %p185 = scmp.eq.s32.totalorder %s14, 0
      %p186 = por %p184, %p185
      %p187 = scmp.ne.s32.totalorder %s176, %s179
      %p188 = scmp.eq.s32.totalorder %s19, 1
      %p189 = por %p187, %p188
      %p190 = scmp.ne.s32.totalorder %s179, %s180
      %p191 = scmp.eq.s32.totalorder %s19, 0
      %p192 = por %p190, %p191
      %p193 = scmp.ne.s32.totalorder %s179, %s180
      %p194 = scmp.eq.s32.totalorder %s20, 1
      %p195 = por %p193, %p194
      %p197 = scmp.ne.s32.totalorder %s180, %s196
      %p198 = scmp.eq.s32.totalorder %s20, 0
      %p199 = por %p197, %p198
      %p200 = scmp.le.s32.totalorder 1, %s14
      %p201 = scmp.lt.s32.totalorder %s14, 3
      %p202 = pnand %p200, %p201
      %p203 = pneg %p202
      // Predicated region
      $region9: #{rbgroup_forward_nchw.1} parent=5 // pred_check
        _
      $region10: #{rbgroup_forward_nchw.1} parent=5 // pred_check_branch
        %205 = sbr.rel (%p202) target = $region12
      $region11: #{rbgroup_forward_nchw.1} parent=5 // pred_region
        %s206 = ssub.s32 %s14, 1
        // Predicated region
        $region13: #{rbgroup_forward_nchw.1} parent=11 // pred_check
          %p207 = pneg %p61
        $region14: #{rbgroup_forward_nchw.1} parent=11 // pred_check_branch
          %209 = sbr.rel (%p207) target = $region16
        $region15: #{rbgroup_forward_nchw.1} parent=11 // pred_region
          _
        $region16: #{rbgroup_forward_nchw.1} parent=11 // pred_fallthru
          _
        // Predicated region
        $region17: #{rbgroup_forward_nchw.1} parent=11 // pred_check
          %p210 = pneg %p82
        $region18: #{rbgroup_forward_nchw.1} parent=11 // pred_check_branch
          %212 = sbr.rel (%p210) target = $region20
        $region19: #{rbgroup_forward_nchw.1} parent=11 // pred_region
          _
        $region20: #{rbgroup_forward_nchw.1} parent=11 // pred_fallthru
          _
        // Predicated region
        $region21: #{rbgroup_forward_nchw.1} parent=11 // pred_check
          %p213 = pneg %p103
        $region22: #{rbgroup_forward_nchw.1} parent=11 // pred_check_branch
          %215 = sbr.rel (%p213) target = $region24
        $region23: #{rbgroup_forward_nchw.1} parent=11 // pred_region
          _
        $region24: #{rbgroup_forward_nchw.1} parent=11 // pred_fallthru
          _
        // Predicated region
        $region25: #{rbgroup_forward_nchw.1} parent=11 // pred_check
          %p216 = pneg %p124
        $region26: #{rbgroup_forward_nchw.1} parent=11 // pred_check_branch
          %218 = sbr.rel (%p216) target = $region28
        $region27: #{rbgroup_forward_nchw.1} parent=11 // pred_region
          _
        $region28: #{rbgroup_forward_nchw.1} parent=11 // pred_fallthru
          _
        // Predicated region
        $region29: #{rbgroup_forward_nchw.1} parent=11 // pred_check
          %p219 = pneg %p145
        $region30: #{rbgroup_forward_nchw.1} parent=11 // pred_check_branch
          %221 = sbr.rel (%p219) target = $region32
        $region31: #{rbgroup_forward_nchw.1} parent=11 // pred_region
          _
        $region32: #{rbgroup_forward_nchw.1} parent=11 // pred_fallthru
          _
        // Predicated region
        $region33: #{rbgroup_forward_nchw.1} parent=11 // pred_check
          %p222 = pneg %p166
        $region34: #{rbgroup_forward_nchw.1} parent=11 // pred_check_branch
          %224 = sbr.rel (%p222) target = $region36
        $region35: #{rbgroup_forward_nchw.1} parent=11 // pred_region
          %s226 = ssub.s32 16, 16
          %227 = vsyncadd [#allocation3], %s226
          %s229 = sshll.u32 %s6, 4
          %s230 = int_to_ptr.vmem [resolvable:$true] %s229
          %232 = dma.vmem_to_smem %s230, 16, [#allocation2], [#allocation3]
        $region36: #{rbgroup_forward_nchw.1} parent=11 // pred_fallthru
          _
      $region12: #{rbgroup_forward_nchw.1} parent=5 // pred_fallthru
        _
      %p233 = scmp.lt.s32.totalorder %s14, 2
      // Predicated region
      $region37: #{rbgroup_forward_nchw.1} parent=5 // pred_check
        %p234 = pneg %p233
      $region38: #{rbgroup_forward_nchw.1} parent=5 // pred_check_branch
        %236 = sbr.rel (%p234) target = $region40
      $region39: #{rbgroup_forward_nchw.1} parent=5 // pred_region
        // Predicated region
        $region41: #{rbgroup_forward_nchw.1} parent=39 // pred_check
          %p237 = pneg %p34
        $region42: #{rbgroup_forward_nchw.1} parent=39 // pred_check_branch
          %239 = sbr.rel (%p237) target = $region44
        $region43: #{rbgroup_forward_nchw.1} parent=39 // pred_region
          %s240 = smul.u32 4, %s14
          %p241 = scmp.lt.s32.totalorder %s240, 7
          %s242 = scalar_select %p241, %s240, 7
          %s243 = smul.addr %s242, 2
          %s244 = smul.addr %s243, 8
          %s245 = scalar_lea.vmem %s0, %s244
          %s246 = smul.u32 4, %s14
        $region44: #{rbgroup_forward_nchw.1} parent=39 // pred_fallthru
          _
      $region40: #{rbgroup_forward_nchw.1} parent=5 // pred_fallthru
        _
      %p247 = scmp.le.s32.totalorder 1, %s14
      %p248 = scmp.lt.s32.totalorder %s14, 3
      %p249 = pnand %p247, %p248
      %p250 = pneg %p249
      // Predicated region
      $region45: #{rbgroup_forward_nchw.1} parent=5 // pred_check
        _
      $region46: #{rbgroup_forward_nchw.1} parent=5 // pred_check_branch
        %252 = sbr.rel (%p249) target = $region48
      $region47: #{rbgroup_forward_nchw.1} parent=5 // pred_region
        %s253 = ssub.s32 %s14, 1
        // Predicated region
        $region49: #{rbgroup_forward_nchw.1} parent=47 // pred_check
          %p254 = pneg %p166
        $region50: #{rbgroup_forward_nchw.1} parent=47 // pred_check_branch
          %256 = sbr.rel (%p254) target = $region52
        $region51: #{rbgroup_forward_nchw.1} parent=47 // pred_region
          %257 = dma.done [#allocation3], 16
        $region52: #{rbgroup_forward_nchw.1} parent=47 // pred_fallthru
          _
        %258 = sfence
        %s259 = smul.u32 4, %s19
        %p260 = scmp.lt.s32.totalorder %s259, 7
        %s261 = scalar_select %p260, %s259, 7
        %s262 = smul.addr %s261, 2
        %s263 = smul.addr %s262, 8
        %s264 = scalar_lea.vmem %s0, %s263
        %p265 = pneg %p40
        %p266 = pneg %p37
        %p267 = pneg %p61
        %p268 = pneg %p58
        %p269 = pneg %p82
        %p270 = pneg %p79
        %p271 = pneg %p103
        %p272 = pneg %p100
        %p273 = pneg %p124
        %p274 = pneg %p121
        %p275 = pneg %p145
        %p276 = pneg %p142
        %p277 = pneg %p166
        %p278 = pneg %p163
        %p279 = pneg %p192
        %p280 = pneg %p189
        %s281 = smul.u32 4, %s19
        %p282 = scmp.lt.s32.totalorder %s281, 7
        %s283 = scalar_select %p282, %s281, 7
        %s284 = smul.addr %s283, 2
        %s285 = smul.addr %s284, 8
        %s286 = scalar_lea.vmem %s7, %s285
        %s287 = smul.u32 4, %s19
        %p288 = scmp.lt.s32.totalorder %s287, 7
        %s289 = scalar_select %p288, %s287, 7
        %s290 = smul.addr %s289, 2
        %s291 = smul.addr %s290, 8
        %s292 = scalar_lea.vmem %s0, %s291
        %s293 = smul.u32 4, %s19
        %s294 = smul.u32 4, %s19
        %p295 = scmp.lt.s32.totalorder %s294, 7
        %s296 = scalar_select %p295, %s294, 7
        %s297 = smul.addr %s296, 2
        %s298 = smul.addr %s297, 8
        %s299 = scalar_lea.vmem %s7, %s298
        %s300 = smul.u32 4, %s19
        %v302 = vlaneseq
        %v303 = vshrl.u32 %v302, 7
        %v304 = vadd.s32 %v303, 8
        %vm305 = vcmp.ne.s32.totalorder %v303, 0
        %vm306 = vcmp.ne.s32.totalorder %v304, 0
        %vm307 = vcmp.ne.s32.totalorder %v303, 15
        %vm308 = vcmp.ne.s32.totalorder %v304, 15
        %v309 = vld [vmem:[%s5] sm:$0xf]
        %v310 = vld [vmem:[%s5 + $0x4] sm:$0xf]
        %v311 = vld [vmem:[%s5 + $0x8] sm:$0xf]
        %v312 = vld [vmem:[%s5 + $0xc] sm:$0xf]
        %v313 = vld [vmem:[%s5 + $0x10] sm:$0xf]
        %v314 = vld [vmem:[%s5 + $0x14] sm:$0xf]
        %v315 = vld [vmem:[%s5 + $0x18] sm:$0xf]
        %v316 = vld [vmem:[%s5 + $0x1c] sm:$0xf]
        %v317 = vld [vmem:[%s5 + $0x20] sm:$0xf]
        %v318 = vld [vmem:[%s5 + $0x24] sm:$0xf]
        %v319 = vld [vmem:[%s5 + $0x28] sm:$0xf]
        %v320 = vld [vmem:[%s5 + $0x2c] sm:$0xf]
        %v321 = vld [vmem:[%s5 + $0x30] sm:$0xf]
        %v322 = vld [vmem:[%s5 + $0x34] sm:$0xf]
        %v323 = vld [vmem:[%s5 + $0x38] sm:$0xf]
        %v324 = vld [vmem:[%s5 + $0x3c] sm:$0xf]
        %v325 = vld [vmem:[%s292] sm:$0xff]
        %v326 = vld [vmem:[%s292 + $0x8] sm:$0xff]
        %v327 = vld [vmem:[%s292 + $0x10] sm:$0xff]
        %v328 = vld [vmem:[%s292 + $0x18] sm:$0xff]
        %v329 = vld [vmem:[%s292 + $0x20] sm:$0xff]
        %v330 = vld [vmem:[%s292 + $0x28] sm:$0xff]
        %v331 = vld [vmem:[%s292 + $0x30] sm:$0xff]
        %v332 = vld [vmem:[%s292 + $0x38] sm:$0xff]
        %v333 = vpack.c.bf16 %v326, %v325
        %v334 = vpack.c.bf16 %v328, %v327
        %v335 = vpack.c.bf16 %v330, %v329
        %v336 = vpack.c.bf16 %v332, %v331
        %v337 = vrot.slane %v325, 7
        %v338 = vrot.slane %v326, 7
        %v339 = vrot.slane %v327, 7
        %v340 = vrot.slane %v328, 7
        %v341 = vrot.slane %v329, 7
        %v342 = vrot.slane %v330, 7
        %v343 = vrot.slane %v331, 7
        %v344 = vrot.slane %v332, 7
        %vm345 = vcmp.lt.s32.totalorder %v303, 1
        %v346 = vsel %vm345, %v343, %v344
        %v347 = vsel %vm345, %v342, %v343
        %v348 = vsel %vm345, %v341, %v342
        %v349 = vsel %vm345, %v340, %v341
        %v350 = vsel %vm345, %v339, %v340
        %v351 = vsel %vm345, %v338, %v339
        %v352 = vsel %vm345, %v337, %v338
        %v353 = vsel %vm345, %v344, %v337
        %v354 = vsel %vm305, %v353, 0.0
        %v355 = vsel %vm306, %v352, 0.0
        %v356 = vsel %vm305, %v351, 0.0
        %v357 = vsel %vm306, %v350, 0.0
        %v358 = vsel %vm305, %v349, 0.0
        %v359 = vsel %vm306, %v348, 0.0
        %v360 = vsel %vm305, %v347, 0.0
        %v361 = vsel %vm306, %v346, 0.0
        %v362 = vpack.c.bf16 %v355, %v354
        %v363 = vpack.c.bf16 %v357, %v356
        %v364 = vpack.c.bf16 %v359, %v358
        %v365 = vpack.c.bf16 %v361, %v360
        %v366 = vrot.slane %v325, 1
        %v367 = vrot.slane %v326, 1
        %v368 = vrot.slane %v327, 1
        %v369 = vrot.slane %v328, 1
        %v370 = vrot.slane %v329, 1
        %v371 = vrot.slane %v330, 1
        %v372 = vrot.slane %v331, 1
        %v373 = vrot.slane %v332, 1
        %vm374 = vcmp.lt.s32.totalorder %v303, 7
        %v375 = vsel %vm374, %v372, %v373
        %v376 = vsel %vm374, %v371, %v372
        %v377 = vsel %vm374, %v370, %v371
        %v378 = vsel %vm374, %v369, %v370
        %v379 = vsel %vm374, %v368, %v369
        %v380 = vsel %vm374, %v367, %v368
        %v381 = vsel %vm374, %v366, %v367
        %v382 = vsel %vm374, %v373, %v366
        %v383 = vsel %vm307, %v381, 0.0
        %v384 = vsel %vm308, %v380, 0.0
        %v385 = vsel %vm307, %v379, 0.0
        %v386 = vsel %vm308, %v378, 0.0
        %v387 = vsel %vm307, %v377, 0.0
        %v388 = vsel %vm308, %v376, 0.0
        %v389 = vsel %vm307, %v375, 0.0
        %v390 = vsel %vm308, %v382, 0.0
        %v391 = vpack.c.bf16 %v384, %v383
        %v392 = vpack.c.bf16 %v386, %v385
        %v393 = vpack.c.bf16 %v388, %v387
        %v394 = vpack.c.bf16 %v390, %v389
        %v395 = vld [vmem:[%s1] sm:$0xf]
        %v396 = vld [vmem:[%s1 + $0x4] sm:$0xf]
        %v397 = vld [vmem:[%s1 + $0x8] sm:$0xf]
        %v398 = vld [vmem:[%s1 + $0xc] sm:$0xf]
        %v399 = vld [vmem:[%s1 + $0x10] sm:$0xf]
        %v400 = vld [vmem:[%s1 + $0x14] sm:$0xf]
        %v401 = vld [vmem:[%s1 + $0x18] sm:$0xf]
        %v402 = vld [vmem:[%s1 + $0x1c] sm:$0xf]
        %v403 = vld [vmem:[%s1 + $0x20] sm:$0xf]
        %v404 = vld [vmem:[%s1 + $0x24] sm:$0xf]
        %v405 = vld [vmem:[%s1 + $0x28] sm:$0xf]
        %v406 = vld [vmem:[%s1 + $0x2c] sm:$0xf]
        %v407 = vld [vmem:[%s1 + $0x30] sm:$0xf]
        %v408 = vld [vmem:[%s1 + $0x34] sm:$0xf]
        %v409 = vld [vmem:[%s1 + $0x38] sm:$0xf]
        %v410 = vld [vmem:[%s1 + $0x3c] sm:$0xf]
        %v411 = vld [vmem:[%s1 + $0x40] sm:$0xf]
        %v412 = vld [vmem:[%s1 + $0x44] sm:$0xf]
        %v413 = vld [vmem:[%s1 + $0x48] sm:$0xf]
        %v414 = vld [vmem:[%s1 + $0x4c] sm:$0xf]
        %v415 = vld [vmem:[%s1 + $0x50] sm:$0xf]
        %v416 = vld [vmem:[%s1 + $0x54] sm:$0xf]
        %v417 = vld [vmem:[%s1 + $0x58] sm:$0xf]
        %v418 = vld [vmem:[%s1 + $0x5c] sm:$0xf]
        %v419 = vld [vmem:[%s1 + $0x60] sm:$0xf]
        %v420 = vld [vmem:[%s1 + $0x64] sm:$0xf]
        %v421 = vld [vmem:[%s1 + $0x68] sm:$0xf]
        %v422 = vld [vmem:[%s1 + $0x6c] sm:$0xf]
        %v423 = vld [vmem:[%s1 + $0x70] sm:$0xf]
        %v424 = vld [vmem:[%s1 + $0x74] sm:$0xf]
        %v425 = vld [vmem:[%s1 + $0x78] sm:$0xf]
        %v426 = vld [vmem:[%s1 + $0x7c] sm:$0xf]
        %v427 = vld [vmem:[%s1 + $0x80] sm:$0xf]
        %v428 = vld [vmem:[%s1 + $0x84] sm:$0xf]
        %v429 = vld [vmem:[%s1 + $0x88] sm:$0xf]
        %v430 = vld [vmem:[%s1 + $0x8c] sm:$0xf]
        %v431 = vld [vmem:[%s1 + $0x90] sm:$0xf]
        %v432 = vld [vmem:[%s1 + $0x94] sm:$0xf]
        %v433 = vld [vmem:[%s1 + $0x98] sm:$0xf]
        %v434 = vld [vmem:[%s1 + $0x9c] sm:$0xf]
        %v435 = vld [vmem:[%s1 + $0xa0] sm:$0xf]
        %v436 = vld [vmem:[%s1 + $0xa4] sm:$0xf]
        %v437 = vld [vmem:[%s1 + $0xa8] sm:$0xf]
        %v438 = vld [vmem:[%s1 + $0xac] sm:$0xf]
        %v439 = vld [vmem:[%s1 + $0xb0] sm:$0xf]
        %v440 = vld [vmem:[%s1 + $0xb4] sm:$0xf]
        %v441 = vld [vmem:[%s1 + $0xb8] sm:$0xf]
        %v442 = vld [vmem:[%s1 + $0xbc] sm:$0xf]
        %v443 = vld [vmem:[%s2] sm:$0x1]
        %v445 = vlaneseq
        %v446 = vshrl.u32 %v445, 7
        %v447 = vsub.s32 0, %v446
        %v448 = vrot.slane %v443, %v447
        %v498 = vunpack.c.l.b16 %v395
        %v499 = vunpack.c.l.b16 %v396
        %v500 = vunpack.c.l.b16 %v397
        %v501 = vunpack.c.l.b16 %v398
        %v502 = vunpack.c.l.b16 %v399
        %v503 = vunpack.c.l.b16 %v400
        %v504 = vunpack.c.l.b16 %v401
        %v505 = vunpack.c.l.b16 %v402
        %v506 = vunpack.c.l.b16 %v403
        %v507 = vunpack.c.l.b16 %v404
        %v508 = vunpack.c.l.b16 %v405
        %v509 = vunpack.c.l.b16 %v406
        %v510 = vunpack.c.l.b16 %v407
        %v511 = vunpack.c.l.b16 %v408
        %v512 = vunpack.c.l.b16 %v409
        %v513 = vunpack.c.l.b16 %v410
        %v514 = vunpack.c.l.b16 %v411
        %v515 = vunpack.c.l.b16 %v412
        %v516 = vunpack.c.l.b16 %v413
        %v517 = vunpack.c.l.b16 %v414
        %v518 = vunpack.c.l.b16 %v415
        %v519 = vunpack.c.l.b16 %v416
        %v520 = vunpack.c.l.b16 %v417
        %v521 = vunpack.c.l.b16 %v418
        %v522 = vunpack.c.l.b16 %v419
        %v523 = vunpack.c.l.b16 %v420
        %v524 = vunpack.c.l.b16 %v421
        %v525 = vunpack.c.l.b16 %v422
        %v526 = vunpack.c.l.b16 %v423
        %v527 = vunpack.c.l.b16 %v424
        %v528 = vunpack.c.l.b16 %v425
        %v529 = vunpack.c.l.b16 %v426
        %v530 = vunpack.c.l.b16 %v427
        %v531 = vunpack.c.l.b16 %v428
        %v532 = vunpack.c.l.b16 %v429
        %v533 = vunpack.c.l.b16 %v430
        %v534 = vunpack.c.l.b16 %v431
        %v535 = vunpack.c.l.b16 %v432
        %v536 = vunpack.c.l.b16 %v433
        %v537 = vunpack.c.l.b16 %v434
        %v538 = vunpack.c.l.b16 %v435
        %v539 = vunpack.c.l.b16 %v436
        %v540 = vunpack.c.l.b16 %v437
        %v541 = vunpack.c.l.b16 %v438
        %v542 = vunpack.c.l.b16 %v439
        %v543 = vunpack.c.l.b16 %v440
        %v544 = vunpack.c.l.b16 %v441
        %v545 = vunpack.c.l.b16 %v442
        %v546 = vpack.c.b16 %v499, %v498
        %v547 = vpack.c.b16 %v501, %v500
        %v548 = vpack.c.b16 %v503, %v502
        %v549 = vpack.c.b16 %v505, %v504
        %v550 = vpack.c.b16 %v507, %v506
        %v551 = vpack.c.b16 %v509, %v508
        %v552 = vpack.c.b16 %v511, %v510
        %v553 = vpack.c.b16 %v513, %v512
        %v554 = vpack.c.b16 %v515, %v514
        %v555 = vpack.c.b16 %v517, %v516
        %v556 = vpack.c.b16 %v519, %v518
        %v557 = vpack.c.b16 %v521, %v520
        %v558 = vpack.c.b16 %v523, %v522
        %v559 = vpack.c.b16 %v525, %v524
        %v560 = vpack.c.b16 %v527, %v526
        %v561 = vpack.c.b16 %v529, %v528
        %v562 = vpack.c.b16 %v531, %v530
        %v563 = vpack.c.b16 %v533, %v532
        %v564 = vpack.c.b16 %v535, %v534
        %v565 = vpack.c.b16 %v537, %v536
        %v566 = vpack.c.b16 %v539, %v538
        %v567 = vpack.c.b16 %v541, %v540
        %v568 = vpack.c.b16 %v543, %v542
        %v569 = vpack.c.b16 %v545, %v544
        %594 = vmatprep.subr.bf16.mxu0 0
        %595 = vmatpush1.bf16.msra.mxu0 %v553
        %596 = vmatprep.subr.bf16.mxu0 0
        %597 = vmatpush1.bf16.msra.mxu0 %v552
        %598 = vmatprep.subr.bf16.mxu0 0
        %599 = vmatpush1.bf16.msra.mxu0 %v551
        %600 = vmatprep.subr.bf16.mxu0 0
        %601 = vmatpush1.bf16.msra.mxu0 %v550
        %602 = vmatprep.subr.bf16.mxu0 0
        %603 = vmatpush1.bf16.msra.mxu0 %v549
        %604 = vmatprep.subr.bf16.mxu0 0
        %605 = vmatpush1.bf16.msra.mxu0 %v548
        %606 = vmatprep.subr.bf16.mxu0 0
        %607 = vmatpush1.bf16.msra.mxu0 %v547
        %608 = vmatprep.subr.bf16.mxu0 0
        %609 = vmatpush1.bf16.msra.mxu0 %v546
        %610 = vmatprep.subr.bf16.mxu0 0
        %611 = vmatpush2.bf16.msra.mxu0 %v561
        %612 = vmatprep.subr.bf16.mxu0 0
        %613 = vmatpush2.bf16.msra.mxu0 %v560
        %614 = vmatprep.subr.bf16.mxu0 0
        %615 = vmatpush2.bf16.msra.mxu0 %v559
        %616 = vmatprep.subr.bf16.mxu0 0
        %617 = vmatpush2.bf16.msra.mxu0 %v558
        %618 = vmatprep.subr.bf16.mxu0 0
        %619 = vmatpush2.bf16.msra.mxu0 %v557
        %620 = vmatprep.subr.bf16.mxu0 0
        %621 = vmatpush2.bf16.msra.mxu0 %v556
        %622 = vmatprep.subr.bf16.mxu0 0
        %623 = vmatpush2.bf16.msra.mxu0 %v555
        %624 = vmatprep.subr.bf16.mxu0 0
        %625 = vmatpush2.bf16.msra.mxu0 %v554
        %626 = vmatprep.mubr.bf16.mxu0 %v333
        %627 = vmatmul.mubr.bf16.gmra.mxu0 %v362
        %v628 = vpop.f32.mrf.mxu0
        %v629 = vadd.f32 %v448, %v628
        %v630 = vpop.f32.mrf.mxu0
        %v631 = vpop.f32.mrf.mxu0
        %v632 = vadd.f32 %v448, %v631
        %v633 = vpop.f32.mrf.mxu0
        %634 = vmatprep.mubr.bf16.mxu0 %v334
        %635 = vmatmul.mubr.bf16.gmra.mxu0 %v363
        %v636 = vpop.f32.mrf.mxu0
        %v637 = vadd.f32 %v448, %v636
        %v638 = vpop.f32.mrf.mxu0
        %v639 = vpop.f32.mrf.mxu0
        %v640 = vadd.f32 %v448, %v639
        %v641 = vpop.f32.mrf.mxu0
        %642 = vmatprep.mubr.bf16.mxu0 %v335
        %643 = vmatmul.mubr.bf16.gmra.mxu0 %v364
        %v644 = vpop.f32.mrf.mxu0
        %v645 = vadd.f32 %v448, %v644
        %v646 = vpop.f32.mrf.mxu0
        %v647 = vpop.f32.mrf.mxu0
        %v648 = vadd.f32 %v448, %v647
        %v649 = vpop.f32.mrf.mxu0
        %650 = vmatprep.mubr.bf16.mxu0 %v336
        %651 = vmatmul.mubr.bf16.gmra.mxu0 %v365
        %v652 = vpop.f32.mrf.mxu0
        %v653 = vadd.f32 %v448, %v652
        %v654 = vpop.f32.mrf.mxu0
        %v655 = vpop.f32.mrf.mxu0
        %v656 = vadd.f32 %v448, %v655
        %v657 = vpop.f32.mrf.mxu0
        %658 = vdwg.mxu0
        %659 = vmatprep.subr.bf16.mxu0 0
        %660 = vmatpush1.bf16.msra.mxu0 %v569
        %661 = vmatprep.subr.bf16.mxu0 0
        %662 = vmatpush1.bf16.msra.mxu0 %v568
        %663 = vmatprep.subr.bf16.mxu0 0
        %664 = vmatpush1.bf16.msra.mxu0 %v567
        %665 = vmatprep.subr.bf16.mxu0 0
        %666 = vmatpush1.bf16.msra.mxu0 %v566
        %667 = vmatprep.subr.bf16.mxu0 0
        %668 = vmatpush1.bf16.msra.mxu0 %v565
        %669 = vmatprep.subr.bf16.mxu0 0
        %670 = vmatpush1.bf16.msra.mxu0 %v564
        %671 = vmatprep.subr.bf16.mxu0 0
        %672 = vmatpush1.bf16.msra.mxu0 %v563
        %673 = vmatprep.subr.bf16.mxu0 0
        %674 = vmatpush1.bf16.msra.mxu0 %v562
        %675 = vmatprep.subr.bf16.mxu0 0
        %676 = vmatpush2.bf16.msra.mxu0 0
        %677 = vmatprep.subr.bf16.mxu0 0
        %678 = vmatpush2.bf16.msra.mxu0 0
        %679 = vmatprep.subr.bf16.mxu0 0
        %680 = vmatpush2.bf16.msra.mxu0 0
        %681 = vmatprep.subr.bf16.mxu0 0
        %682 = vmatpush2.bf16.msra.mxu0 0
        %683 = vmatprep.subr.bf16.mxu0 0
        %684 = vmatpush2.bf16.msra.mxu0 0
        %685 = vmatprep.subr.bf16.mxu0 0
        %686 = vmatpush2.bf16.msra.mxu0 0
        %687 = vmatprep.subr.bf16.mxu0 0
        %688 = vmatpush2.bf16.msra.mxu0 0
        %689 = vmatprep.subr.bf16.mxu0 0
        %690 = vmatpush2.bf16.msra.mxu0 0
        %691 = vmatprep.mubr.bf16.mxu0 0
        %692 = vmatmul.mubr.bf16.gmra.mxu0 %v391
        %v693 = vpop.f32.mrf.mxu0
        %v694 = vadd.f32 %v629, %v693
        %v695 = vpop.f32.mrf.mxu0
        %v696 = vpop.f32.mrf.mxu0
        %v697 = vadd.f32 %v632, %v696
        %v698 = vpop.f32.mrf.mxu0
        %699 = vmatprep.mubr.bf16.mxu0 0
        %700 = vmatmul.mubr.bf16.gmra.mxu0 %v392
        %v701 = vpop.f32.mrf.mxu0
        %v702 = vadd.f32 %v637, %v701
        %v703 = vpop.f32.mrf.mxu0
        %v704 = vpop.f32.mrf.mxu0
        %v705 = vadd.f32 %v640, %v704
        %v706 = vpop.f32.mrf.mxu0
        %707 = vmatprep.mubr.bf16.mxu0 0
        %708 = vmatmul.mubr.bf16.gmra.mxu0 %v393
        %v709 = vpop.f32.mrf.mxu0
        %v710 = vadd.f32 %v645, %v709
        %v711 = vpop.f32.mrf.mxu0
        %v712 = vpop.f32.mrf.mxu0
        %v713 = vadd.f32 %v648, %v712
        %v714 = vpop.f32.mrf.mxu0
        %715 = vmatprep.mubr.bf16.mxu0 0
        %716 = vmatmul.mubr.bf16.gmra.mxu0 %v394
        %v717 = vpop.f32.mrf.mxu0
        %v718 = vadd.f32 %v653, %v717
        %v719 = vpop.f32.mrf.mxu0
        %v720 = vpop.f32.mrf.mxu0
        %v721 = vadd.f32 %v656, %v720
        %v722 = vpop.f32.mrf.mxu0
        %723 = vdwg.mxu0
        %v724 = vmul.f32 %v694, %v694
        %v725 = vmul.f32 %v697, %v697
        %v726 = vmul.f32 %v702, %v702
        %v727 = vmul.f32 %v705, %v705
        %v728 = vmul.f32 %v710, %v710
        %v729 = vmul.f32 %v713, %v713
        %v730 = vmul.f32 %v718, %v718
        %v731 = vmul.f32 %v721, %v721
        %v732 = vpack.c.bf16 %v697, %v694
        %v733 = vpack.c.bf16 %v705, %v702
        %v734 = vpack.c.bf16 %v713, %v710
        %v735 = vpack.c.bf16 %v721, %v718
        %v736 = vpack.c.bf16 %v725, %v724
        %v737 = vpack.c.bf16 %v727, %v726
        %v738 = vpack.c.bf16 %v729, %v728
        %v739 = vpack.c.bf16 %v731, %v730
        %v756 = vunpack.c.l.b16 %v309
        %v757 = vunpack.c.l.b16 %v310
        %v758 = vunpack.c.l.b16 %v311
        %v759 = vunpack.c.l.b16 %v312
        %v760 = vunpack.c.l.b16 %v313
        %v761 = vunpack.c.l.b16 %v314
        %v762 = vunpack.c.l.b16 %v315
        %v763 = vunpack.c.l.b16 %v316
        %v764 = vunpack.c.l.b16 %v317
        %v765 = vunpack.c.l.b16 %v318
        %v766 = vunpack.c.l.b16 %v319
        %v767 = vunpack.c.l.b16 %v320
        %v768 = vunpack.c.l.b16 %v321
        %v769 = vunpack.c.l.b16 %v322
        %v770 = vunpack.c.l.b16 %v323
        %v771 = vunpack.c.l.b16 %v324
        %v772 = vpack.c.b16 %v757, %v756
        %v773 = vpack.c.b16 %v759, %v758
        %v774 = vpack.c.b16 %v761, %v760
        %v775 = vpack.c.b16 %v763, %v762
        %v776 = vpack.c.b16 %v765, %v764
        %v777 = vpack.c.b16 %v767, %v766
        %v778 = vpack.c.b16 %v769, %v768
        %v779 = vpack.c.b16 %v771, %v770
        %788 = vmatprep.subr.bf16.mxu0 0
        %789 = vmatpush1.bf16.msra.mxu0 %v779
        %790 = vmatprep.subr.bf16.mxu0 0
        %791 = vmatpush1.bf16.msra.mxu0 %v778
        %792 = vmatprep.subr.bf16.mxu0 0
        %793 = vmatpush1.bf16.msra.mxu0 %v777
        %794 = vmatprep.subr.bf16.mxu0 0
        %795 = vmatpush1.bf16.msra.mxu0 %v776
        %796 = vmatprep.subr.bf16.mxu0 0
        %797 = vmatpush1.bf16.msra.mxu0 %v775
        %798 = vmatprep.subr.bf16.mxu0 0
        %799 = vmatpush1.bf16.msra.mxu0 %v774
        %800 = vmatprep.subr.bf16.mxu0 0
        %801 = vmatpush1.bf16.msra.mxu0 %v773
        %802 = vmatprep.subr.bf16.mxu0 0
        %803 = vmatpush1.bf16.msra.mxu0 %v772
        %804 = vmatprep.subr.bf16.mxu0 0
        %805 = vmatpush2.bf16.msra.mxu0 0
        %806 = vmatprep.subr.bf16.mxu0 0
        %807 = vmatpush2.bf16.msra.mxu0 0
        %808 = vmatprep.subr.bf16.mxu0 0
        %809 = vmatpush2.bf16.msra.mxu0 0
        %810 = vmatprep.subr.bf16.mxu0 0
        %811 = vmatpush2.bf16.msra.mxu0 0
        %812 = vmatprep.subr.bf16.mxu0 0
        %813 = vmatpush2.bf16.msra.mxu0 0
        %814 = vmatprep.subr.bf16.mxu0 0
        %815 = vmatpush2.bf16.msra.mxu0 0
        %816 = vmatprep.subr.bf16.mxu0 0
        %817 = vmatpush2.bf16.msra.mxu0 0
        %818 = vmatprep.subr.bf16.mxu0 0
        %819 = vmatpush2.bf16.msra.mxu0 0
        %820 = vmatprep.mubr.bf16.mxu0 0
        %821 = vmatmul.mubr.bf16.gmra.mxu0 %v732
        %v822 = vpop.f32.mrf.mxu0
        %v823 = vadd.f32 0.0, %v822
        %v824 = vpop.f32.mrf.mxu0
        %v825 = vpop.f32.mrf.mxu0
        %v826 = vadd.f32 0.0, %v825
        %v827 = vpop.f32.mrf.mxu0
        %828 = vmatprep.mubr.bf16.mxu0 0
        %829 = vmatmul.mubr.bf16.gmra.mxu0 %v733
        %v830 = vpop.f32.mrf.mxu0
        %v831 = vadd.f32 0.0, %v830
        %v832 = vpop.f32.mrf.mxu0
        %v833 = vpop.f32.mrf.mxu0
        %v834 = vadd.f32 0.0, %v833
        %v835 = vpop.f32.mrf.mxu0
        %836 = vmatprep.mubr.bf16.mxu0 0
        %837 = vmatmul.mubr.bf16.gmra.mxu0 %v734
        %v838 = vpop.f32.mrf.mxu0
        %v839 = vadd.f32 0.0, %v838
        %v840 = vpop.f32.mrf.mxu0
        %v841 = vpop.f32.mrf.mxu0
        %v842 = vadd.f32 0.0, %v841
        %v843 = vpop.f32.mrf.mxu0
        %844 = vmatprep.mubr.bf16.mxu0 0
        %845 = vmatmul.mubr.bf16.gmra.mxu0 %v735
        %v846 = vpop.f32.mrf.mxu0
        %v847 = vadd.f32 0.0, %v846
        %v848 = vpop.f32.mrf.mxu0
        %v849 = vpop.f32.mrf.mxu0
        %v850 = vadd.f32 0.0, %v849
        %v851 = vpop.f32.mrf.mxu0
        %852 = vmatprep.mubr.bf16.mxu0 0
        %853 = vmatmul.mubr.bf16.gmra.mxu0 %v736
        %v854 = vpop.f32.mrf.mxu0
        %v855 = vadd.f32 0.0, %v854
        %v856 = vpop.f32.mrf.mxu0
        %v857 = vpop.f32.mrf.mxu0
        %v858 = vadd.f32 0.0, %v857
        %v859 = vpop.f32.mrf.mxu0
        %860 = vmatprep.mubr.bf16.mxu0 0
        %861 = vmatmul.mubr.bf16.gmra.mxu0 %v737
        %v862 = vpop.f32.mrf.mxu0
        %v863 = vadd.f32 0.0, %v862
        %v864 = vpop.f32.mrf.mxu0
        %v865 = vpop.f32.mrf.mxu0
        %v866 = vadd.f32 0.0, %v865
        %v867 = vpop.f32.mrf.mxu0
        %868 = vmatprep.mubr.bf16.mxu0 0
        %869 = vmatmul.mubr.bf16.gmra.mxu0 %v738
        %v870 = vpop.f32.mrf.mxu0
        %v871 = vadd.f32 0.0, %v870
        %v872 = vpop.f32.mrf.mxu0
        %v873 = vpop.f32.mrf.mxu0
        %v874 = vadd.f32 0.0, %v873
        %v875 = vpop.f32.mrf.mxu0
        %876 = vmatprep.mubr.bf16.mxu0 0
        %877 = vmatmul.mubr.bf16.gmra.mxu0 %v739
        %v878 = vpop.f32.mrf.mxu0
        %v879 = vadd.f32 0.0, %v878
        %v880 = vpop.f32.mrf.mxu0
        %v881 = vpop.f32.mrf.mxu0
        %v882 = vadd.f32 0.0, %v881
        %v883 = vpop.f32.mrf.mxu0
        %884 = vdwg.mxu0
        %v885 = vadd.f32 %v823, %v826
        %v886 = vrot.slane %v885, 4
        %v887 = vadd.f32 %v885, %v886
        %v888 = vrot.slane %v887, 2
        %v889 = vadd.f32 %v887, %v888
        %v890 = vrot.slane %v889, 1
        %v891 = vadd.f32 %v889, %v890
        %v892 = vadd.f32 %v831, %v834
        %v893 = vrot.slane %v892, 4
        %v894 = vadd.f32 %v892, %v893
        %v895 = vrot.slane %v894, 2
        %v896 = vadd.f32 %v894, %v895
        %v897 = vrot.slane %v896, 1
        %v898 = vadd.f32 %v896, %v897
        %v899 = vadd.f32 %v839, %v842
        %v900 = vrot.slane %v899, 4
        %v901 = vadd.f32 %v899, %v900
        %v902 = vrot.slane %v901, 2
        %v903 = vadd.f32 %v901, %v902
        %v904 = vrot.slane %v903, 1
        %v905 = vadd.f32 %v903, %v904
        %v906 = vadd.f32 %v847, %v850
        %v907 = vrot.slane %v906, 4
        %v908 = vadd.f32 %v906, %v907
        %v909 = vrot.slane %v908, 2
        %v910 = vadd.f32 %v908, %v909
        %v911 = vrot.slane %v910, 1
        %v912 = vadd.f32 %v910, %v911
        %v913 = vadd.f32 %v855, %v858
        %v914 = vrot.slane %v913, 4
        %v915 = vadd.f32 %v913, %v914
        %v916 = vrot.slane %v915, 2
        %v917 = vadd.f32 %v915, %v916
        %v918 = vrot.slane %v917, 1
        %v919 = vadd.f32 %v917, %v918
        %v920 = vadd.f32 %v863, %v866
        %v921 = vrot.slane %v920, 4
        %v922 = vadd.f32 %v920, %v921
        %v923 = vrot.slane %v922, 2
        %v924 = vadd.f32 %v922, %v923
        %v925 = vrot.slane %v924, 1
        %v926 = vadd.f32 %v924, %v925
        %v927 = vadd.f32 %v871, %v874
        %v928 = vrot.slane %v927, 4
        %v929 = vadd.f32 %v927, %v928
        %v930 = vrot.slane %v929, 2
        %v931 = vadd.f32 %v929, %v930
        %v932 = vrot.slane %v931, 1
        %v933 = vadd.f32 %v931, %v932
        %v934 = vadd.f32 %v879, %v882
        %v935 = vrot.slane %v934, 4
        %v936 = vadd.f32 %v934, %v935
        %v937 = vrot.slane %v936, 2
        %v938 = vadd.f32 %v936, %v937
        %v939 = vrot.slane %v938, 1
        %v940 = vadd.f32 %v938, %v939
        %v941 = vmul.f32 %v891, 0.00390625
        %v942 = vmul.f32 %v898, 0.00390625
        %v943 = vmul.f32 %v905, 0.00390625
        %v944 = vmul.f32 %v912, 0.00390625
        %v945 = vmul.f32 %v919, 0.00390625
        %v946 = vmul.f32 %v926, 0.00390625
        %v947 = vmul.f32 %v933, 0.00390625
        %v948 = vmul.f32 %v940, 0.00390625
        %v949 = vmul.f32 %v941, %v941
        %v950 = vmul.f32 %v942, %v942
        %v951 = vmul.f32 %v943, %v943
        %v952 = vmul.f32 %v944, %v944
        %v953 = vsub.f32 %v945, %v949
        %v954 = vsub.f32 %v946, %v950
        %v955 = vsub.f32 %v947, %v951
        %v956 = vsub.f32 %v948, %v952
        %v957 = vmax.f32 %v953, 0.0
        %v958 = vmax.f32 %v954, 0.0
        %v959 = vmax.f32 %v955, 0.0
        %v960 = vmax.f32 %v956, 0.0
        %v961 = vadd.f32 %v957, 1e-05
        %v962 = vadd.f32 %v958, 1e-05
        %v963 = vadd.f32 %v959, 1e-05
        %v964 = vadd.f32 %v960, 1e-05
        %v965 = vrsqrt.pop %v961
        %v966 = vrsqrt.pop %v962
        %v967 = vrsqrt.pop %v963
        %v968 = vrsqrt.pop %v964
        %v969 = vld [vmem:[%s3] sm:$0x1]
        %v970 = vmul.f32 %v965, %v969
        %v971 = vmul.f32 %v966, %v969
        %v972 = vmul.f32 %v967, %v969
        %v973 = vmul.f32 %v968, %v969
        %v974 = vld [vmem:[%s4] sm:$0x1]
        %v975 = vmul.f32 %v941, %v970
        %v976 = vmul.f32 %v942, %v971
        %v977 = vmul.f32 %v943, %v972
        %v978 = vmul.f32 %v944, %v973
        %v979 = vsub.f32 %v974, %v975
        %v980 = vsub.f32 %v974, %v976
        %v981 = vsub.f32 %v974, %v977
        %v982 = vsub.f32 %v974, %v978
        %v983 = vlaneseq
        %v984 = vshrl.u32 %v983, 7
        %v985 = vsub.s32 0, %v984
        %v986 = vrot.slane %v970, %v985
        %v987 = vlaneseq
        %v988 = vshrl.u32 %v987, 7
        %v989 = vsub.s32 0, %v988
        %v990 = vrot.slane %v971, %v989
        %v991 = vlaneseq
        %v992 = vshrl.u32 %v991, 7
        %v993 = vsub.s32 0, %v992
        %v994 = vrot.slane %v972, %v993
        %v995 = vlaneseq
        %v996 = vshrl.u32 %v995, 7
        %v997 = vsub.s32 0, %v996
        %v998 = vrot.slane %v973, %v997
        %v999 = vmul.f32 %v694, %v986
        %v1000 = vmul.f32 %v697, %v986
        %v1001 = vmul.f32 %v702, %v990
        %v1002 = vmul.f32 %v705, %v990
        %v1003 = vmul.f32 %v710, %v994
        %v1004 = vmul.f32 %v713, %v994
        %v1005 = vmul.f32 %v718, %v998
        %v1006 = vmul.f32 %v721, %v998
        %v1011 = vlaneseq
        %v1012 = vshrl.u32 %v1011, 7
        %v1013 = vsub.s32 0, %v1012
        %v1014 = vrot.slane %v979, %v1013
        %v1015 = vlaneseq
        %v1016 = vshrl.u32 %v1015, 7
        %v1017 = vsub.s32 0, %v1016
        %v1018 = vrot.slane %v980, %v1017
        %v1019 = vlaneseq
        %v1020 = vshrl.u32 %v1019, 7
        %v1021 = vsub.s32 0, %v1020
        %v1022 = vrot.slane %v981, %v1021
        %v1023 = vlaneseq
        %v1024 = vshrl.u32 %v1023, 7
        %v1025 = vsub.s32 0, %v1024
        %v1026 = vrot.slane %v982, %v1025
        %v1031 = vadd.f32 %v999, %v1014
        %v1032 = vadd.f32 %v1000, %v1014
        %v1033 = vadd.f32 %v1001, %v1018
        %v1034 = vadd.f32 %v1002, %v1018
        %v1035 = vadd.f32 %v1003, %v1022
        %v1036 = vadd.f32 %v1004, %v1022
        %v1037 = vadd.f32 %v1005, %v1026
        %v1038 = vadd.f32 %v1006, %v1026
        %s1039 = sld [smem:[#allocation2]]
        %vm1040 = vcmp.gt.f32.partialorder %v1031, 0.0
        %vm1041 = vcmp.gt.f32.partialorder %v1032, 0.0
        %vm1042 = vcmp.gt.f32.partialorder %v1033, 0.0
        %vm1043 = vcmp.gt.f32.partialorder %v1034, 0.0
        %vm1044 = vcmp.gt.f32.partialorder %v1035, 0.0
        %vm1045 = vcmp.gt.f32.partialorder %v1036, 0.0
        %vm1046 = vcmp.gt.f32.partialorder %v1037, 0.0
        %vm1047 = vcmp.gt.f32.partialorder %v1038, 0.0
        %v1048 = vstv %s1039
        %v1049 = vmul.f32 %v1048, %v1031
        %v1050 = vmul.f32 %v1048, %v1032
        %v1051 = vmul.f32 %v1048, %v1033
        %v1052 = vmul.f32 %v1048, %v1034
        %v1053 = vmul.f32 %v1048, %v1035
        %v1054 = vmul.f32 %v1048, %v1036
        %v1055 = vmul.f32 %v1048, %v1037
        %v1056 = vmul.f32 %v1048, %v1038
        %v1057 = vsel %vm1040, %v1031, %v1049
        %v1058 = vsel %vm1041, %v1032, %v1050
        %v1059 = vsel %vm1042, %v1033, %v1051
        %v1060 = vsel %vm1043, %v1034, %v1052
        %v1061 = vsel %vm1044, %v1035, %v1053
        %v1062 = vsel %vm1045, %v1036, %v1054
        %v1063 = vsel %vm1046, %v1037, %v1055
        %v1064 = vsel %vm1047, %v1038, %v1056
        %v1065 = vpack.c.bf16 %v1058, %v1057
        %v1066 = vpack.c.bf16 %v1060, %v1059
        %v1067 = vpack.c.bf16 %v1062, %v1061
        %v1068 = vpack.c.bf16 %v1064, %v1063
        %v1069 = vrot.slane %v1057, 7
        %v1070 = vrot.slane %v1058, 7
        %v1071 = vrot.slane %v1059, 7
        %v1072 = vrot.slane %v1060, 7
        %v1073 = vrot.slane %v1061, 7
        %v1074 = vrot.slane %v1062, 7
        %v1075 = vrot.slane %v1063, 7
        %v1076 = vrot.slane %v1064, 7
        %v1077 = vsel %vm345, %v1075, %v1076
        %v1078 = vsel %vm345, %v1074, %v1075
        %v1079 = vsel %vm345, %v1073, %v1074
        %v1080 = vsel %vm345, %v1072, %v1073
        %v1081 = vsel %vm345, %v1071, %v1072
        %v1082 = vsel %vm345, %v1070, %v1071
        %v1083 = vsel %vm345, %v1069, %v1070
        %v1084 = vsel %vm345, %v1076, %v1069
        %v1085 = vsel %vm305, %v1084, 0.0
        %v1086 = vsel %vm306, %v1083, 0.0
        %v1087 = vsel %vm305, %v1082, 0.0
        %v1088 = vsel %vm306, %v1081, 0.0
        %v1089 = vsel %vm305, %v1080, 0.0
        %v1090 = vsel %vm306, %v1079, 0.0
        %v1091 = vsel %vm305, %v1078, 0.0
        %v1092 = vsel %vm306, %v1077, 0.0
        %v1093 = vpack.c.bf16 %v1086, %v1085
        %v1094 = vpack.c.bf16 %v1088, %v1087
        %v1095 = vpack.c.bf16 %v1090, %v1089
        %v1096 = vpack.c.bf16 %v1092, %v1091
        %v1097 = vrot.slane %v1057, 1
        %v1098 = vrot.slane %v1058, 1
        %v1099 = vrot.slane %v1059, 1
        %v1100 = vrot.slane %v1060, 1
        %v1101 = vrot.slane %v1061, 1
        %v1102 = vrot.slane %v1062, 1
        %v1103 = vrot.slane %v1063, 1
        %v1104 = vrot.slane %v1064, 1
        %v1105 = vsel %vm374, %v1103, %v1104
        %v1106 = vsel %vm374, %v1102, %v1103
        %v1107 = vsel %vm374, %v1101, %v1102
        %v1108 = vsel %vm374, %v1100, %v1101
        %v1109 = vsel %vm374, %v1099, %v1100
        %v1110 = vsel %vm374, %v1098, %v1099
        %v1111 = vsel %vm374, %v1097, %v1098
        %v1112 = vsel %vm374, %v1104, %v1097
        %v1113 = vsel %vm307, %v1111, 0.0
        %v1114 = vsel %vm308, %v1110, 0.0
        %v1115 = vsel %vm307, %v1109, 0.0
        %v1116 = vsel %vm308, %v1108, 0.0
        %v1117 = vsel %vm307, %v1107, 0.0
        %v1118 = vsel %vm308, %v1106, 0.0
        %v1119 = vsel %vm307, %v1105, 0.0
        %v1120 = vsel %vm308, %v1112, 0.0
        %v1121 = vpack.c.bf16 %v1114, %v1113
        %v1122 = vpack.c.bf16 %v1116, %v1115
        %v1123 = vpack.c.bf16 %v1118, %v1117
        %v1124 = vpack.c.bf16 %v1120, %v1119
        %s1125 = scalar_lea.vmem %s1, 192
        %v1126 = vld [vmem:[%s1125] sm:$0xf]
        %v1127 = vld [vmem:[%s1125 + $0x4] sm:$0xf]
        %v1128 = vld [vmem:[%s1125 + $0x8] sm:$0xf]
        %v1129 = vld [vmem:[%s1125 + $0xc] sm:$0xf]
        %v1130 = vld [vmem:[%s1125 + $0x10] sm:$0xf]
        %v1131 = vld [vmem:[%s1125 + $0x14] sm:$0xf]
        %v1132 = vld [vmem:[%s1125 + $0x18] sm:$0xf]
        %v1133 = vld [vmem:[%s1125 + $0x1c] sm:$0xf]
        %v1134 = vld [vmem:[%s1125 + $0x20] sm:$0xf]
        %v1135 = vld [vmem:[%s1125 + $0x24] sm:$0xf]
        %v1136 = vld [vmem:[%s1125 + $0x28] sm:$0xf]
        %v1137 = vld [vmem:[%s1125 + $0x2c] sm:$0xf]
        %v1138 = vld [vmem:[%s1125 + $0x30] sm:$0xf]
        %v1139 = vld [vmem:[%s1125 + $0x34] sm:$0xf]
        %v1140 = vld [vmem:[%s1125 + $0x38] sm:$0xf]
        %v1141 = vld [vmem:[%s1125 + $0x3c] sm:$0xf]
        %v1142 = vld [vmem:[%s1125 + $0x40] sm:$0xf]
        %v1143 = vld [vmem:[%s1125 + $0x44] sm:$0xf]
        %v1144 = vld [vmem:[%s1125 + $0x48] sm:$0xf]
        %v1145 = vld [vmem:[%s1125 + $0x4c] sm:$0xf]
        %v1146 = vld [vmem:[%s1125 + $0x50] sm:$0xf]
        %v1147 = vld [vmem:[%s1125 + $0x54] sm:$0xf]
        %v1148 = vld [vmem:[%s1125 + $0x58] sm:$0xf]
        %v1149 = vld [vmem:[%s1125 + $0x5c] sm:$0xf]
        %v1150 = vld [vmem:[%s1125 + $0x60] sm:$0xf]
        %v1151 = vld [vmem:[%s1125 + $0x64] sm:$0xf]
        %v1152 = vld [vmem:[%s1125 + $0x68] sm:$0xf]
        %v1153 = vld [vmem:[%s1125 + $0x6c] sm:$0xf]
        %v1154 = vld [vmem:[%s1125 + $0x70] sm:$0xf]
        %v1155 = vld [vmem:[%s1125 + $0x74] sm:$0xf]
        %v1156 = vld [vmem:[%s1125 + $0x78] sm:$0xf]
        %v1157 = vld [vmem:[%s1125 + $0x7c] sm:$0xf]
        %v1158 = vld [vmem:[%s1125 + $0x80] sm:$0xf]
        %v1159 = vld [vmem:[%s1125 + $0x84] sm:$0xf]
        %v1160 = vld [vmem:[%s1125 + $0x88] sm:$0xf]
        %v1161 = vld [vmem:[%s1125 + $0x8c] sm:$0xf]
        %v1162 = vld [vmem:[%s1125 + $0x90] sm:$0xf]
        %v1163 = vld [vmem:[%s1125 + $0x94] sm:$0xf]
        %v1164 = vld [vmem:[%s1125 + $0x98] sm:$0xf]
        %v1165 = vld [vmem:[%s1125 + $0x9c] sm:$0xf]
        %v1166 = vld [vmem:[%s1125 + $0xa0] sm:$0xf]
        %v1167 = vld [vmem:[%s1125 + $0xa4] sm:$0xf]
        %v1168 = vld [vmem:[%s1125 + $0xa8] sm:$0xf]
        %v1169 = vld [vmem:[%s1125 + $0xac] sm:$0xf]
        %v1170 = vld [vmem:[%s1125 + $0xb0] sm:$0xf]
        %v1171 = vld [vmem:[%s1125 + $0xb4] sm:$0xf]
        %v1172 = vld [vmem:[%s1125 + $0xb8] sm:$0xf]
        %v1173 = vld [vmem:[%s1125 + $0xbc] sm:$0xf]
        %s1174 = scalar_lea.vmem %s2, 1
        %v1175 = vld [vmem:[%s1174] sm:$0x1]
        %v1177 = vlaneseq
        %v1178 = vshrl.u32 %v1177, 7
        %v1179 = vsub.s32 0, %v1178
        %v1180 = vrot.slane %v1175, %v1179
        %v1230 = vunpack.c.l.b16 %v1126
        %v1231 = vunpack.c.l.b16 %v1127
        %v1232 = vunpack.c.l.b16 %v1128
        %v1233 = vunpack.c.l.b16 %v1129
        %v1234 = vunpack.c.l.b16 %v1130
        %v1235 = vunpack.c.l.b16 %v1131
        %v1236 = vunpack.c.l.b16 %v1132
        %v1237 = vunpack.c.l.b16 %v1133
        %v1238 = vunpack.c.l.b16 %v1134
        %v1239 = vunpack.c.l.b16 %v1135
        %v1240 = vunpack.c.l.b16 %v1136
        %v1241 = vunpack.c.l.b16 %v1137
        %v1242 = vunpack.c.l.b16 %v1138
        %v1243 = vunpack.c.l.b16 %v1139
        %v1244 = vunpack.c.l.b16 %v1140
        %v1245 = vunpack.c.l.b16 %v1141
        %v1246 = vunpack.c.l.b16 %v1142
        %v1247 = vunpack.c.l.b16 %v1143
        %v1248 = vunpack.c.l.b16 %v1144
        %v1249 = vunpack.c.l.b16 %v1145
        %v1250 = vunpack.c.l.b16 %v1146
        %v1251 = vunpack.c.l.b16 %v1147
        %v1252 = vunpack.c.l.b16 %v1148
        %v1253 = vunpack.c.l.b16 %v1149
        %v1254 = vunpack.c.l.b16 %v1150
        %v1255 = vunpack.c.l.b16 %v1151
        %v1256 = vunpack.c.l.b16 %v1152
        %v1257 = vunpack.c.l.b16 %v1153
        %v1258 = vunpack.c.l.b16 %v1154
        %v1259 = vunpack.c.l.b16 %v1155
        %v1260 = vunpack.c.l.b16 %v1156
        %v1261 = vunpack.c.l.b16 %v1157
        %v1262 = vunpack.c.l.b16 %v1158
        %v1263 = vunpack.c.l.b16 %v1159
        %v1264 = vunpack.c.l.b16 %v1160
        %v1265 = vunpack.c.l.b16 %v1161
        %v1266 = vunpack.c.l.b16 %v1162
        %v1267 = vunpack.c.l.b16 %v1163
        %v1268 = vunpack.c.l.b16 %v1164
        %v1269 = vunpack.c.l.b16 %v1165
        %v1270 = vunpack.c.l.b16 %v1166
        %v1271 = vunpack.c.l.b16 %v1167
        %v1272 = vunpack.c.l.b16 %v1168
        %v1273 = vunpack.c.l.b16 %v1169
        %v1274 = vunpack.c.l.b16 %v1170
        %v1275 = vunpack.c.l.b16 %v1171
        %v1276 = vunpack.c.l.b16 %v1172
        %v1277 = vunpack.c.l.b16 %v1173
        %v1278 = vpack.c.b16 %v1231, %v1230
        %v1279 = vpack.c.b16 %v1233, %v1232
        %v1280 = vpack.c.b16 %v1235, %v1234
        %v1281 = vpack.c.b16 %v1237, %v1236
        %v1282 = vpack.c.b16 %v1239, %v1238
        %v1283 = vpack.c.b16 %v1241, %v1240
        %v1284 = vpack.c.b16 %v1243, %v1242
        %v1285 = vpack.c.b16 %v1245, %v1244
        %v1286 = vpack.c.b16 %v1247, %v1246
        %v1287 = vpack.c.b16 %v1249, %v1248
        %v1288 = vpack.c.b16 %v1251, %v1250
        %v1289 = vpack.c.b16 %v1253, %v1252
        %v1290 = vpack.c.b16 %v1255, %v1254
        %v1291 = vpack.c.b16 %v1257, %v1256
        %v1292 = vpack.c.b16 %v1259, %v1258
        %v1293 = vpack.c.b16 %v1261, %v1260
        %v1294 = vpack.c.b16 %v1263, %v1262
        %v1295 = vpack.c.b16 %v1265, %v1264
        %v1296 = vpack.c.b16 %v1267, %v1266
        %v1297 = vpack.c.b16 %v1269, %v1268
        %v1298 = vpack.c.b16 %v1271, %v1270
        %v1299 = vpack.c.b16 %v1273, %v1272
        %v1300 = vpack.c.b16 %v1275, %v1274
        %v1301 = vpack.c.b16 %v1277, %v1276
        %1326 = vmatprep.subr.bf16.mxu0 0
        %1327 = vmatpush1.bf16.msra.mxu0 %v1285
        %1328 = vmatprep.subr.bf16.mxu0 0
        %1329 = vmatpush1.bf16.msra.mxu0 %v1284
        %1330 = vmatprep.subr.bf16.mxu0 0
        %1331 = vmatpush1.bf16.msra.mxu0 %v1283
        %1332 = vmatprep.subr.bf16.mxu0 0
        %1333 = vmatpush1.bf16.msra.mxu0 %v1282
        %1334 = vmatprep.subr.bf16.mxu0 0
        %1335 = vmatpush1.bf16.msra.mxu0 %v1281
        %1336 = vmatprep.subr.bf16.mxu0 0
        %1337 = vmatpush1.bf16.msra.mxu0 %v1280
        %1338 = vmatprep.subr.bf16.mxu0 0
        %1339 = vmatpush1.bf16.msra.mxu0 %v1279
        %1340 = vmatprep.subr.bf16.mxu0 0
        %1341 = vmatpush1.bf16.msra.mxu0 %v1278
        %1342 = vmatprep.subr.bf16.mxu0 0
        %1343 = vmatpush2.bf16.msra.mxu0 %v1293
        %1344 = vmatprep.subr.bf16.mxu0 0
        %1345 = vmatpush2.bf16.msra.mxu0 %v1292
        %1346 = vmatprep.subr.bf16.mxu0 0
        %1347 = vmatpush2.bf16.msra.mxu0 %v1291
        %1348 = vmatprep.subr.bf16.mxu0 0
        %1349 = vmatpush2.bf16.msra.mxu0 %v1290
        %1350 = vmatprep.subr.bf16.mxu0 0
        %1351 = vmatpush2.bf16.msra.mxu0 %v1289
        %1352 = vmatprep.subr.bf16.mxu0 0
        %1353 = vmatpush2.bf16.msra.mxu0 %v1288
        %1354 = vmatprep.subr.bf16.mxu0 0
        %1355 = vmatpush2.bf16.msra.mxu0 %v1287
        %1356 = vmatprep.subr.bf16.mxu0 0
        %1357 = vmatpush2.bf16.msra.mxu0 %v1286
        %1358 = vmatprep.mubr.bf16.mxu0 %v1065
        %1359 = vmatmul.mubr.bf16.gmra.mxu0 %v1093
        %v1360 = vpop.f32.mrf.mxu0
        %v1361 = vadd.f32 %v1180, %v1360
        %v1362 = vpop.f32.mrf.mxu0
        %v1363 = vpop.f32.mrf.mxu0
        %v1364 = vadd.f32 %v1180, %v1363
        %v1365 = vpop.f32.mrf.mxu0
        %1366 = vmatprep.mubr.bf16.mxu0 %v1066
        %1367 = vmatmul.mubr.bf16.gmra.mxu0 %v1094
        %v1368 = vpop.f32.mrf.mxu0
        %v1369 = vadd.f32 %v1180, %v1368
        %v1370 = vpop.f32.mrf.mxu0
        %v1371 = vpop.f32.mrf.mxu0
        %v1372 = vadd.f32 %v1180, %v1371
        %v1373 = vpop.f32.mrf.mxu0
        %1374 = vmatprep.mubr.bf16.mxu0 %v1067
        %1375 = vmatmul.mubr.bf16.gmra.mxu0 %v1095
        %v1376 = vpop.f32.mrf.mxu0
        %v1377 = vadd.f32 %v1180, %v1376
        %v1378 = vpop.f32.mrf.mxu0
        %v1379 = vpop.f32.mrf.mxu0
        %v1380 = vadd.f32 %v1180, %v1379
        %v1381 = vpop.f32.mrf.mxu0
        %1382 = vmatprep.mubr.bf16.mxu0 %v1068
        %1383 = vmatmul.mubr.bf16.gmra.mxu0 %v1096
        %v1384 = vpop.f32.mrf.mxu0
        %v1385 = vadd.f32 %v1180, %v1384
        %v1386 = vpop.f32.mrf.mxu0
        %v1387 = vpop.f32.mrf.mxu0
        %v1388 = vadd.f32 %v1180, %v1387
        %v1389 = vpop.f32.mrf.mxu0
        %1390 = vdwg.mxu0
        %1391 = vmatprep.subr.bf16.mxu0 0
        %1392 = vmatpush1.bf16.msra.mxu0 %v1301
        %1393 = vmatprep.subr.bf16.mxu0 0
        %1394 = vmatpush1.bf16.msra.mxu0 %v1300
        %1395 = vmatprep.subr.bf16.mxu0 0
        %1396 = vmatpush1.bf16.msra.mxu0 %v1299
        %1397 = vmatprep.subr.bf16.mxu0 0
        %1398 = vmatpush1.bf16.msra.mxu0 %v1298
        %1399 = vmatprep.subr.bf16.mxu0 0
        %1400 = vmatpush1.bf16.msra.mxu0 %v1297
        %1401 = vmatprep.subr.bf16.mxu0 0
        %1402 = vmatpush1.bf16.msra.mxu0 %v1296
        %1403 = vmatprep.subr.bf16.mxu0 0
        %1404 = vmatpush1.bf16.msra.mxu0 %v1295
        %1405 = vmatprep.subr.bf16.mxu0 0
        %1406 = vmatpush1.bf16.msra.mxu0 %v1294
        %1407 = vmatprep.subr.bf16.mxu0 0
        %1408 = vmatpush2.bf16.msra.mxu0 0
        %1409 = vmatprep.subr.bf16.mxu0 0
        %1410 = vmatpush2.bf16.msra.mxu0 0
        %1411 = vmatprep.subr.bf16.mxu0 0
        %1412 = vmatpush2.bf16.msra.mxu0 0
        %1413 = vmatprep.subr.bf16.mxu0 0
        %1414 = vmatpush2.bf16.msra.mxu0 0
        %1415 = vmatprep.subr.bf16.mxu0 0
        %1416 = vmatpush2.bf16.msra.mxu0 0
        %1417 = vmatprep.subr.bf16.mxu0 0
        %1418 = vmatpush2.bf16.msra.mxu0 0
        %1419 = vmatprep.subr.bf16.mxu0 0
        %1420 = vmatpush2.bf16.msra.mxu0 0
        %1421 = vmatprep.subr.bf16.mxu0 0
        %1422 = vmatpush2.bf16.msra.mxu0 0
        %1423 = vmatprep.mubr.bf16.mxu0 0
        %1424 = vmatmul.mubr.bf16.gmra.mxu0 %v1121
        %v1425 = vpop.f32.mrf.mxu0
        %v1426 = vadd.f32 %v1361, %v1425
        %v1427 = vpop.f32.mrf.mxu0
        %v1428 = vpop.f32.mrf.mxu0
        %v1429 = vadd.f32 %v1364, %v1428
        %v1430 = vpop.f32.mrf.mxu0
        %1431 = vmatprep.mubr.bf16.mxu0 0
        %1432 = vmatmul.mubr.bf16.gmra.mxu0 %v1122
        %v1433 = vpop.f32.mrf.mxu0
        %v1434 = vadd.f32 %v1369, %v1433
        %v1435 = vpop.f32.mrf.mxu0
        %v1436 = vpop.f32.mrf.mxu0
        %v1437 = vadd.f32 %v1372, %v1436
        %v1438 = vpop.f32.mrf.mxu0
        %1439 = vmatprep.mubr.bf16.mxu0 0
        %1440 = vmatmul.mubr.bf16.gmra.mxu0 %v1123
        %v1441 = vpop.f32.mrf.mxu0
        %v1442 = vadd.f32 %v1377, %v1441
        %v1443 = vpop.f32.mrf.mxu0
        %v1444 = vpop.f32.mrf.mxu0
        %v1445 = vadd.f32 %v1380, %v1444
        %v1446 = vpop.f32.mrf.mxu0
        %1447 = vmatprep.mubr.bf16.mxu0 0
        %1448 = vmatmul.mubr.bf16.gmra.mxu0 %v1124
        %v1449 = vpop.f32.mrf.mxu0
        %v1450 = vadd.f32 %v1385, %v1449
        %v1451 = vpop.f32.mrf.mxu0
        %v1452 = vpop.f32.mrf.mxu0
        %v1453 = vadd.f32 %v1388, %v1452
        %v1454 = vpop.f32.mrf.mxu0
        %1455 = vdwg.mxu0
        %v1456 = vmul.f32 %v1426, %v1426
        %v1457 = vmul.f32 %v1429, %v1429
        %v1458 = vmul.f32 %v1434, %v1434
        %v1459 = vmul.f32 %v1437, %v1437
        %v1460 = vmul.f32 %v1442, %v1442
        %v1461 = vmul.f32 %v1445, %v1445
        %v1462 = vmul.f32 %v1450, %v1450
        %v1463 = vmul.f32 %v1453, %v1453
        %v1464 = vpack.c.bf16 %v1429, %v1426
        %v1465 = vpack.c.bf16 %v1437, %v1434
        %v1466 = vpack.c.bf16 %v1445, %v1442
        %v1467 = vpack.c.bf16 %v1453, %v1450
        %v1468 = vpack.c.bf16 %v1457, %v1456
        %v1469 = vpack.c.bf16 %v1459, %v1458
        %v1470 = vpack.c.bf16 %v1461, %v1460
        %v1471 = vpack.c.bf16 %v1463, %v1462
        %1472 = vmatprep.subr.bf16.mxu0 0
        %1473 = vmatpush1.bf16.msra.mxu0 %v779
        %1474 = vmatprep.subr.bf16.mxu0 0
        %1475 = vmatpush1.bf16.msra.mxu0 %v778
        %1476 = vmatprep.subr.bf16.mxu0 0
        %1477 = vmatpush1.bf16.msra.mxu0 %v777
        %1478 = vmatprep.subr.bf16.mxu0 0
        %1479 = vmatpush1.bf16.msra.mxu0 %v776
        %1480 = vmatprep.subr.bf16.mxu0 0
        %1481 = vmatpush1.bf16.msra.mxu0 %v775
        %1482 = vmatprep.subr.bf16.mxu0 0
        %1483 = vmatpush1.bf16.msra.mxu0 %v774
        %1484 = vmatprep.subr.bf16.mxu0 0
        %1485 = vmatpush1.bf16.msra.mxu0 %v773
        %1486 = vmatprep.subr.bf16.mxu0 0
        %1487 = vmatpush1.bf16.msra.mxu0 %v772
        %1488 = vmatprep.subr.bf16.mxu0 0
        %1489 = vmatpush2.bf16.msra.mxu0 0
        %1490 = vmatprep.subr.bf16.mxu0 0
        %1491 = vmatpush2.bf16.msra.mxu0 0
        %1492 = vmatprep.subr.bf16.mxu0 0
        %1493 = vmatpush2.bf16.msra.mxu0 0
        %1494 = vmatprep.subr.bf16.mxu0 0
        %1495 = vmatpush2.bf16.msra.mxu0 0
        %1496 = vmatprep.subr.bf16.mxu0 0
        %1497 = vmatpush2.bf16.msra.mxu0 0
        %1498 = vmatprep.subr.bf16.mxu0 0
        %1499 = vmatpush2.bf16.msra.mxu0 0
        %1500 = vmatprep.subr.bf16.mxu0 0
        %1501 = vmatpush2.bf16.msra.mxu0 0
        %1502 = vmatprep.subr.bf16.mxu0 0
        %1503 = vmatpush2.bf16.msra.mxu0 0
        %1504 = vmatprep.mubr.bf16.mxu0 0
        %1505 = vmatmul.mubr.bf16.gmra.mxu0 %v1464
        %v1506 = vpop.f32.mrf.mxu0
        %v1507 = vadd.f32 0.0, %v1506
        %v1508 = vpop.f32.mrf.mxu0
        %v1509 = vpop.f32.mrf.mxu0
        %v1510 = vadd.f32 0.0, %v1509
        %v1511 = vpop.f32.mrf.mxu0
        %1512 = vmatprep.mubr.bf16.mxu0 0
        %1513 = vmatmul.mubr.bf16.gmra.mxu0 %v1465
        %v1514 = vpop.f32.mrf.mxu0
        %v1515 = vadd.f32 0.0, %v1514
        %v1516 = vpop.f32.mrf.mxu0
        %v1517 = vpop.f32.mrf.mxu0
        %v1518 = vadd.f32 0.0, %v1517
        %v1519 = vpop.f32.mrf.mxu0
        %1520 = vmatprep.mubr.bf16.mxu0 0
        %1521 = vmatmul.mubr.bf16.gmra.mxu0 %v1466
        %v1522 = vpop.f32.mrf.mxu0
        %v1523 = vadd.f32 0.0, %v1522
        %v1524 = vpop.f32.mrf.mxu0
        %v1525 = vpop.f32.mrf.mxu0
        %v1526 = vadd.f32 0.0, %v1525
        %v1527 = vpop.f32.mrf.mxu0
        %1528 = vmatprep.mubr.bf16.mxu0 0
        %1529 = vmatmul.mubr.bf16.gmra.mxu0 %v1467
        %v1530 = vpop.f32.mrf.mxu0
        %v1531 = vadd.f32 0.0, %v1530
        %v1532 = vpop.f32.mrf.mxu0
        %v1533 = vpop.f32.mrf.mxu0
        %v1534 = vadd.f32 0.0, %v1533
        %v1535 = vpop.f32.mrf.mxu0
        %1536 = vmatprep.mubr.bf16.mxu0 0
        %1537 = vmatmul.mubr.bf16.gmra.mxu0 %v1468
        %v1538 = vpop.f32.mrf.mxu0
        %v1539 = vadd.f32 0.0, %v1538
        %v1540 = vpop.f32.mrf.mxu0
        %v1541 = vpop.f32.mrf.mxu0
        %v1542 = vadd.f32 0.0, %v1541
        %v1543 = vpop.f32.mrf.mxu0
        %1544 = vmatprep.mubr.bf16.mxu0 0
        %1545 = vmatmul.mubr.bf16.gmra.mxu0 %v1469
        %v1546 = vpop.f32.mrf.mxu0
        %v1547 = vadd.f32 0.0, %v1546
        %v1548 = vpop.f32.mrf.mxu0
        %v1549 = vpop.f32.mrf.mxu0
        %v1550 = vadd.f32 0.0, %v1549
        %v1551 = vpop.f32.mrf.mxu0
        %1552 = vmatprep.mubr.bf16.mxu0 0
        %1553 = vmatmul.mubr.bf16.gmra.mxu0 %v1470
        %v1554 = vpop.f32.mrf.mxu0
        %v1555 = vadd.f32 0.0, %v1554
        %v1556 = vpop.f32.mrf.mxu0
        %v1557 = vpop.f32.mrf.mxu0
        %v1558 = vadd.f32 0.0, %v1557
        %v1559 = vpop.f32.mrf.mxu0
        %1560 = vmatprep.mubr.bf16.mxu0 0
        %1561 = vmatmul.mubr.bf16.gmra.mxu0 %v1471
        %v1562 = vpop.f32.mrf.mxu0
        %v1563 = vadd.f32 0.0, %v1562
        %v1564 = vpop.f32.mrf.mxu0
        %v1565 = vpop.f32.mrf.mxu0
        %v1566 = vadd.f32 0.0, %v1565
        %v1567 = vpop.f32.mrf.mxu0
        %1568 = vdwg.mxu0
        %v1569 = vadd.f32 %v1507, %v1510
        %v1570 = vrot.slane %v1569, 4
        %v1571 = vadd.f32 %v1569, %v1570
        %v1572 = vrot.slane %v1571, 2
        %v1573 = vadd.f32 %v1571, %v1572
        %v1574 = vrot.slane %v1573, 1
        %v1575 = vadd.f32 %v1573, %v1574
        %v1576 = vadd.f32 %v1515, %v1518
        %v1577 = vrot.slane %v1576, 4
        %v1578 = vadd.f32 %v1576, %v1577
        %v1579 = vrot.slane %v1578, 2
        %v1580 = vadd.f32 %v1578, %v1579
        %v1581 = vrot.slane %v1580, 1
        %v1582 = vadd.f32 %v1580, %v1581
        %v1583 = vadd.f32 %v1523, %v1526
        %v1584 = vrot.slane %v1583, 4
        %v1585 = vadd.f32 %v1583, %v1584
        %v1586 = vrot.slane %v1585, 2
        %v1587 = vadd.f32 %v1585, %v1586
        %v1588 = vrot.slane %v1587, 1
        %v1589 = vadd.f32 %v1587, %v1588
        %v1590 = vadd.f32 %v1531, %v1534
        %v1591 = vrot.slane %v1590, 4
        %v1592 = vadd.f32 %v1590, %v1591
        %v1593 = vrot.slane %v1592, 2
        %v1594 = vadd.f32 %v1592, %v1593
        %v1595 = vrot.slane %v1594, 1
        %v1596 = vadd.f32 %v1594, %v1595
        %v1597 = vadd.f32 %v1539, %v1542
        %v1598 = vrot.slane %v1597, 4
        %v1599 = vadd.f32 %v1597, %v1598
        %v1600 = vrot.slane %v1599, 2
        %v1601 = vadd.f32 %v1599, %v1600
        %v1602 = vrot.slane %v1601, 1
        %v1603 = vadd.f32 %v1601, %v1602
        %v1604 = vadd.f32 %v1547, %v1550
        %v1605 = vrot.slane %v1604, 4
        %v1606 = vadd.f32 %v1604, %v1605
        %v1607 = vrot.slane %v1606, 2
        %v1608 = vadd.f32 %v1606, %v1607
        %v1609 = vrot.slane %v1608, 1
        %v1610 = vadd.f32 %v1608, %v1609
        %v1611 = vadd.f32 %v1555, %v1558
        %v1612 = vrot.slane %v1611, 4
        %v1613 = vadd.f32 %v1611, %v1612
        %v1614 = vrot.slane %v1613, 2
        %v1615 = vadd.f32 %v1613, %v1614
        %v1616 = vrot.slane %v1615, 1
        %v1617 = vadd.f32 %v1615, %v1616
        %v1618 = vadd.f32 %v1563, %v1566
        %v1619 = vrot.slane %v1618, 4
        %v1620 = vadd.f32 %v1618, %v1619
        %v1621 = vrot.slane %v1620, 2
        %v1622 = vadd.f32 %v1620, %v1621
        %v1623 = vrot.slane %v1622, 1
        %v1624 = vadd.f32 %v1622, %v1623
        %v1625 = vmul.f32 %v1575, 0.00390625
        %v1626 = vmul.f32 %v1582, 0.00390625
        %v1627 = vmul.f32 %v1589, 0.00390625
        %v1628 = vmul.f32 %v1596, 0.00390625
        %v1629 = vmul.f32 %v1603, 0.00390625
        %v1630 = vmul.f32 %v1610, 0.00390625
        %v1631 = vmul.f32 %v1617, 0.00390625
        %v1632 = vmul.f32 %v1624, 0.00390625
        %v1633 = vmul.f32 %v1625, %v1625
        %v1634 = vmul.f32 %v1626, %v1626
        %v1635 = vmul.f32 %v1627, %v1627
        %v1636 = vmul.f32 %v1628, %v1628
        %v1637 = vsub.f32 %v1629, %v1633
        %v1638 = vsub.f32 %v1630, %v1634
        %v1639 = vsub.f32 %v1631, %v1635
        %v1640 = vsub.f32 %v1632, %v1636
        %v1641 = vmax.f32 %v1637, 0.0
        %v1642 = vmax.f32 %v1638, 0.0
        %v1643 = vmax.f32 %v1639, 0.0
        %v1644 = vmax.f32 %v1640, 0.0
        %v1645 = vadd.f32 %v1641, 1e-05
        %v1646 = vadd.f32 %v1642, 1e-05
        %v1647 = vadd.f32 %v1643, 1e-05
        %v1648 = vadd.f32 %v1644, 1e-05
        %v1649 = vrsqrt.pop %v1645
        %v1650 = vrsqrt.pop %v1646
        %v1651 = vrsqrt.pop %v1647
        %v1652 = vrsqrt.pop %v1648
        %s1653 = scalar_lea.vmem %s3, 1
        %v1654 = vld [vmem:[%s1653] sm:$0x1]
        %v1655 = vmul.f32 %v1649, %v1654
        %v1656 = vmul.f32 %v1650, %v1654
        %v1657 = vmul.f32 %v1651, %v1654
        %v1658 = vmul.f32 %v1652, %v1654
        %s1659 = scalar_lea.vmem %s4, 1
        %v1660 = vld [vmem:[%s1659] sm:$0x1]
        %v1661 = vmul.f32 %v1625, %v1655
        %v1662 = vmul.f32 %v1626, %v1656
        %v1663 = vmul.f32 %v1627, %v1657
        %v1664 = vmul.f32 %v1628, %v1658
        %v1665 = vsub.f32 %v1660, %v1661
        %v1666 = vsub.f32 %v1660, %v1662
        %v1667 = vsub.f32 %v1660, %v1663
        %v1668 = vsub.f32 %v1660, %v1664
        %v1669 = vlaneseq
        %v1670 = vshrl.u32 %v1669, 7
        %v1671 = vsub.s32 0, %v1670
        %v1672 = vrot.slane %v1655, %v1671
        %v1673 = vlaneseq
        %v1674 = vshrl.u32 %v1673, 7
        %v1675 = vsub.s32 0, %v1674
        %v1676 = vrot.slane %v1656, %v1675
        %v1677 = vlaneseq
        %v1678 = vshrl.u32 %v1677, 7
        %v1679 = vsub.s32 0, %v1678
        %v1680 = vrot.slane %v1657, %v1679
        %v1681 = vlaneseq
        %v1682 = vshrl.u32 %v1681, 7
        %v1683 = vsub.s32 0, %v1682
        %v1684 = vrot.slane %v1658, %v1683
        %v1685 = vmul.f32 %v1426, %v1672
        %v1686 = vmul.f32 %v1429, %v1672
        %v1687 = vmul.f32 %v1434, %v1676
        %v1688 = vmul.f32 %v1437, %v1676
        %v1689 = vmul.f32 %v1442, %v1680
        %v1690 = vmul.f32 %v1445, %v1680
        %v1691 = vmul.f32 %v1450, %v1684
        %v1692 = vmul.f32 %v1453, %v1684
        %v1697 = vlaneseq
        %v1698 = vshrl.u32 %v1697, 7
        %v1699 = vsub.s32 0, %v1698
        %v1700 = vrot.slane %v1665, %v1699
        %v1701 = vlaneseq
        %v1702 = vshrl.u32 %v1701, 7
        %v1703 = vsub.s32 0, %v1702
        %v1704 = vrot.slane %v1666, %v1703
        %v1705 = vlaneseq
        %v1706 = vshrl.u32 %v1705, 7
        %v1707 = vsub.s32 0, %v1706
        %v1708 = vrot.slane %v1667, %v1707
        %v1709 = vlaneseq
        %v1710 = vshrl.u32 %v1709, 7
        %v1711 = vsub.s32 0, %v1710
        %v1712 = vrot.slane %v1668, %v1711
        %v1717 = vadd.f32 %v1685, %v1700
        %v1718 = vadd.f32 %v1686, %v1700
        %v1719 = vadd.f32 %v1687, %v1704
        %v1720 = vadd.f32 %v1688, %v1704
        %v1721 = vadd.f32 %v1689, %v1708
        %v1722 = vadd.f32 %v1690, %v1708
        %v1723 = vadd.f32 %v1691, %v1712
        %v1724 = vadd.f32 %v1692, %v1712
        %v1725 = vadd.f32 %v1717, %v325
        %v1726 = vadd.f32 %v1718, %v326
        %v1727 = vadd.f32 %v1719, %v327
        %v1728 = vadd.f32 %v1720, %v328
        %v1729 = vadd.f32 %v1721, %v329
        %v1730 = vadd.f32 %v1722, %v330
        %v1731 = vadd.f32 %v1723, %v331
        %v1732 = vadd.f32 %v1724, %v332
        %v1733 = vpack.c.bf16 %v1726, %v1725
        %v1734 = vpack.c.bf16 %v1728, %v1727
        %v1735 = vpack.c.bf16 %v1730, %v1729
        %v1736 = vpack.c.bf16 %v1732, %v1731
        %v1737 = vrot.slane %v1725, 7
        %v1738 = vrot.slane %v1726, 7
        %v1739 = vrot.slane %v1727, 7
        %v1740 = vrot.slane %v1728, 7
        %v1741 = vrot.slane %v1729, 7
        %v1742 = vrot.slane %v1730, 7
        %v1743 = vrot.slane %v1731, 7
        %v1744 = vrot.slane %v1732, 7
        %v1745 = vsel %vm345, %v1743, %v1744
        %v1746 = vsel %vm345, %v1742, %v1743
        %v1747 = vsel %vm345, %v1741, %v1742
        %v1748 = vsel %vm345, %v1740, %v1741
        %v1749 = vsel %vm345, %v1739, %v1740
        %v1750 = vsel %vm345, %v1738, %v1739
        %v1751 = vsel %vm345, %v1737, %v1738
        %v1752 = vsel %vm345, %v1744, %v1737
        %v1753 = vsel %vm305, %v1752, 0.0
        %v1754 = vsel %vm306, %v1751, 0.0
        %v1755 = vsel %vm305, %v1750, 0.0
        %v1756 = vsel %vm306, %v1749, 0.0
        %v1757 = vsel %vm305, %v1748, 0.0
        %v1758 = vsel %vm306, %v1747, 0.0
        %v1759 = vsel %vm305, %v1746, 0.0
        %v1760 = vsel %vm306, %v1745, 0.0
        %v1761 = vpack.c.bf16 %v1754, %v1753
        %v1762 = vpack.c.bf16 %v1756, %v1755
        %v1763 = vpack.c.bf16 %v1758, %v1757
        %v1764 = vpack.c.bf16 %v1760, %v1759
        %v1765 = vrot.slane %v1725, 1
        %v1766 = vrot.slane %v1726, 1
        %v1767 = vrot.slane %v1727, 1
        %v1768 = vrot.slane %v1728, 1
        %v1769 = vrot.slane %v1729, 1
        %v1770 = vrot.slane %v1730, 1
        %v1771 = vrot.slane %v1731, 1
        %v1772 = vrot.slane %v1732, 1
        %v1773 = vsel %vm374, %v1771, %v1772
        %v1774 = vsel %vm374, %v1770, %v1771
        %v1775 = vsel %vm374, %v1769, %v1770
        %v1776 = vsel %vm374, %v1768, %v1769
        %v1777 = vsel %vm374, %v1767, %v1768
        %v1778 = vsel %vm374, %v1766, %v1767
        %v1779 = vsel %vm374, %v1765, %v1766
        %v1780 = vsel %vm374, %v1772, %v1765
        %v1781 = vsel %vm307, %v1779, 0.0
        %v1782 = vsel %vm308, %v1778, 0.0
        %v1783 = vsel %vm307, %v1777, 0.0
        %v1784 = vsel %vm308, %v1776, 0.0
        %v1785 = vsel %vm307, %v1775, 0.0
        %v1786 = vsel %vm308, %v1774, 0.0
        %v1787 = vsel %vm307, %v1773, 0.0
        %v1788 = vsel %vm308, %v1780, 0.0
        %v1789 = vpack.c.bf16 %v1782, %v1781
        %v1790 = vpack.c.bf16 %v1784, %v1783
        %v1791 = vpack.c.bf16 %v1786, %v1785
        %v1792 = vpack.c.bf16 %v1788, %v1787
        %s1793 = scalar_lea.vmem %s1, 384
        %v1794 = vld [vmem:[%s1793] sm:$0xf]
        %v1795 = vld [vmem:[%s1793 + $0x4] sm:$0xf]
        %v1796 = vld [vmem:[%s1793 + $0x8] sm:$0xf]
        %v1797 = vld [vmem:[%s1793 + $0xc] sm:$0xf]
        %v1798 = vld [vmem:[%s1793 + $0x10] sm:$0xf]
        %v1799 = vld [vmem:[%s1793 + $0x14] sm:$0xf]
        %v1800 = vld [vmem:[%s1793 + $0x18] sm:$0xf]
        %v1801 = vld [vmem:[%s1793 + $0x1c] sm:$0xf]
        %v1802 = vld [vmem:[%s1793 + $0x20] sm:$0xf]
        %v1803 = vld [vmem:[%s1793 + $0x24] sm:$0xf]
        %v1804 = vld [vmem:[%s1793 + $0x28] sm:$0xf]
        %v1805 = vld [vmem:[%s1793 + $0x2c] sm:$0xf]
        %v1806 = vld [vmem:[%s1793 + $0x30] sm:$0xf]
        %v1807 = vld [vmem:[%s1793 + $0x34] sm:$0xf]
        %v1808 = vld [vmem:[%s1793 + $0x38] sm:$0xf]
        %v1809 = vld [vmem:[%s1793 + $0x3c] sm:$0xf]
        %v1810 = vld [vmem:[%s1793 + $0x40] sm:$0xf]
        %v1811 = vld [vmem:[%s1793 + $0x44] sm:$0xf]
        %v1812 = vld [vmem:[%s1793 + $0x48] sm:$0xf]
        %v1813 = vld [vmem:[%s1793 + $0x4c] sm:$0xf]
        %v1814 = vld [vmem:[%s1793 + $0x50] sm:$0xf]
        %v1815 = vld [vmem:[%s1793 + $0x54] sm:$0xf]
        %v1816 = vld [vmem:[%s1793 + $0x58] sm:$0xf]
        %v1817 = vld [vmem:[%s1793 + $0x5c] sm:$0xf]
        %v1818 = vld [vmem:[%s1793 + $0x60] sm:$0xf]
        %v1819 = vld [vmem:[%s1793 + $0x64] sm:$0xf]
        %v1820 = vld [vmem:[%s1793 + $0x68] sm:$0xf]
        %v1821 = vld [vmem:[%s1793 + $0x6c] sm:$0xf]
        %v1822 = vld [vmem:[%s1793 + $0x70] sm:$0xf]
        %v1823 = vld [vmem:[%s1793 + $0x74] sm:$0xf]
        %v1824 = vld [vmem:[%s1793 + $0x78] sm:$0xf]
        %v1825 = vld [vmem:[%s1793 + $0x7c] sm:$0xf]
        %v1826 = vld [vmem:[%s1793 + $0x80] sm:$0xf]
        %v1827 = vld [vmem:[%s1793 + $0x84] sm:$0xf]
        %v1828 = vld [vmem:[%s1793 + $0x88] sm:$0xf]
        %v1829 = vld [vmem:[%s1793 + $0x8c] sm:$0xf]
        %v1830 = vld [vmem:[%s1793 + $0x90] sm:$0xf]
        %v1831 = vld [vmem:[%s1793 + $0x94] sm:$0xf]
        %v1832 = vld [vmem:[%s1793 + $0x98] sm:$0xf]
        %v1833 = vld [vmem:[%s1793 + $0x9c] sm:$0xf]
        %v1834 = vld [vmem:[%s1793 + $0xa0] sm:$0xf]
        %v1835 = vld [vmem:[%s1793 + $0xa4] sm:$0xf]
        %v1836 = vld [vmem:[%s1793 + $0xa8] sm:$0xf]
        %v1837 = vld [vmem:[%s1793 + $0xac] sm:$0xf]
        %v1838 = vld [vmem:[%s1793 + $0xb0] sm:$0xf]
        %v1839 = vld [vmem:[%s1793 + $0xb4] sm:$0xf]
        %v1840 = vld [vmem:[%s1793 + $0xb8] sm:$0xf]
        %v1841 = vld [vmem:[%s1793 + $0xbc] sm:$0xf]
        %s1842 = scalar_lea.vmem %s2, 2
        %v1843 = vld [vmem:[%s1842] sm:$0x1]
        %v1845 = vlaneseq
        %v1846 = vshrl.u32 %v1845, 7
        %v1847 = vsub.s32 0, %v1846
        %v1848 = vrot.slane %v1843, %v1847
        %v1898 = vunpack.c.l.b16 %v1794
        %v1899 = vunpack.c.l.b16 %v1795
        %v1900 = vunpack.c.l.b16 %v1796
        %v1901 = vunpack.c.l.b16 %v1797
        %v1902 = vunpack.c.l.b16 %v1798
        %v1903 = vunpack.c.l.b16 %v1799
        %v1904 = vunpack.c.l.b16 %v1800
        %v1905 = vunpack.c.l.b16 %v1801
        %v1906 = vunpack.c.l.b16 %v1802
        %v1907 = vunpack.c.l.b16 %v1803
        %v1908 = vunpack.c.l.b16 %v1804
        %v1909 = vunpack.c.l.b16 %v1805
        %v1910 = vunpack.c.l.b16 %v1806
        %v1911 = vunpack.c.l.b16 %v1807
        %v1912 = vunpack.c.l.b16 %v1808
        %v1913 = vunpack.c.l.b16 %v1809
        %v1914 = vunpack.c.l.b16 %v1810
        %v1915 = vunpack.c.l.b16 %v1811
        %v1916 = vunpack.c.l.b16 %v1812
        %v1917 = vunpack.c.l.b16 %v1813
        %v1918 = vunpack.c.l.b16 %v1814
        %v1919 = vunpack.c.l.b16 %v1815
        %v1920 = vunpack.c.l.b16 %v1816
        %v1921 = vunpack.c.l.b16 %v1817
        %v1922 = vunpack.c.l.b16 %v1818
        %v1923 = vunpack.c.l.b16 %v1819
        %v1924 = vunpack.c.l.b16 %v1820
        %v1925 = vunpack.c.l.b16 %v1821
        %v1926 = vunpack.c.l.b16 %v1822
        %v1927 = vunpack.c.l.b16 %v1823
        %v1928 = vunpack.c.l.b16 %v1824
        %v1929 = vunpack.c.l.b16 %v1825
        %v1930 = vunpack.c.l.b16 %v1826
        %v1931 = vunpack.c.l.b16 %v1827
        %v1932 = vunpack.c.l.b16 %v1828
        %v1933 = vunpack.c.l.b16 %v1829
        %v1934 = vunpack.c.l.b16 %v1830
        %v1935 = vunpack.c.l.b16 %v1831
        %v1936 = vunpack.c.l.b16 %v1832
        %v1937 = vunpack.c.l.b16 %v1833
        %v1938 = vunpack.c.l.b16 %v1834
        %v1939 = vunpack.c.l.b16 %v1835
        %v1940 = vunpack.c.l.b16 %v1836
        %v1941 = vunpack.c.l.b16 %v1837
        %v1942 = vunpack.c.l.b16 %v1838
        %v1943 = vunpack.c.l.b16 %v1839
        %v1944 = vunpack.c.l.b16 %v1840
        %v1945 = vunpack.c.l.b16 %v1841
        %v1946 = vpack.c.b16 %v1899, %v1898
        %v1947 = vpack.c.b16 %v1901, %v1900
        %v1948 = vpack.c.b16 %v1903, %v1902
        %v1949 = vpack.c.b16 %v1905, %v1904
        %v1950 = vpack.c.b16 %v1907, %v1906
        %v1951 = vpack.c.b16 %v1909, %v1908
        %v1952 = vpack.c.b16 %v1911, %v1910
        %v1953 = vpack.c.b16 %v1913, %v1912
        %v1954 = vpack.c.b16 %v1915, %v1914
        %v1955 = vpack.c.b16 %v1917, %v1916
        %v1956 = vpack.c.b16 %v1919, %v1918
        %v1957 = vpack.c.b16 %v1921, %v1920
        %v1958 = vpack.c.b16 %v1923, %v1922
        %v1959 = vpack.c.b16 %v1925, %v1924
        %v1960 = vpack.c.b16 %v1927, %v1926
        %v1961 = vpack.c.b16 %v1929, %v1928
        %v1962 = vpack.c.b16 %v1931, %v1930
        %v1963 = vpack.c.b16 %v1933, %v1932
        %v1964 = vpack.c.b16 %v1935, %v1934
        %v1965 = vpack.c.b16 %v1937, %v1936
        %v1966 = vpack.c.b16 %v1939, %v1938
        %v1967 = vpack.c.b16 %v1941, %v1940
        %v1968 = vpack.c.b16 %v1943, %v1942
        %v1969 = vpack.c.b16 %v1945, %v1944
        %1994 = vmatprep.subr.bf16.mxu0 0
        %1995 = vmatpush1.bf16.msra.mxu0 %v1953
        %1996 = vmatprep.subr.bf16.mxu0 0
        %1997 = vmatpush1.bf16.msra.mxu0 %v1952
        %1998 = vmatprep.subr.bf16.mxu0 0
        %1999 = vmatpush1.bf16.msra.mxu0 %v1951
        %2000 = vmatprep.subr.bf16.mxu0 0
        %2001 = vmatpush1.bf16.msra.mxu0 %v1950
        %2002 = vmatprep.subr.bf16.mxu0 0
        %2003 = vmatpush1.bf16.msra.mxu0 %v1949
        %2004 = vmatprep.subr.bf16.mxu0 0
        %2005 = vmatpush1.bf16.msra.mxu0 %v1948
        %2006 = vmatprep.subr.bf16.mxu0 0
        %2007 = vmatpush1.bf16.msra.mxu0 %v1947
        %2008 = vmatprep.subr.bf16.mxu0 0
        %2009 = vmatpush1.bf16.msra.mxu0 %v1946
        %2010 = vmatprep.subr.bf16.mxu0 0
        %2011 = vmatpush2.bf16.msra.mxu0 %v1961
        %2012 = vmatprep.subr.bf16.mxu0 0
        %2013 = vmatpush2.bf16.msra.mxu0 %v1960
        %2014 = vmatprep.subr.bf16.mxu0 0
        %2015 = vmatpush2.bf16.msra.mxu0 %v1959
        %2016 = vmatprep.subr.bf16.mxu0 0
        %2017 = vmatpush2.bf16.msra.mxu0 %v1958
        %2018 = vmatprep.subr.bf16.mxu0 0
        %2019 = vmatpush2.bf16.msra.mxu0 %v1957
        %2020 = vmatprep.subr.bf16.mxu0 0
        %2021 = vmatpush2.bf16.msra.mxu0 %v1956
        %2022 = vmatprep.subr.bf16.mxu0 0
        %2023 = vmatpush2.bf16.msra.mxu0 %v1955
        %2024 = vmatprep.subr.bf16.mxu0 0
        %2025 = vmatpush2.bf16.msra.mxu0 %v1954
        %2026 = vmatprep.mubr.bf16.mxu0 %v1733
        %2027 = vmatmul.mubr.bf16.gmra.mxu0 %v1761
        %v2028 = vpop.f32.mrf.mxu0
        %v2029 = vadd.f32 %v1848, %v2028
        %v2030 = vpop.f32.mrf.mxu0
        %v2031 = vpop.f32.mrf.mxu0
        %v2032 = vadd.f32 %v1848, %v2031
        %v2033 = vpop.f32.mrf.mxu0
        %2034 = vmatprep.mubr.bf16.mxu0 %v1734
        %2035 = vmatmul.mubr.bf16.gmra.mxu0 %v1762
        %v2036 = vpop.f32.mrf.mxu0
        %v2037 = vadd.f32 %v1848, %v2036
        %v2038 = vpop.f32.mrf.mxu0
        %v2039 = vpop.f32.mrf.mxu0
        %v2040 = vadd.f32 %v1848, %v2039
        %v2041 = vpop.f32.mrf.mxu0
        %2042 = vmatprep.mubr.bf16.mxu0 %v1735
        %2043 = vmatmul.mubr.bf16.gmra.mxu0 %v1763
        %v2044 = vpop.f32.mrf.mxu0
        %v2045 = vadd.f32 %v1848, %v2044
        %v2046 = vpop.f32.mrf.mxu0
        %v2047 = vpop.f32.mrf.mxu0
        %v2048 = vadd.f32 %v1848, %v2047
        %v2049 = vpop.f32.mrf.mxu0
        %2050 = vmatprep.mubr.bf16.mxu0 %v1736
        %2051 = vmatmul.mubr.bf16.gmra.mxu0 %v1764
        %v2052 = vpop.f32.mrf.mxu0
        %v2053 = vadd.f32 %v1848, %v2052
        %v2054 = vpop.f32.mrf.mxu0
        %v2055 = vpop.f32.mrf.mxu0
        %v2056 = vadd.f32 %v1848, %v2055
        %v2057 = vpop.f32.mrf.mxu0
        %2058 = vdwg.mxu0
        %2059 = vmatprep.subr.bf16.mxu0 0
        %2060 = vmatpush1.bf16.msra.mxu0 %v1969
        %2061 = vmatprep.subr.bf16.mxu0 0
        %2062 = vmatpush1.bf16.msra.mxu0 %v1968
        %2063 = vmatprep.subr.bf16.mxu0 0
        %2064 = vmatpush1.bf16.msra.mxu0 %v1967
        %2065 = vmatprep.subr.bf16.mxu0 0
        %2066 = vmatpush1.bf16.msra.mxu0 %v1966
        %2067 = vmatprep.subr.bf16.mxu0 0
        %2068 = vmatpush1.bf16.msra.mxu0 %v1965
        %2069 = vmatprep.subr.bf16.mxu0 0
        %2070 = vmatpush1.bf16.msra.mxu0 %v1964
        %2071 = vmatprep.subr.bf16.mxu0 0
        %2072 = vmatpush1.bf16.msra.mxu0 %v1963
        %2073 = vmatprep.subr.bf16.mxu0 0
        %2074 = vmatpush1.bf16.msra.mxu0 %v1962
        %2075 = vmatprep.subr.bf16.mxu0 0
        %2076 = vmatpush2.bf16.msra.mxu0 0
        %2077 = vmatprep.subr.bf16.mxu0 0
        %2078 = vmatpush2.bf16.msra.mxu0 0
        %2079 = vmatprep.subr.bf16.mxu0 0
        %2080 = vmatpush2.bf16.msra.mxu0 0
        %2081 = vmatprep.subr.bf16.mxu0 0
        %2082 = vmatpush2.bf16.msra.mxu0 0
        %2083 = vmatprep.subr.bf16.mxu0 0
        %2084 = vmatpush2.bf16.msra.mxu0 0
        %2085 = vmatprep.subr.bf16.mxu0 0
        %2086 = vmatpush2.bf16.msra.mxu0 0
        %2087 = vmatprep.subr.bf16.mxu0 0
        %2088 = vmatpush2.bf16.msra.mxu0 0
        %2089 = vmatprep.subr.bf16.mxu0 0
        %2090 = vmatpush2.bf16.msra.mxu0 0
        %2091 = vmatprep.mubr.bf16.mxu0 0
        %2092 = vmatmul.mubr.bf16.gmra.mxu0 %v1789
        %v2093 = vpop.f32.mrf.mxu0
        %v2094 = vadd.f32 %v2029, %v2093
        %v2095 = vpop.f32.mrf.mxu0
        %v2096 = vpop.f32.mrf.mxu0
        %v2097 = vadd.f32 %v2032, %v2096
        %v2098 = vpop.f32.mrf.mxu0
        %2099 = vmatprep.mubr.bf16.mxu0 0
        %2100 = vmatmul.mubr.bf16.gmra.mxu0 %v1790
        %v2101 = vpop.f32.mrf.mxu0
        %v2102 = vadd.f32 %v2037, %v2101
        %v2103 = vpop.f32.mrf.mxu0
        %v2104 = vpop.f32.mrf.mxu0
        %v2105 = vadd.f32 %v2040, %v2104
        %v2106 = vpop.f32.mrf.mxu0
        %2107 = vmatprep.mubr.bf16.mxu0 0
        %2108 = vmatmul.mubr.bf16.gmra.mxu0 %v1791
        %v2109 = vpop.f32.mrf.mxu0
        %v2110 = vadd.f32 %v2045, %v2109
        %v2111 = vpop.f32.mrf.mxu0
        %v2112 = vpop.f32.mrf.mxu0
        %v2113 = vadd.f32 %v2048, %v2112
        %v2114 = vpop.f32.mrf.mxu0
        %2115 = vmatprep.mubr.bf16.mxu0 0
        %2116 = vmatmul.mubr.bf16.gmra.mxu0 %v1792
        %v2117 = vpop.f32.mrf.mxu0
        %v2118 = vadd.f32 %v2053, %v2117
        %v2119 = vpop.f32.mrf.mxu0
        %v2120 = vpop.f32.mrf.mxu0
        %v2121 = vadd.f32 %v2056, %v2120
        %v2122 = vpop.f32.mrf.mxu0
        %2123 = vdwg.mxu0
        %v2124 = vmul.f32 %v2094, %v2094
        %v2125 = vmul.f32 %v2097, %v2097
        %v2126 = vmul.f32 %v2102, %v2102
        %v2127 = vmul.f32 %v2105, %v2105
        %v2128 = vmul.f32 %v2110, %v2110
        %v2129 = vmul.f32 %v2113, %v2113
        %v2130 = vmul.f32 %v2118, %v2118
        %v2131 = vmul.f32 %v2121, %v2121
        %v2132 = vpack.c.bf16 %v2097, %v2094
        %v2133 = vpack.c.bf16 %v2105, %v2102
        %v2134 = vpack.c.bf16 %v2113, %v2110
        %v2135 = vpack.c.bf16 %v2121, %v2118
        %v2136 = vpack.c.bf16 %v2125, %v2124
        %v2137 = vpack.c.bf16 %v2127, %v2126
        %v2138 = vpack.c.bf16 %v2129, %v2128
        %v2139 = vpack.c.bf16 %v2131, %v2130
        %2140 = vmatprep.subr.bf16.mxu0 0
        %2141 = vmatpush1.bf16.msra.mxu0 %v779
        %2142 = vmatprep.subr.bf16.mxu0 0
        %2143 = vmatpush1.bf16.msra.mxu0 %v778
        %2144 = vmatprep.subr.bf16.mxu0 0
        %2145 = vmatpush1.bf16.msra.mxu0 %v777
        %2146 = vmatprep.subr.bf16.mxu0 0
        %2147 = vmatpush1.bf16.msra.mxu0 %v776
        %2148 = vmatprep.subr.bf16.mxu0 0
        %2149 = vmatpush1.bf16.msra.mxu0 %v775
        %2150 = vmatprep.subr.bf16.mxu0 0
        %2151 = vmatpush1.bf16.msra.mxu0 %v774
        %2152 = vmatprep.subr.bf16.mxu0 0
        %2153 = vmatpush1.bf16.msra.mxu0 %v773
        %2154 = vmatprep.subr.bf16.mxu0 0
        %2155 = vmatpush1.bf16.msra.mxu0 %v772
        %2156 = vmatprep.subr.bf16.mxu0 0
        %2157 = vmatpush2.bf16.msra.mxu0 0
        %2158 = vmatprep.subr.bf16.mxu0 0
        %2159 = vmatpush2.bf16.msra.mxu0 0
        %2160 = vmatprep.subr.bf16.mxu0 0
        %2161 = vmatpush2.bf16.msra.mxu0 0
        %2162 = vmatprep.subr.bf16.mxu0 0
        %2163 = vmatpush2.bf16.msra.mxu0 0
        %2164 = vmatprep.subr.bf16.mxu0 0
        %2165 = vmatpush2.bf16.msra.mxu0 0
        %2166 = vmatprep.subr.bf16.mxu0 0
        %2167 = vmatpush2.bf16.msra.mxu0 0
        %2168 = vmatprep.subr.bf16.mxu0 0
        %2169 = vmatpush2.bf16.msra.mxu0 0
        %2170 = vmatprep.subr.bf16.mxu0 0
        %2171 = vmatpush2.bf16.msra.mxu0 0
        %2172 = vmatprep.mubr.bf16.mxu0 0
        %2173 = vmatmul.mubr.bf16.gmra.mxu0 %v2132
        %v2174 = vpop.f32.mrf.mxu0
        %v2175 = vadd.f32 0.0, %v2174
        %v2176 = vpop.f32.mrf.mxu0
        %v2177 = vpop.f32.mrf.mxu0
        %v2178 = vadd.f32 0.0, %v2177
        %v2179 = vpop.f32.mrf.mxu0
        %2180 = vmatprep.mubr.bf16.mxu0 0
        %2181 = vmatmul.mubr.bf16.gmra.mxu0 %v2133
        %v2182 = vpop.f32.mrf.mxu0
        %v2183 = vadd.f32 0.0, %v2182
        %v2184 = vpop.f32.mrf.mxu0
        %v2185 = vpop.f32.mrf.mxu0
        %v2186 = vadd.f32 0.0, %v2185
        %v2187 = vpop.f32.mrf.mxu0
        %2188 = vmatprep.mubr.bf16.mxu0 0
        %2189 = vmatmul.mubr.bf16.gmra.mxu0 %v2134
        %v2190 = vpop.f32.mrf.mxu0
        %v2191 = vadd.f32 0.0, %v2190
        %v2192 = vpop.f32.mrf.mxu0
        %v2193 = vpop.f32.mrf.mxu0
        %v2194 = vadd.f32 0.0, %v2193
        %v2195 = vpop.f32.mrf.mxu0
        %2196 = vmatprep.mubr.bf16.mxu0 0
        %2197 = vmatmul.mubr.bf16.gmra.mxu0 %v2135
        %v2198 = vpop.f32.mrf.mxu0
        %v2199 = vadd.f32 0.0, %v2198
        %v2200 = vpop.f32.mrf.mxu0
        %v2201 = vpop.f32.mrf.mxu0
        %v2202 = vadd.f32 0.0, %v2201
        %v2203 = vpop.f32.mrf.mxu0
        %2204 = vmatprep.mubr.bf16.mxu0 0
        %2205 = vmatmul.mubr.bf16.gmra.mxu0 %v2136
        %v2206 = vpop.f32.mrf.mxu0
        %v2207 = vadd.f32 0.0, %v2206
        %v2208 = vpop.f32.mrf.mxu0
        %v2209 = vpop.f32.mrf.mxu0
        %v2210 = vadd.f32 0.0, %v2209
        %v2211 = vpop.f32.mrf.mxu0
        %2212 = vmatprep.mubr.bf16.mxu0 0
        %2213 = vmatmul.mubr.bf16.gmra.mxu0 %v2137
        %v2214 = vpop.f32.mrf.mxu0
        %v2215 = vadd.f32 0.0, %v2214
        %v2216 = vpop.f32.mrf.mxu0
        %v2217 = vpop.f32.mrf.mxu0
        %v2218 = vadd.f32 0.0, %v2217
        %v2219 = vpop.f32.mrf.mxu0
        %2220 = vmatprep.mubr.bf16.mxu0 0
        %2221 = vmatmul.mubr.bf16.gmra.mxu0 %v2138
        %v2222 = vpop.f32.mrf.mxu0
        %v2223 = vadd.f32 0.0, %v2222
        %v2224 = vpop.f32.mrf.mxu0
        %v2225 = vpop.f32.mrf.mxu0
        %v2226 = vadd.f32 0.0, %v2225
        %v2227 = vpop.f32.mrf.mxu0
        %2228 = vmatprep.mubr.bf16.mxu0 0
        %2229 = vmatmul.mubr.bf16.gmra.mxu0 %v2139
        %v2230 = vpop.f32.mrf.mxu0
        %v2231 = vadd.f32 0.0, %v2230
        %v2232 = vpop.f32.mrf.mxu0
        %v2233 = vpop.f32.mrf.mxu0
        %v2234 = vadd.f32 0.0, %v2233
        %v2235 = vpop.f32.mrf.mxu0
        %2236 = vdwg.mxu0
        %v2237 = vadd.f32 %v2175, %v2178
        %v2238 = vrot.slane %v2237, 4
        %v2239 = vadd.f32 %v2237, %v2238
        %v2240 = vrot.slane %v2239, 2
        %v2241 = vadd.f32 %v2239, %v2240
        %v2242 = vrot.slane %v2241, 1
        %v2243 = vadd.f32 %v2241, %v2242
        %v2244 = vadd.f32 %v2183, %v2186
        %v2245 = vrot.slane %v2244, 4
        %v2246 = vadd.f32 %v2244, %v2245
        %v2247 = vrot.slane %v2246, 2
        %v2248 = vadd.f32 %v2246, %v2247
        %v2249 = vrot.slane %v2248, 1
        %v2250 = vadd.f32 %v2248, %v2249
        %v2251 = vadd.f32 %v2191, %v2194
        %v2252 = vrot.slane %v2251, 4
        %v2253 = vadd.f32 %v2251, %v2252
        %v2254 = vrot.slane %v2253, 2
        %v2255 = vadd.f32 %v2253, %v2254
        %v2256 = vrot.slane %v2255, 1
        %v2257 = vadd.f32 %v2255, %v2256
        %v2258 = vadd.f32 %v2199, %v2202
        %v2259 = vrot.slane %v2258, 4
        %v2260 = vadd.f32 %v2258, %v2259
        %v2261 = vrot.slane %v2260, 2
        %v2262 = vadd.f32 %v2260, %v2261
        %v2263 = vrot.slane %v2262, 1
        %v2264 = vadd.f32 %v2262, %v2263
        %v2265 = vadd.f32 %v2207, %v2210
        %v2266 = vrot.slane %v2265, 4
        %v2267 = vadd.f32 %v2265, %v2266
        %v2268 = vrot.slane %v2267, 2
        %v2269 = vadd.f32 %v2267, %v2268
        %v2270 = vrot.slane %v2269, 1
        %v2271 = vadd.f32 %v2269, %v2270
        %v2272 = vadd.f32 %v2215, %v2218
        %v2273 = vrot.slane %v2272, 4
        %v2274 = vadd.f32 %v2272, %v2273
        %v2275 = vrot.slane %v2274, 2
        %v2276 = vadd.f32 %v2274, %v2275
        %v2277 = vrot.slane %v2276, 1
        %v2278 = vadd.f32 %v2276, %v2277
        %v2279 = vadd.f32 %v2223, %v2226
        %v2280 = vrot.slane %v2279, 4
        %v2281 = vadd.f32 %v2279, %v2280
        %v2282 = vrot.slane %v2281, 2
        %v2283 = vadd.f32 %v2281, %v2282
        %v2284 = vrot.slane %v2283, 1
        %v2285 = vadd.f32 %v2283, %v2284
        %v2286 = vadd.f32 %v2231, %v2234
        %v2287 = vrot.slane %v2286, 4
        %v2288 = vadd.f32 %v2286, %v2287
        %v2289 = vrot.slane %v2288, 2
        %v2290 = vadd.f32 %v2288, %v2289
        %v2291 = vrot.slane %v2290, 1
        %v2292 = vadd.f32 %v2290, %v2291
        %v2293 = vmul.f32 %v2243, 0.00390625
        %v2294 = vmul.f32 %v2250, 0.00390625
        %v2295 = vmul.f32 %v2257, 0.00390625
        %v2296 = vmul.f32 %v2264, 0.00390625
        %v2297 = vmul.f32 %v2271, 0.00390625
        %v2298 = vmul.f32 %v2278, 0.00390625
        %v2299 = vmul.f32 %v2285, 0.00390625
        %v2300 = vmul.f32 %v2292, 0.00390625
        %v2301 = vmul.f32 %v2293, %v2293
        %v2302 = vmul.f32 %v2294, %v2294
        %v2303 = vmul.f32 %v2295, %v2295
        %v2304 = vmul.f32 %v2296, %v2296
        %v2305 = vsub.f32 %v2297, %v2301
        %v2306 = vsub.f32 %v2298, %v2302
        %v2307 = vsub.f32 %v2299, %v2303
        %v2308 = vsub.f32 %v2300, %v2304
        %v2309 = vmax.f32 %v2305, 0.0
        %v2310 = vmax.f32 %v2306, 0.0
        %v2311 = vmax.f32 %v2307, 0.0
        %v2312 = vmax.f32 %v2308, 0.0
        %v2313 = vadd.f32 %v2309, 1e-05
        %v2314 = vadd.f32 %v2310, 1e-05
        %v2315 = vadd.f32 %v2311, 1e-05
        %v2316 = vadd.f32 %v2312, 1e-05
        %v2317 = vrsqrt.pop %v2313
        %v2318 = vrsqrt.pop %v2314
        %v2319 = vrsqrt.pop %v2315
        %v2320 = vrsqrt.pop %v2316
        %s2321 = scalar_lea.vmem %s3, 2
        %v2322 = vld [vmem:[%s2321] sm:$0x1]
        %v2323 = vmul.f32 %v2317, %v2322
        %v2324 = vmul.f32 %v2318, %v2322
        %v2325 = vmul.f32 %v2319, %v2322
        %v2326 = vmul.f32 %v2320, %v2322
        %s2327 = scalar_lea.vmem %s4, 2
        %v2328 = vld [vmem:[%s2327] sm:$0x1]
        %v2329 = vmul.f32 %v2293, %v2323
        %v2330 = vmul.f32 %v2294, %v2324
        %v2331 = vmul.f32 %v2295, %v2325
        %v2332 = vmul.f32 %v2296, %v2326
        %v2333 = vsub.f32 %v2328, %v2329
        %v2334 = vsub.f32 %v2328, %v2330
        %v2335 = vsub.f32 %v2328, %v2331
        %v2336 = vsub.f32 %v2328, %v2332
        %v2337 = vlaneseq
        %v2338 = vshrl.u32 %v2337, 7
        %v2339 = vsub.s32 0, %v2338
        %v2340 = vrot.slane %v2323, %v2339
        %v2341 = vlaneseq
        %v2342 = vshrl.u32 %v2341, 7
        %v2343 = vsub.s32 0, %v2342
        %v2344 = vrot.slane %v2324, %v2343
        %v2345 = vlaneseq
        %v2346 = vshrl.u32 %v2345, 7
        %v2347 = vsub.s32 0, %v2346
        %v2348 = vrot.slane %v2325, %v2347
        %v2349 = vlaneseq
        %v2350 = vshrl.u32 %v2349, 7
        %v2351 = vsub.s32 0, %v2350
        %v2352 = vrot.slane %v2326, %v2351
        %v2353 = vmul.f32 %v2094, %v2340
        %v2354 = vmul.f32 %v2097, %v2340
        %v2355 = vmul.f32 %v2102, %v2344
        %v2356 = vmul.f32 %v2105, %v2344
        %v2357 = vmul.f32 %v2110, %v2348
        %v2358 = vmul.f32 %v2113, %v2348
        %v2359 = vmul.f32 %v2118, %v2352
        %v2360 = vmul.f32 %v2121, %v2352
        %v2365 = vlaneseq
        %v2366 = vshrl.u32 %v2365, 7
        %v2367 = vsub.s32 0, %v2366
        %v2368 = vrot.slane %v2333, %v2367
        %v2369 = vlaneseq
        %v2370 = vshrl.u32 %v2369, 7
        %v2371 = vsub.s32 0, %v2370
        %v2372 = vrot.slane %v2334, %v2371
        %v2373 = vlaneseq
        %v2374 = vshrl.u32 %v2373, 7
        %v2375 = vsub.s32 0, %v2374
        %v2376 = vrot.slane %v2335, %v2375
        %v2377 = vlaneseq
        %v2378 = vshrl.u32 %v2377, 7
        %v2379 = vsub.s32 0, %v2378
        %v2380 = vrot.slane %v2336, %v2379
        %v2385 = vadd.f32 %v2353, %v2368
        %v2386 = vadd.f32 %v2354, %v2368
        %v2387 = vadd.f32 %v2355, %v2372
        %v2388 = vadd.f32 %v2356, %v2372
        %v2389 = vadd.f32 %v2357, %v2376
        %v2390 = vadd.f32 %v2358, %v2376
        %v2391 = vadd.f32 %v2359, %v2380
        %v2392 = vadd.f32 %v2360, %v2380
        %s2393 = sld [smem:[#allocation2 + $0x1]]
        %vm2394 = vcmp.gt.f32.partialorder %v2385, 0.0
        %vm2395 = vcmp.gt.f32.partialorder %v2386, 0.0
        %vm2396 = vcmp.gt.f32.partialorder %v2387, 0.0
        %vm2397 = vcmp.gt.f32.partialorder %v2388, 0.0
        %vm2398 = vcmp.gt.f32.partialorder %v2389, 0.0
        %vm2399 = vcmp.gt.f32.partialorder %v2390, 0.0
        %vm2400 = vcmp.gt.f32.partialorder %v2391, 0.0
        %vm2401 = vcmp.gt.f32.partialorder %v2392, 0.0
        %v2402 = vstv %s2393
        %v2403 = vmul.f32 %v2402, %v2385
        %v2404 = vmul.f32 %v2402, %v2386
        %v2405 = vmul.f32 %v2402, %v2387
        %v2406 = vmul.f32 %v2402, %v2388
        %v2407 = vmul.f32 %v2402, %v2389
        %v2408 = vmul.f32 %v2402, %v2390
        %v2409 = vmul.f32 %v2402, %v2391
        %v2410 = vmul.f32 %v2402, %v2392
        %v2411 = vsel %vm2394, %v2385, %v2403
        %v2412 = vsel %vm2395, %v2386, %v2404
        %v2413 = vsel %vm2396, %v2387, %v2405
        %v2414 = vsel %vm2397, %v2388, %v2406
        %v2415 = vsel %vm2398, %v2389, %v2407
        %v2416 = vsel %vm2399, %v2390, %v2408
        %v2417 = vsel %vm2400, %v2391, %v2409
        %v2418 = vsel %vm2401, %v2392, %v2410
        %v2419 = vpack.c.bf16 %v2412, %v2411
        %v2420 = vpack.c.bf16 %v2414, %v2413
        %v2421 = vpack.c.bf16 %v2416, %v2415
        %v2422 = vpack.c.bf16 %v2418, %v2417
        %v2423 = vrot.slane %v2411, 7
        %v2424 = vrot.slane %v2412, 7
        %v2425 = vrot.slane %v2413, 7
        %v2426 = vrot.slane %v2414, 7
        %v2427 = vrot.slane %v2415, 7
        %v2428 = vrot.slane %v2416, 7
        %v2429 = vrot.slane %v2417, 7
        %v2430 = vrot.slane %v2418, 7
        %v2431 = vsel %vm345, %v2429, %v2430
        %v2432 = vsel %vm345, %v2428, %v2429
        %v2433 = vsel %vm345, %v2427, %v2428
        %v2434 = vsel %vm345, %v2426, %v2427
        %v2435 = vsel %vm345, %v2425, %v2426
        %v2436 = vsel %vm345, %v2424, %v2425
        %v2437 = vsel %vm345, %v2423, %v2424
        %v2438 = vsel %vm345, %v2430, %v2423
        %v2439 = vsel %vm305, %v2438, 0.0
        %v2440 = vsel %vm306, %v2437, 0.0
        %v2441 = vsel %vm305, %v2436, 0.0
        %v2442 = vsel %vm306, %v2435, 0.0
        %v2443 = vsel %vm305, %v2434, 0.0
        %v2444 = vsel %vm306, %v2433, 0.0
        %v2445 = vsel %vm305, %v2432, 0.0
        %v2446 = vsel %vm306, %v2431, 0.0
        %v2447 = vpack.c.bf16 %v2440, %v2439
        %v2448 = vpack.c.bf16 %v2442, %v2441
        %v2449 = vpack.c.bf16 %v2444, %v2443
        %v2450 = vpack.c.bf16 %v2446, %v2445
        %v2451 = vrot.slane %v2411, 1
        %v2452 = vrot.slane %v2412, 1
        %v2453 = vrot.slane %v2413, 1
        %v2454 = vrot.slane %v2414, 1
        %v2455 = vrot.slane %v2415, 1
        %v2456 = vrot.slane %v2416, 1
        %v2457 = vrot.slane %v2417, 1
        %v2458 = vrot.slane %v2418, 1
        %v2459 = vsel %vm374, %v2457, %v2458
        %v2460 = vsel %vm374, %v2456, %v2457
        %v2461 = vsel %vm374, %v2455, %v2456
        %v2462 = vsel %vm374, %v2454, %v2455
        %v2463 = vsel %vm374, %v2453, %v2454
        %v2464 = vsel %vm374, %v2452, %v2453
        %v2465 = vsel %vm374, %v2451, %v2452
        %v2466 = vsel %vm374, %v2458, %v2451
        %v2467 = vsel %vm307, %v2465, 0.0
        %v2468 = vsel %vm308, %v2464, 0.0
        %v2469 = vsel %vm307, %v2463, 0.0
        %v2470 = vsel %vm308, %v2462, 0.0
        %v2471 = vsel %vm307, %v2461, 0.0
        %v2472 = vsel %vm308, %v2460, 0.0
        %v2473 = vsel %vm307, %v2459, 0.0
        %v2474 = vsel %vm308, %v2466, 0.0
        %v2475 = vpack.c.bf16 %v2468, %v2467
        %v2476 = vpack.c.bf16 %v2470, %v2469
        %v2477 = vpack.c.bf16 %v2472, %v2471
        %v2478 = vpack.c.bf16 %v2474, %v2473
        %s2479 = scalar_lea.vmem %s1, 576
        %v2480 = vld [vmem:[%s2479] sm:$0xf]
        %v2481 = vld [vmem:[%s2479 + $0x4] sm:$0xf]
        %v2482 = vld [vmem:[%s2479 + $0x8] sm:$0xf]
        %v2483 = vld [vmem:[%s2479 + $0xc] sm:$0xf]
        %v2484 = vld [vmem:[%s2479 + $0x10] sm:$0xf]
        %v2485 = vld [vmem:[%s2479 + $0x14] sm:$0xf]
        %v2486 = vld [vmem:[%s2479 + $0x18] sm:$0xf]
        %v2487 = vld [vmem:[%s2479 + $0x1c] sm:$0xf]
        %v2488 = vld [vmem:[%s2479 + $0x20] sm:$0xf]
        %v2489 = vld [vmem:[%s2479 + $0x24] sm:$0xf]
        %v2490 = vld [vmem:[%s2479 + $0x28] sm:$0xf]
        %v2491 = vld [vmem:[%s2479 + $0x2c] sm:$0xf]
        %v2492 = vld [vmem:[%s2479 + $0x30] sm:$0xf]
        %v2493 = vld [vmem:[%s2479 + $0x34] sm:$0xf]
        %v2494 = vld [vmem:[%s2479 + $0x38] sm:$0xf]
        %v2495 = vld [vmem:[%s2479 + $0x3c] sm:$0xf]
        %v2496 = vld [vmem:[%s2479 + $0x40] sm:$0xf]
        %v2497 = vld [vmem:[%s2479 + $0x44] sm:$0xf]
        %v2498 = vld [vmem:[%s2479 + $0x48] sm:$0xf]
        %v2499 = vld [vmem:[%s2479 + $0x4c] sm:$0xf]
        %v2500 = vld [vmem:[%s2479 + $0x50] sm:$0xf]
        %v2501 = vld [vmem:[%s2479 + $0x54] sm:$0xf]
        %v2502 = vld [vmem:[%s2479 + $0x58] sm:$0xf]
        %v2503 = vld [vmem:[%s2479 + $0x5c] sm:$0xf]
        %v2504 = vld [vmem:[%s2479 + $0x60] sm:$0xf]
        %v2505 = vld [vmem:[%s2479 + $0x64] sm:$0xf]
        %v2506 = vld [vmem:[%s2479 + $0x68] sm:$0xf]
        %v2507 = vld [vmem:[%s2479 + $0x6c] sm:$0xf]
        %v2508 = vld [vmem:[%s2479 + $0x70] sm:$0xf]
        %v2509 = vld [vmem:[%s2479 + $0x74] sm:$0xf]
        %v2510 = vld [vmem:[%s2479 + $0x78] sm:$0xf]
        %v2511 = vld [vmem:[%s2479 + $0x7c] sm:$0xf]
        %v2512 = vld [vmem:[%s2479 + $0x80] sm:$0xf]
        %v2513 = vld [vmem:[%s2479 + $0x84] sm:$0xf]
        %v2514 = vld [vmem:[%s2479 + $0x88] sm:$0xf]
        %v2515 = vld [vmem:[%s2479 + $0x8c] sm:$0xf]
        %v2516 = vld [vmem:[%s2479 + $0x90] sm:$0xf]
        %v2517 = vld [vmem:[%s2479 + $0x94] sm:$0xf]
        %v2518 = vld [vmem:[%s2479 + $0x98] sm:$0xf]
        %v2519 = vld [vmem:[%s2479 + $0x9c] sm:$0xf]
        %v2520 = vld [vmem:[%s2479 + $0xa0] sm:$0xf]
        %v2521 = vld [vmem:[%s2479 + $0xa4] sm:$0xf]
        %v2522 = vld [vmem:[%s2479 + $0xa8] sm:$0xf]
        %v2523 = vld [vmem:[%s2479 + $0xac] sm:$0xf]
        %v2524 = vld [vmem:[%s2479 + $0xb0] sm:$0xf]
        %v2525 = vld [vmem:[%s2479 + $0xb4] sm:$0xf]
        %v2526 = vld [vmem:[%s2479 + $0xb8] sm:$0xf]
        %v2527 = vld [vmem:[%s2479 + $0xbc] sm:$0xf]
        %s2528 = scalar_lea.vmem %s2, 3
        %v2529 = vld [vmem:[%s2528] sm:$0x1]
        %v2531 = vlaneseq
        %v2532 = vshrl.u32 %v2531, 7
        %v2533 = vsub.s32 0, %v2532
        %v2534 = vrot.slane %v2529, %v2533
        %v2584 = vunpack.c.l.b16 %v2480
        %v2585 = vunpack.c.l.b16 %v2481
        %v2586 = vunpack.c.l.b16 %v2482
        %v2587 = vunpack.c.l.b16 %v2483
        %v2588 = vunpack.c.l.b16 %v2484
        %v2589 = vunpack.c.l.b16 %v2485
        %v2590 = vunpack.c.l.b16 %v2486
        %v2591 = vunpack.c.l.b16 %v2487
        %v2592 = vunpack.c.l.b16 %v2488
        %v2593 = vunpack.c.l.b16 %v2489
        %v2594 = vunpack.c.l.b16 %v2490
        %v2595 = vunpack.c.l.b16 %v2491
        %v2596 = vunpack.c.l.b16 %v2492
        %v2597 = vunpack.c.l.b16 %v2493
        %v2598 = vunpack.c.l.b16 %v2494
        %v2599 = vunpack.c.l.b16 %v2495
        %v2600 = vunpack.c.l.b16 %v2496
        %v2601 = vunpack.c.l.b16 %v2497
        %v2602 = vunpack.c.l.b16 %v2498
        %v2603 = vunpack.c.l.b16 %v2499
        %v2604 = vunpack.c.l.b16 %v2500
        %v2605 = vunpack.c.l.b16 %v2501
        %v2606 = vunpack.c.l.b16 %v2502
        %v2607 = vunpack.c.l.b16 %v2503
        %v2608 = vunpack.c.l.b16 %v2504
        %v2609 = vunpack.c.l.b16 %v2505
        %v2610 = vunpack.c.l.b16 %v2506
        %v2611 = vunpack.c.l.b16 %v2507
        %v2612 = vunpack.c.l.b16 %v2508
        %v2613 = vunpack.c.l.b16 %v2509
        %v2614 = vunpack.c.l.b16 %v2510
        %v2615 = vunpack.c.l.b16 %v2511
        %v2616 = vunpack.c.l.b16 %v2512
        %v2617 = vunpack.c.l.b16 %v2513
        %v2618 = vunpack.c.l.b16 %v2514
        %v2619 = vunpack.c.l.b16 %v2515
        %v2620 = vunpack.c.l.b16 %v2516
        %v2621 = vunpack.c.l.b16 %v2517
        %v2622 = vunpack.c.l.b16 %v2518
        %v2623 = vunpack.c.l.b16 %v2519
        %v2624 = vunpack.c.l.b16 %v2520
        %v2625 = vunpack.c.l.b16 %v2521
        %v2626 = vunpack.c.l.b16 %v2522
        %v2627 = vunpack.c.l.b16 %v2523
        %v2628 = vunpack.c.l.b16 %v2524
        %v2629 = vunpack.c.l.b16 %v2525
        %v2630 = vunpack.c.l.b16 %v2526
        %v2631 = vunpack.c.l.b16 %v2527
        %v2632 = vpack.c.b16 %v2585, %v2584
        %v2633 = vpack.c.b16 %v2587, %v2586
        %v2634 = vpack.c.b16 %v2589, %v2588
        %v2635 = vpack.c.b16 %v2591, %v2590
        %v2636 = vpack.c.b16 %v2593, %v2592
        %v2637 = vpack.c.b16 %v2595, %v2594
        %v2638 = vpack.c.b16 %v2597, %v2596
        %v2639 = vpack.c.b16 %v2599, %v2598
        %v2640 = vpack.c.b16 %v2601, %v2600
        %v2641 = vpack.c.b16 %v2603, %v2602
        %v2642 = vpack.c.b16 %v2605, %v2604
        %v2643 = vpack.c.b16 %v2607, %v2606
        %v2644 = vpack.c.b16 %v2609, %v2608
        %v2645 = vpack.c.b16 %v2611, %v2610
        %v2646 = vpack.c.b16 %v2613, %v2612
        %v2647 = vpack.c.b16 %v2615, %v2614
        %v2648 = vpack.c.b16 %v2617, %v2616
        %v2649 = vpack.c.b16 %v2619, %v2618
        %v2650 = vpack.c.b16 %v2621, %v2620
        %v2651 = vpack.c.b16 %v2623, %v2622
        %v2652 = vpack.c.b16 %v2625, %v2624
        %v2653 = vpack.c.b16 %v2627, %v2626
        %v2654 = vpack.c.b16 %v2629, %v2628
        %v2655 = vpack.c.b16 %v2631, %v2630
        %2680 = vmatprep.subr.bf16.mxu0 0
        %2681 = vmatpush1.bf16.msra.mxu0 %v2639
        %2682 = vmatprep.subr.bf16.mxu0 0
        %2683 = vmatpush1.bf16.msra.mxu0 %v2638
        %2684 = vmatprep.subr.bf16.mxu0 0
        %2685 = vmatpush1.bf16.msra.mxu0 %v2637
        %2686 = vmatprep.subr.bf16.mxu0 0
        %2687 = vmatpush1.bf16.msra.mxu0 %v2636
        %2688 = vmatprep.subr.bf16.mxu0 0
        %2689 = vmatpush1.bf16.msra.mxu0 %v2635
        %2690 = vmatprep.subr.bf16.mxu0 0
        %2691 = vmatpush1.bf16.msra.mxu0 %v2634
        %2692 = vmatprep.subr.bf16.mxu0 0
        %2693 = vmatpush1.bf16.msra.mxu0 %v2633
        %2694 = vmatprep.subr.bf16.mxu0 0
        %2695 = vmatpush1.bf16.msra.mxu0 %v2632
        %2696 = vmatprep.subr.bf16.mxu0 0
        %2697 = vmatpush2.bf16.msra.mxu0 %v2647
        %2698 = vmatprep.subr.bf16.mxu0 0
        %2699 = vmatpush2.bf16.msra.mxu0 %v2646
        %2700 = vmatprep.subr.bf16.mxu0 0
        %2701 = vmatpush2.bf16.msra.mxu0 %v2645
        %2702 = vmatprep.subr.bf16.mxu0 0
        %2703 = vmatpush2.bf16.msra.mxu0 %v2644
        %2704 = vmatprep.subr.bf16.mxu0 0
        %2705 = vmatpush2.bf16.msra.mxu0 %v2643
        %2706 = vmatprep.subr.bf16.mxu0 0
        %2707 = vmatpush2.bf16.msra.mxu0 %v2642
        %2708 = vmatprep.subr.bf16.mxu0 0
        %2709 = vmatpush2.bf16.msra.mxu0 %v2641
        %2710 = vmatprep.subr.bf16.mxu0 0
        %2711 = vmatpush2.bf16.msra.mxu0 %v2640
        %2712 = vmatprep.mubr.bf16.mxu0 %v2419
        %2713 = vmatmul.mubr.bf16.gmra.mxu0 %v2447
        %v2714 = vpop.f32.mrf.mxu0
        %v2715 = vadd.f32 %v2534, %v2714
        %v2716 = vpop.f32.mrf.mxu0
        %v2717 = vpop.f32.mrf.mxu0
        %v2718 = vadd.f32 %v2534, %v2717
        %v2719 = vpop.f32.mrf.mxu0
        %2720 = vmatprep.mubr.bf16.mxu0 %v2420
        %2721 = vmatmul.mubr.bf16.gmra.mxu0 %v2448
        %v2722 = vpop.f32.mrf.mxu0
        %v2723 = vadd.f32 %v2534, %v2722
        %v2724 = vpop.f32.mrf.mxu0
        %v2725 = vpop.f32.mrf.mxu0
        %v2726 = vadd.f32 %v2534, %v2725
        %v2727 = vpop.f32.mrf.mxu0
        %2728 = vmatprep.mubr.bf16.mxu0 %v2421
        %2729 = vmatmul.mubr.bf16.gmra.mxu0 %v2449
        %v2730 = vpop.f32.mrf.mxu0
        %v2731 = vadd.f32 %v2534, %v2730
        %v2732 = vpop.f32.mrf.mxu0
        %v2733 = vpop.f32.mrf.mxu0
        %v2734 = vadd.f32 %v2534, %v2733
        %v2735 = vpop.f32.mrf.mxu0
        %2736 = vmatprep.mubr.bf16.mxu0 %v2422
        %2737 = vmatmul.mubr.bf16.gmra.mxu0 %v2450
        %v2738 = vpop.f32.mrf.mxu0
        %v2739 = vadd.f32 %v2534, %v2738
        %v2740 = vpop.f32.mrf.mxu0
        %v2741 = vpop.f32.mrf.mxu0
        %v2742 = vadd.f32 %v2534, %v2741
        %v2743 = vpop.f32.mrf.mxu0
        %2744 = vdwg.mxu0
        %2745 = vmatprep.subr.bf16.mxu0 0
        %2746 = vmatpush1.bf16.msra.mxu0 %v2655
        %2747 = vmatprep.subr.bf16.mxu0 0
        %2748 = vmatpush1.bf16.msra.mxu0 %v2654
        %2749 = vmatprep.subr.bf16.mxu0 0
        %2750 = vmatpush1.bf16.msra.mxu0 %v2653
        %2751 = vmatprep.subr.bf16.mxu0 0
        %2752 = vmatpush1.bf16.msra.mxu0 %v2652
        %2753 = vmatprep.subr.bf16.mxu0 0
        %2754 = vmatpush1.bf16.msra.mxu0 %v2651
        %2755 = vmatprep.subr.bf16.mxu0 0
        %2756 = vmatpush1.bf16.msra.mxu0 %v2650
        %2757 = vmatprep.subr.bf16.mxu0 0
        %2758 = vmatpush1.bf16.msra.mxu0 %v2649
        %2759 = vmatprep.subr.bf16.mxu0 0
        %2760 = vmatpush1.bf16.msra.mxu0 %v2648
        %2761 = vmatprep.subr.bf16.mxu0 0
        %2762 = vmatpush2.bf16.msra.mxu0 0
        %2763 = vmatprep.subr.bf16.mxu0 0
        %2764 = vmatpush2.bf16.msra.mxu0 0
        %2765 = vmatprep.subr.bf16.mxu0 0
        %2766 = vmatpush2.bf16.msra.mxu0 0
        %2767 = vmatprep.subr.bf16.mxu0 0
        %2768 = vmatpush2.bf16.msra.mxu0 0
        %2769 = vmatprep.subr.bf16.mxu0 0
        %2770 = vmatpush2.bf16.msra.mxu0 0
        %2771 = vmatprep.subr.bf16.mxu0 0
        %2772 = vmatpush2.bf16.msra.mxu0 0
        %2773 = vmatprep.subr.bf16.mxu0 0
        %2774 = vmatpush2.bf16.msra.mxu0 0
        %2775 = vmatprep.subr.bf16.mxu0 0
        %2776 = vmatpush2.bf16.msra.mxu0 0
        %2777 = vmatprep.mubr.bf16.mxu0 0
        %2778 = vmatmul.mubr.bf16.gmra.mxu0 %v2475
        %v2779 = vpop.f32.mrf.mxu0
        %v2780 = vadd.f32 %v2715, %v2779
        %v2781 = vpop.f32.mrf.mxu0
        %v2782 = vpop.f32.mrf.mxu0
        %v2783 = vadd.f32 %v2718, %v2782
        %v2784 = vpop.f32.mrf.mxu0
        %2785 = vmatprep.mubr.bf16.mxu0 0
        %2786 = vmatmul.mubr.bf16.gmra.mxu0 %v2476
        %v2787 = vpop.f32.mrf.mxu0
        %v2788 = vadd.f32 %v2723, %v2787
        %v2789 = vpop.f32.mrf.mxu0
        %v2790 = vpop.f32.mrf.mxu0
        %v2791 = vadd.f32 %v2726, %v2790
        %v2792 = vpop.f32.mrf.mxu0
        %2793 = vmatprep.mubr.bf16.mxu0 0
        %2794 = vmatmul.mubr.bf16.gmra.mxu0 %v2477
        %v2795 = vpop.f32.mrf.mxu0
        %v2796 = vadd.f32 %v2731, %v2795
        %v2797 = vpop.f32.mrf.mxu0
        %v2798 = vpop.f32.mrf.mxu0
        %v2799 = vadd.f32 %v2734, %v2798
        %v2800 = vpop.f32.mrf.mxu0
        %2801 = vmatprep.mubr.bf16.mxu0 0
        %2802 = vmatmul.mubr.bf16.gmra.mxu0 %v2478
        %v2803 = vpop.f32.mrf.mxu0
        %v2804 = vadd.f32 %v2739, %v2803
        %v2805 = vpop.f32.mrf.mxu0
        %v2806 = vpop.f32.mrf.mxu0
        %v2807 = vadd.f32 %v2742, %v2806
        %v2808 = vpop.f32.mrf.mxu0
        %2809 = vdwg.mxu0
        %v2810 = vmul.f32 %v2780, %v2780
        %v2811 = vmul.f32 %v2783, %v2783
        %v2812 = vmul.f32 %v2788, %v2788
        %v2813 = vmul.f32 %v2791, %v2791
        %v2814 = vmul.f32 %v2796, %v2796
        %v2815 = vmul.f32 %v2799, %v2799
        %v2816 = vmul.f32 %v2804, %v2804
        %v2817 = vmul.f32 %v2807, %v2807
        %v2818 = vpack.c.bf16 %v2783, %v2780
        %v2819 = vpack.c.bf16 %v2791, %v2788
        %v2820 = vpack.c.bf16 %v2799, %v2796
        %v2821 = vpack.c.bf16 %v2807, %v2804
        %v2822 = vpack.c.bf16 %v2811, %v2810
        %v2823 = vpack.c.bf16 %v2813, %v2812
        %v2824 = vpack.c.bf16 %v2815, %v2814
        %v2825 = vpack.c.bf16 %v2817, %v2816
        %2826 = vmatprep.subr.bf16.mxu0 0
        %2827 = vmatpush1.bf16.msra.mxu0 %v779
        %2828 = vmatprep.subr.bf16.mxu0 0
        %2829 = vmatpush1.bf16.msra.mxu0 %v778
        %2830 = vmatprep.subr.bf16.mxu0 0
        %2831 = vmatpush1.bf16.msra.mxu0 %v777
        %2832 = vmatprep.subr.bf16.mxu0 0
        %2833 = vmatpush1.bf16.msra.mxu0 %v776
        %2834 = vmatprep.subr.bf16.mxu0 0
        %2835 = vmatpush1.bf16.msra.mxu0 %v775
        %2836 = vmatprep.subr.bf16.mxu0 0
        %2837 = vmatpush1.bf16.msra.mxu0 %v774
        %2838 = vmatprep.subr.bf16.mxu0 0
        %2839 = vmatpush1.bf16.msra.mxu0 %v773
        %2840 = vmatprep.subr.bf16.mxu0 0
        %2841 = vmatpush1.bf16.msra.mxu0 %v772
        %2842 = vmatprep.subr.bf16.mxu0 0
        %2843 = vmatpush2.bf16.msra.mxu0 0
        %2844 = vmatprep.subr.bf16.mxu0 0
        %2845 = vmatpush2.bf16.msra.mxu0 0
        %2846 = vmatprep.subr.bf16.mxu0 0
        %2847 = vmatpush2.bf16.msra.mxu0 0
        %2848 = vmatprep.subr.bf16.mxu0 0
        %2849 = vmatpush2.bf16.msra.mxu0 0
        %2850 = vmatprep.subr.bf16.mxu0 0
        %2851 = vmatpush2.bf16.msra.mxu0 0
        %2852 = vmatprep.subr.bf16.mxu0 0
        %2853 = vmatpush2.bf16.msra.mxu0 0
        %2854 = vmatprep.subr.bf16.mxu0 0
        %2855 = vmatpush2.bf16.msra.mxu0 0
        %2856 = vmatprep.subr.bf16.mxu0 0
        %2857 = vmatpush2.bf16.msra.mxu0 0
        %2858 = vmatprep.mubr.bf16.mxu0 0
        %2859 = vmatmul.mubr.bf16.gmra.mxu0 %v2818
        %v2860 = vpop.f32.mrf.mxu0
        %v2861 = vadd.f32 0.0, %v2860
        %v2862 = vpop.f32.mrf.mxu0
        %v2863 = vpop.f32.mrf.mxu0
        %v2864 = vadd.f32 0.0, %v2863
        %v2865 = vpop.f32.mrf.mxu0
        %2866 = vmatprep.mubr.bf16.mxu0 0
        %2867 = vmatmul.mubr.bf16.gmra.mxu0 %v2819
        %v2868 = vpop.f32.mrf.mxu0
        %v2869 = vadd.f32 0.0, %v2868
        %v2870 = vpop.f32.mrf.mxu0
        %v2871 = vpop.f32.mrf.mxu0
        %v2872 = vadd.f32 0.0, %v2871
        %v2873 = vpop.f32.mrf.mxu0
        %2874 = vmatprep.mubr.bf16.mxu0 0
        %2875 = vmatmul.mubr.bf16.gmra.mxu0 %v2820
        %v2876 = vpop.f32.mrf.mxu0
        %v2877 = vadd.f32 0.0, %v2876
        %v2878 = vpop.f32.mrf.mxu0
        %v2879 = vpop.f32.mrf.mxu0
        %v2880 = vadd.f32 0.0, %v2879
        %v2881 = vpop.f32.mrf.mxu0
        %2882 = vmatprep.mubr.bf16.mxu0 0
        %2883 = vmatmul.mubr.bf16.gmra.mxu0 %v2821
        %v2884 = vpop.f32.mrf.mxu0
        %v2885 = vadd.f32 0.0, %v2884
        %v2886 = vpop.f32.mrf.mxu0
        %v2887 = vpop.f32.mrf.mxu0
        %v2888 = vadd.f32 0.0, %v2887
        %v2889 = vpop.f32.mrf.mxu0
        %2890 = vmatprep.mubr.bf16.mxu0 0
        %2891 = vmatmul.mubr.bf16.gmra.mxu0 %v2822
        %v2892 = vpop.f32.mrf.mxu0
        %v2893 = vadd.f32 0.0, %v2892
        %v2894 = vpop.f32.mrf.mxu0
        %v2895 = vpop.f32.mrf.mxu0
        %v2896 = vadd.f32 0.0, %v2895
        %v2897 = vpop.f32.mrf.mxu0
        %2898 = vmatprep.mubr.bf16.mxu0 0
        %2899 = vmatmul.mubr.bf16.gmra.mxu0 %v2823
        %v2900 = vpop.f32.mrf.mxu0
        %v2901 = vadd.f32 0.0, %v2900
        %v2902 = vpop.f32.mrf.mxu0
        %v2903 = vpop.f32.mrf.mxu0
        %v2904 = vadd.f32 0.0, %v2903
        %v2905 = vpop.f32.mrf.mxu0
        %2906 = vmatprep.mubr.bf16.mxu0 0
        %2907 = vmatmul.mubr.bf16.gmra.mxu0 %v2824
        %v2908 = vpop.f32.mrf.mxu0
        %v2909 = vadd.f32 0.0, %v2908
        %v2910 = vpop.f32.mrf.mxu0
        %v2911 = vpop.f32.mrf.mxu0
        %v2912 = vadd.f32 0.0, %v2911
        %v2913 = vpop.f32.mrf.mxu0
        %2914 = vmatprep.mubr.bf16.mxu0 0
        %2915 = vmatmul.mubr.bf16.gmra.mxu0 %v2825
        %v2916 = vpop.f32.mrf.mxu0
        %v2917 = vadd.f32 0.0, %v2916
        %v2918 = vpop.f32.mrf.mxu0
        %v2919 = vpop.f32.mrf.mxu0
        %v2920 = vadd.f32 0.0, %v2919
        %v2921 = vpop.f32.mrf.mxu0
        %2922 = vdwg.mxu0
        %v2923 = vadd.f32 %v2861, %v2864
        %v2924 = vrot.slane %v2923, 4
        %v2925 = vadd.f32 %v2923, %v2924
        %v2926 = vrot.slane %v2925, 2
        %v2927 = vadd.f32 %v2925, %v2926
        %v2928 = vrot.slane %v2927, 1
        %v2929 = vadd.f32 %v2927, %v2928
        %v2930 = vadd.f32 %v2869, %v2872
        %v2931 = vrot.slane %v2930, 4
        %v2932 = vadd.f32 %v2930, %v2931
        %v2933 = vrot.slane %v2932, 2
        %v2934 = vadd.f32 %v2932, %v2933
        %v2935 = vrot.slane %v2934, 1
        %v2936 = vadd.f32 %v2934, %v2935
        %v2937 = vadd.f32 %v2877, %v2880
        %v2938 = vrot.slane %v2937, 4
        %v2939 = vadd.f32 %v2937, %v2938
        %v2940 = vrot.slane %v2939, 2
        %v2941 = vadd.f32 %v2939, %v2940
        %v2942 = vrot.slane %v2941, 1
        %v2943 = vadd.f32 %v2941, %v2942
        %v2944 = vadd.f32 %v2885, %v2888
        %v2945 = vrot.slane %v2944, 4
        %v2946 = vadd.f32 %v2944, %v2945
        %v2947 = vrot.slane %v2946, 2
        %v2948 = vadd.f32 %v2946, %v2947
        %v2949 = vrot.slane %v2948, 1
        %v2950 = vadd.f32 %v2948, %v2949
        %v2951 = vadd.f32 %v2893, %v2896
        %v2952 = vrot.slane %v2951, 4
        %v2953 = vadd.f32 %v2951, %v2952
        %v2954 = vrot.slane %v2953, 2
        %v2955 = vadd.f32 %v2953, %v2954
        %v2956 = vrot.slane %v2955, 1
        %v2957 = vadd.f32 %v2955, %v2956
        %v2958 = vadd.f32 %v2901, %v2904
        %v2959 = vrot.slane %v2958, 4
        %v2960 = vadd.f32 %v2958, %v2959
        %v2961 = vrot.slane %v2960, 2
        %v2962 = vadd.f32 %v2960, %v2961
        %v2963 = vrot.slane %v2962, 1
        %v2964 = vadd.f32 %v2962, %v2963
        %v2965 = vadd.f32 %v2909, %v2912
        %v2966 = vrot.slane %v2965, 4
        %v2967 = vadd.f32 %v2965, %v2966
        %v2968 = vrot.slane %v2967, 2
        %v2969 = vadd.f32 %v2967, %v2968
        %v2970 = vrot.slane %v2969, 1
        %v2971 = vadd.f32 %v2969, %v2970
        %v2972 = vadd.f32 %v2917, %v2920
        %v2973 = vrot.slane %v2972, 4
        %v2974 = vadd.f32 %v2972, %v2973
        %v2975 = vrot.slane %v2974, 2
        %v2976 = vadd.f32 %v2974, %v2975
        %v2977 = vrot.slane %v2976, 1
        %v2978 = vadd.f32 %v2976, %v2977
        %v2979 = vmul.f32 %v2929, 0.00390625
        %v2980 = vmul.f32 %v2936, 0.00390625
        %v2981 = vmul.f32 %v2943, 0.00390625
        %v2982 = vmul.f32 %v2950, 0.00390625
        %v2983 = vmul.f32 %v2957, 0.00390625
        %v2984 = vmul.f32 %v2964, 0.00390625
        %v2985 = vmul.f32 %v2971, 0.00390625
        %v2986 = vmul.f32 %v2978, 0.00390625
        %v2987 = vmul.f32 %v2979, %v2979
        %v2988 = vmul.f32 %v2980, %v2980
        %v2989 = vmul.f32 %v2981, %v2981
        %v2990 = vmul.f32 %v2982, %v2982
        %v2991 = vsub.f32 %v2983, %v2987
        %v2992 = vsub.f32 %v2984, %v2988
        %v2993 = vsub.f32 %v2985, %v2989
        %v2994 = vsub.f32 %v2986, %v2990
        %v2995 = vmax.f32 %v2991, 0.0
        %v2996 = vmax.f32 %v2992, 0.0
        %v2997 = vmax.f32 %v2993, 0.0
        %v2998 = vmax.f32 %v2994, 0.0
        %v2999 = vadd.f32 %v2995, 1e-05
        %v3000 = vadd.f32 %v2996, 1e-05
        %v3001 = vadd.f32 %v2997, 1e-05
        %v3002 = vadd.f32 %v2998, 1e-05
        %v3003 = vrsqrt.pop %v2999
        %v3004 = vrsqrt.pop %v3000
        %v3005 = vrsqrt.pop %v3001
        %v3006 = vrsqrt.pop %v3002
        %s3007 = scalar_lea.vmem %s3, 3
        %v3008 = vld [vmem:[%s3007] sm:$0x1]
        %v3009 = vmul.f32 %v3003, %v3008
        %v3010 = vmul.f32 %v3004, %v3008
        %v3011 = vmul.f32 %v3005, %v3008
        %v3012 = vmul.f32 %v3006, %v3008
        %s3013 = scalar_lea.vmem %s4, 3
        %v3014 = vld [vmem:[%s3013] sm:$0x1]
        %v3015 = vmul.f32 %v2979, %v3009
        %v3016 = vmul.f32 %v2980, %v3010
        %v3017 = vmul.f32 %v2981, %v3011
        %v3018 = vmul.f32 %v2982, %v3012
        %v3019 = vsub.f32 %v3014, %v3015
        %v3020 = vsub.f32 %v3014, %v3016
        %v3021 = vsub.f32 %v3014, %v3017
        %v3022 = vsub.f32 %v3014, %v3018
        %v3023 = vlaneseq
        %v3024 = vshrl.u32 %v3023, 7
        %v3025 = vsub.s32 0, %v3024
        %v3026 = vrot.slane %v3009, %v3025
        %v3027 = vlaneseq
        %v3028 = vshrl.u32 %v3027, 7
        %v3029 = vsub.s32 0, %v3028
        %v3030 = vrot.slane %v3010, %v3029
        %v3031 = vlaneseq
        %v3032 = vshrl.u32 %v3031, 7
        %v3033 = vsub.s32 0, %v3032
        %v3034 = vrot.slane %v3011, %v3033
        %v3035 = vlaneseq
        %v3036 = vshrl.u32 %v3035, 7
        %v3037 = vsub.s32 0, %v3036
        %v3038 = vrot.slane %v3012, %v3037
        %v3039 = vmul.f32 %v2780, %v3026
        %v3040 = vmul.f32 %v2783, %v3026
        %v3041 = vmul.f32 %v2788, %v3030
        %v3042 = vmul.f32 %v2791, %v3030
        %v3043 = vmul.f32 %v2796, %v3034
        %v3044 = vmul.f32 %v2799, %v3034
        %v3045 = vmul.f32 %v2804, %v3038
        %v3046 = vmul.f32 %v2807, %v3038
        %v3051 = vlaneseq
        %v3052 = vshrl.u32 %v3051, 7
        %v3053 = vsub.s32 0, %v3052
        %v3054 = vrot.slane %v3019, %v3053
        %v3055 = vlaneseq
        %v3056 = vshrl.u32 %v3055, 7
        %v3057 = vsub.s32 0, %v3056
        %v3058 = vrot.slane %v3020, %v3057
        %v3059 = vlaneseq
        %v3060 = vshrl.u32 %v3059, 7
        %v3061 = vsub.s32 0, %v3060
        %v3062 = vrot.slane %v3021, %v3061
        %v3063 = vlaneseq
        %v3064 = vshrl.u32 %v3063, 7
        %v3065 = vsub.s32 0, %v3064
        %v3066 = vrot.slane %v3022, %v3065
        %v3071 = vadd.f32 %v3039, %v3054
        %v3072 = vadd.f32 %v3040, %v3054
        %v3073 = vadd.f32 %v3041, %v3058
        %v3074 = vadd.f32 %v3042, %v3058
        %v3075 = vadd.f32 %v3043, %v3062
        %v3076 = vadd.f32 %v3044, %v3062
        %v3077 = vadd.f32 %v3045, %v3066
        %v3078 = vadd.f32 %v3046, %v3066
        %v3079 = vadd.f32 %v3071, %v1725
        %v3080 = vadd.f32 %v3072, %v1726
        %v3081 = vadd.f32 %v3073, %v1727
        %v3082 = vadd.f32 %v3074, %v1728
        %v3083 = vadd.f32 %v3075, %v1729
        %v3084 = vadd.f32 %v3076, %v1730
        %v3085 = vadd.f32 %v3077, %v1731
        %v3086 = vadd.f32 %v3078, %v1732
        %v3087 = vpack.c.bf16 %v3080, %v3079
        %v3088 = vpack.c.bf16 %v3082, %v3081
        %v3089 = vpack.c.bf16 %v3084, %v3083
        %v3090 = vpack.c.bf16 %v3086, %v3085
        %v3091 = vrot.slane %v3079, 7
        %v3092 = vrot.slane %v3080, 7
        %v3093 = vrot.slane %v3081, 7
        %v3094 = vrot.slane %v3082, 7
        %v3095 = vrot.slane %v3083, 7
        %v3096 = vrot.slane %v3084, 7
        %v3097 = vrot.slane %v3085, 7
        %v3098 = vrot.slane %v3086, 7
        %v3099 = vsel %vm345, %v3097, %v3098
        %v3100 = vsel %vm345, %v3096, %v3097
        %v3101 = vsel %vm345, %v3095, %v3096
        %v3102 = vsel %vm345, %v3094, %v3095
        %v3103 = vsel %vm345, %v3093, %v3094
        %v3104 = vsel %vm345, %v3092, %v3093
        %v3105 = vsel %vm345, %v3091, %v3092
        %v3106 = vsel %vm345, %v3098, %v3091
        %v3107 = vsel %vm305, %v3106, 0.0
        %v3108 = vsel %vm306, %v3105, 0.0
        %v3109 = vsel %vm305, %v3104, 0.0
        %v3110 = vsel %vm306, %v3103, 0.0
        %v3111 = vsel %vm305, %v3102, 0.0
        %v3112 = vsel %vm306, %v3101, 0.0
        %v3113 = vsel %vm305, %v3100, 0.0
        %v3114 = vsel %vm306, %v3099, 0.0
        %v3115 = vpack.c.bf16 %v3108, %v3107
        %v3116 = vpack.c.bf16 %v3110, %v3109
        %v3117 = vpack.c.bf16 %v3112, %v3111
        %v3118 = vpack.c.bf16 %v3114, %v3113
        %v3119 = vrot.slane %v3079, 1
        %v3120 = vrot.slane %v3080, 1
        %v3121 = vrot.slane %v3081, 1
        %v3122 = vrot.slane %v3082, 1
        %v3123 = vrot.slane %v3083, 1
        %v3124 = vrot.slane %v3084, 1
        %v3125 = vrot.slane %v3085, 1
        %v3126 = vrot.slane %v3086, 1
        %v3127 = vsel %vm374, %v3125, %v3126
        %v3128 = vsel %vm374, %v3124, %v3125
        %v3129 = vsel %vm374, %v3123, %v3124
        %v3130 = vsel %vm374, %v3122, %v3123
        %v3131 = vsel %vm374, %v3121, %v3122
        %v3132 = vsel %vm374, %v3120, %v3121
        %v3133 = vsel %vm374, %v3119, %v3120
        %v3134 = vsel %vm374, %v3126, %v3119
        %v3135 = vsel %vm307, %v3133, 0.0
        %v3136 = vsel %vm308, %v3132, 0.0
        %v3137 = vsel %vm307, %v3131, 0.0
        %v3138 = vsel %vm308, %v3130, 0.0
        %v3139 = vsel %vm307, %v3129, 0.0
        %v3140 = vsel %vm308, %v3128, 0.0
        %v3141 = vsel %vm307, %v3127, 0.0
        %v3142 = vsel %vm308, %v3134, 0.0
        %v3143 = vpack.c.bf16 %v3136, %v3135
        %v3144 = vpack.c.bf16 %v3138, %v3137
        %v3145 = vpack.c.bf16 %v3140, %v3139
        %v3146 = vpack.c.bf16 %v3142, %v3141
        %s3147 = scalar_lea.vmem %s1, 768
        %v3148 = vld [vmem:[%s3147] sm:$0xf]
        %v3149 = vld [vmem:[%s3147 + $0x4] sm:$0xf]
        %v3150 = vld [vmem:[%s3147 + $0x8] sm:$0xf]
        %v3151 = vld [vmem:[%s3147 + $0xc] sm:$0xf]
        %v3152 = vld [vmem:[%s3147 + $0x10] sm:$0xf]
        %v3153 = vld [vmem:[%s3147 + $0x14] sm:$0xf]
        %v3154 = vld [vmem:[%s3147 + $0x18] sm:$0xf]
        %v3155 = vld [vmem:[%s3147 + $0x1c] sm:$0xf]
        %v3156 = vld [vmem:[%s3147 + $0x20] sm:$0xf]
        %v3157 = vld [vmem:[%s3147 + $0x24] sm:$0xf]
        %v3158 = vld [vmem:[%s3147 + $0x28] sm:$0xf]
        %v3159 = vld [vmem:[%s3147 + $0x2c] sm:$0xf]
        %v3160 = vld [vmem:[%s3147 + $0x30] sm:$0xf]
        %v3161 = vld [vmem:[%s3147 + $0x34] sm:$0xf]
        %v3162 = vld [vmem:[%s3147 + $0x38] sm:$0xf]
        %v3163 = vld [vmem:[%s3147 + $0x3c] sm:$0xf]
        %v3164 = vld [vmem:[%s3147 + $0x40] sm:$0xf]
        %v3165 = vld [vmem:[%s3147 + $0x44] sm:$0xf]
        %v3166 = vld [vmem:[%s3147 + $0x48] sm:$0xf]
        %v3167 = vld [vmem:[%s3147 + $0x4c] sm:$0xf]
        %v3168 = vld [vmem:[%s3147 + $0x50] sm:$0xf]
        %v3169 = vld [vmem:[%s3147 + $0x54] sm:$0xf]
        %v3170 = vld [vmem:[%s3147 + $0x58] sm:$0xf]
        %v3171 = vld [vmem:[%s3147 + $0x5c] sm:$0xf]
        %v3172 = vld [vmem:[%s3147 + $0x60] sm:$0xf]
        %v3173 = vld [vmem:[%s3147 + $0x64] sm:$0xf]
        %v3174 = vld [vmem:[%s3147 + $0x68] sm:$0xf]
        %v3175 = vld [vmem:[%s3147 + $0x6c] sm:$0xf]
        %v3176 = vld [vmem:[%s3147 + $0x70] sm:$0xf]
        %v3177 = vld [vmem:[%s3147 + $0x74] sm:$0xf]
        %v3178 = vld [vmem:[%s3147 + $0x78] sm:$0xf]
        %v3179 = vld [vmem:[%s3147 + $0x7c] sm:$0xf]
        %v3180 = vld [vmem:[%s3147 + $0x80] sm:$0xf]
        %v3181 = vld [vmem:[%s3147 + $0x84] sm:$0xf]
        %v3182 = vld [vmem:[%s3147 + $0x88] sm:$0xf]
        %v3183 = vld [vmem:[%s3147 + $0x8c] sm:$0xf]
        %v3184 = vld [vmem:[%s3147 + $0x90] sm:$0xf]
        %v3185 = vld [vmem:[%s3147 + $0x94] sm:$0xf]
        %v3186 = vld [vmem:[%s3147 + $0x98] sm:$0xf]
        %v3187 = vld [vmem:[%s3147 + $0x9c] sm:$0xf]
        %v3188 = vld [vmem:[%s3147 + $0xa0] sm:$0xf]
        %v3189 = vld [vmem:[%s3147 + $0xa4] sm:$0xf]
        %v3190 = vld [vmem:[%s3147 + $0xa8] sm:$0xf]
        %v3191 = vld [vmem:[%s3147 + $0xac] sm:$0xf]
        %v3192 = vld [vmem:[%s3147 + $0xb0] sm:$0xf]
        %v3193 = vld [vmem:[%s3147 + $0xb4] sm:$0xf]
        %v3194 = vld [vmem:[%s3147 + $0xb8] sm:$0xf]
        %v3195 = vld [vmem:[%s3147 + $0xbc] sm:$0xf]
        %s3196 = scalar_lea.vmem %s2, 4
        %v3197 = vld [vmem:[%s3196] sm:$0x1]
        %v3199 = vlaneseq
        %v3200 = vshrl.u32 %v3199, 7
        %v3201 = vsub.s32 0, %v3200
        %v3202 = vrot.slane %v3197, %v3201
        %v3252 = vunpack.c.l.b16 %v3148
        %v3253 = vunpack.c.l.b16 %v3149
        %v3254 = vunpack.c.l.b16 %v3150
        %v3255 = vunpack.c.l.b16 %v3151
        %v3256 = vunpack.c.l.b16 %v3152
        %v3257 = vunpack.c.l.b16 %v3153
        %v3258 = vunpack.c.l.b16 %v3154
        %v3259 = vunpack.c.l.b16 %v3155
        %v3260 = vunpack.c.l.b16 %v3156
        %v3261 = vunpack.c.l.b16 %v3157
        %v3262 = vunpack.c.l.b16 %v3158
        %v3263 = vunpack.c.l.b16 %v3159
        %v3264 = vunpack.c.l.b16 %v3160
        %v3265 = vunpack.c.l.b16 %v3161
        %v3266 = vunpack.c.l.b16 %v3162
        %v3267 = vunpack.c.l.b16 %v3163
        %v3268 = vunpack.c.l.b16 %v3164
        %v3269 = vunpack.c.l.b16 %v3165
        %v3270 = vunpack.c.l.b16 %v3166
        %v3271 = vunpack.c.l.b16 %v3167
        %v3272 = vunpack.c.l.b16 %v3168
        %v3273 = vunpack.c.l.b16 %v3169
        %v3274 = vunpack.c.l.b16 %v3170
        %v3275 = vunpack.c.l.b16 %v3171
        %v3276 = vunpack.c.l.b16 %v3172
        %v3277 = vunpack.c.l.b16 %v3173
        %v3278 = vunpack.c.l.b16 %v3174
        %v3279 = vunpack.c.l.b16 %v3175
        %v3280 = vunpack.c.l.b16 %v3176
        %v3281 = vunpack.c.l.b16 %v3177
        %v3282 = vunpack.c.l.b16 %v3178
        %v3283 = vunpack.c.l.b16 %v3179
        %v3284 = vunpack.c.l.b16 %v3180
        %v3285 = vunpack.c.l.b16 %v3181
        %v3286 = vunpack.c.l.b16 %v3182
        %v3287 = vunpack.c.l.b16 %v3183
        %v3288 = vunpack.c.l.b16 %v3184
        %v3289 = vunpack.c.l.b16 %v3185
        %v3290 = vunpack.c.l.b16 %v3186
        %v3291 = vunpack.c.l.b16 %v3187
        %v3292 = vunpack.c.l.b16 %v3188
        %v3293 = vunpack.c.l.b16 %v3189
        %v3294 = vunpack.c.l.b16 %v3190
        %v3295 = vunpack.c.l.b16 %v3191
        %v3296 = vunpack.c.l.b16 %v3192
        %v3297 = vunpack.c.l.b16 %v3193
        %v3298 = vunpack.c.l.b16 %v3194
        %v3299 = vunpack.c.l.b16 %v3195
        %v3300 = vpack.c.b16 %v3253, %v3252
        %v3301 = vpack.c.b16 %v3255, %v3254
        %v3302 = vpack.c.b16 %v3257, %v3256
        %v3303 = vpack.c.b16 %v3259, %v3258
        %v3304 = vpack.c.b16 %v3261, %v3260
        %v3305 = vpack.c.b16 %v3263, %v3262
        %v3306 = vpack.c.b16 %v3265, %v3264
        %v3307 = vpack.c.b16 %v3267, %v3266
        %v3308 = vpack.c.b16 %v3269, %v3268
        %v3309 = vpack.c.b16 %v3271, %v3270
        %v3310 = vpack.c.b16 %v3273, %v3272
        %v3311 = vpack.c.b16 %v3275, %v3274
        %v3312 = vpack.c.b16 %v3277, %v3276
        %v3313 = vpack.c.b16 %v3279, %v3278
        %v3314 = vpack.c.b16 %v3281, %v3280
        %v3315 = vpack.c.b16 %v3283, %v3282
        %v3316 = vpack.c.b16 %v3285, %v3284
        %v3317 = vpack.c.b16 %v3287, %v3286
        %v3318 = vpack.c.b16 %v3289, %v3288
        %v3319 = vpack.c.b16 %v3291, %v3290
        %v3320 = vpack.c.b16 %v3293, %v3292
        %v3321 = vpack.c.b16 %v3295, %v3294
        %v3322 = vpack.c.b16 %v3297, %v3296
        %v3323 = vpack.c.b16 %v3299, %v3298
        %3348 = vmatprep.subr.bf16.mxu0 0
        %3349 = vmatpush1.bf16.msra.mxu0 %v3307
        %3350 = vmatprep.subr.bf16.mxu0 0
        %3351 = vmatpush1.bf16.msra.mxu0 %v3306
        %3352 = vmatprep.subr.bf16.mxu0 0
        %3353 = vmatpush1.bf16.msra.mxu0 %v3305
        %3354 = vmatprep.subr.bf16.mxu0 0
        %3355 = vmatpush1.bf16.msra.mxu0 %v3304
        %3356 = vmatprep.subr.bf16.mxu0 0
        %3357 = vmatpush1.bf16.msra.mxu0 %v3303
        %3358 = vmatprep.subr.bf16.mxu0 0
        %3359 = vmatpush1.bf16.msra.mxu0 %v3302
        %3360 = vmatprep.subr.bf16.mxu0 0
        %3361 = vmatpush1.bf16.msra.mxu0 %v3301
        %3362 = vmatprep.subr.bf16.mxu0 0
        %3363 = vmatpush1.bf16.msra.mxu0 %v3300
        %3364 = vmatprep.subr.bf16.mxu0 0
        %3365 = vmatpush2.bf16.msra.mxu0 %v3315
        %3366 = vmatprep.subr.bf16.mxu0 0
        %3367 = vmatpush2.bf16.msra.mxu0 %v3314
        %3368 = vmatprep.subr.bf16.mxu0 0
        %3369 = vmatpush2.bf16.msra.mxu0 %v3313
        %3370 = vmatprep.subr.bf16.mxu0 0
        %3371 = vmatpush2.bf16.msra.mxu0 %v3312
        %3372 = vmatprep.subr.bf16.mxu0 0
        %3373 = vmatpush2.bf16.msra.mxu0 %v3311
        %3374 = vmatprep.subr.bf16.mxu0 0
        %3375 = vmatpush2.bf16.msra.mxu0 %v3310
        %3376 = vmatprep.subr.bf16.mxu0 0
        %3377 = vmatpush2.bf16.msra.mxu0 %v3309
        %3378 = vmatprep.subr.bf16.mxu0 0
        %3379 = vmatpush2.bf16.msra.mxu0 %v3308
        %3380 = vmatprep.mubr.bf16.mxu0 %v3087
        %3381 = vmatmul.mubr.bf16.gmra.mxu0 %v3115
        %v3382 = vpop.f32.mrf.mxu0
        %v3383 = vadd.f32 %v3202, %v3382
        %v3384 = vpop.f32.mrf.mxu0
        %v3385 = vpop.f32.mrf.mxu0
        %v3386 = vadd.f32 %v3202, %v3385
        %v3387 = vpop.f32.mrf.mxu0
        %3388 = vmatprep.mubr.bf16.mxu0 %v3088
        %3389 = vmatmul.mubr.bf16.gmra.mxu0 %v3116
        %v3390 = vpop.f32.mrf.mxu0
        %v3391 = vadd.f32 %v3202, %v3390
        %v3392 = vpop.f32.mrf.mxu0
        %v3393 = vpop.f32.mrf.mxu0
        %v3394 = vadd.f32 %v3202, %v3393
        %v3395 = vpop.f32.mrf.mxu0
        %3396 = vmatprep.mubr.bf16.mxu0 %v3089
        %3397 = vmatmul.mubr.bf16.gmra.mxu0 %v3117
        %v3398 = vpop.f32.mrf.mxu0
        %v3399 = vadd.f32 %v3202, %v3398
        %v3400 = vpop.f32.mrf.mxu0
        %v3401 = vpop.f32.mrf.mxu0
        %v3402 = vadd.f32 %v3202, %v3401
        %v3403 = vpop.f32.mrf.mxu0
        %3404 = vmatprep.mubr.bf16.mxu0 %v3090
        %3405 = vmatmul.mubr.bf16.gmra.mxu0 %v3118
        %v3406 = vpop.f32.mrf.mxu0
        %v3407 = vadd.f32 %v3202, %v3406
        %v3408 = vpop.f32.mrf.mxu0
        %v3409 = vpop.f32.mrf.mxu0
        %v3410 = vadd.f32 %v3202, %v3409
        %v3411 = vpop.f32.mrf.mxu0
        %3412 = vdwg.mxu0
        %3413 = vmatprep.subr.bf16.mxu0 0
        %3414 = vmatpush1.bf16.msra.mxu0 %v3323
        %3415 = vmatprep.subr.bf16.mxu0 0
        %3416 = vmatpush1.bf16.msra.mxu0 %v3322
        %3417 = vmatprep.subr.bf16.mxu0 0
        %3418 = vmatpush1.bf16.msra.mxu0 %v3321
        %3419 = vmatprep.subr.bf16.mxu0 0
        %3420 = vmatpush1.bf16.msra.mxu0 %v3320
        %3421 = vmatprep.subr.bf16.mxu0 0
        %3422 = vmatpush1.bf16.msra.mxu0 %v3319
        %3423 = vmatprep.subr.bf16.mxu0 0
        %3424 = vmatpush1.bf16.msra.mxu0 %v3318
        %3425 = vmatprep.subr.bf16.mxu0 0
        %3426 = vmatpush1.bf16.msra.mxu0 %v3317
        %3427 = vmatprep.subr.bf16.mxu0 0
        %3428 = vmatpush1.bf16.msra.mxu0 %v3316
        %3429 = vmatprep.subr.bf16.mxu0 0
        %3430 = vmatpush2.bf16.msra.mxu0 0
        %3431 = vmatprep.subr.bf16.mxu0 0
        %3432 = vmatpush2.bf16.msra.mxu0 0
        %3433 = vmatprep.subr.bf16.mxu0 0
        %3434 = vmatpush2.bf16.msra.mxu0 0
        %3435 = vmatprep.subr.bf16.mxu0 0
        %3436 = vmatpush2.bf16.msra.mxu0 0
        %3437 = vmatprep.subr.bf16.mxu0 0
        %3438 = vmatpush2.bf16.msra.mxu0 0
        %3439 = vmatprep.subr.bf16.mxu0 0
        %3440 = vmatpush2.bf16.msra.mxu0 0
        %3441 = vmatprep.subr.bf16.mxu0 0
        %3442 = vmatpush2.bf16.msra.mxu0 0
        %3443 = vmatprep.subr.bf16.mxu0 0
        %3444 = vmatpush2.bf16.msra.mxu0 0
        %3445 = vmatprep.mubr.bf16.mxu0 0
        %3446 = vmatmul.mubr.bf16.gmra.mxu0 %v3143
        %v3447 = vpop.f32.mrf.mxu0
        %v3448 = vadd.f32 %v3383, %v3447
        %v3449 = vpop.f32.mrf.mxu0
        %v3450 = vpop.f32.mrf.mxu0
        %v3451 = vadd.f32 %v3386, %v3450
        %v3452 = vpop.f32.mrf.mxu0
        %3453 = vmatprep.mubr.bf16.mxu0 0
        %3454 = vmatmul.mubr.bf16.gmra.mxu0 %v3144
        %v3455 = vpop.f32.mrf.mxu0
        %v3456 = vadd.f32 %v3391, %v3455
        %v3457 = vpop.f32.mrf.mxu0
        %v3458 = vpop.f32.mrf.mxu0
        %v3459 = vadd.f32 %v3394, %v3458
        %v3460 = vpop.f32.mrf.mxu0
        %3461 = vmatprep.mubr.bf16.mxu0 0
        %3462 = vmatmul.mubr.bf16.gmra.mxu0 %v3145
        %v3463 = vpop.f32.mrf.mxu0
        %v3464 = vadd.f32 %v3399, %v3463
        %v3465 = vpop.f32.mrf.mxu0
        %v3466 = vpop.f32.mrf.mxu0
        %v3467 = vadd.f32 %v3402, %v3466
        %v3468 = vpop.f32.mrf.mxu0
        %3469 = vmatprep.mubr.bf16.mxu0 0
        %3470 = vmatmul.mubr.bf16.gmra.mxu0 %v3146
        %v3471 = vpop.f32.mrf.mxu0
        %v3472 = vadd.f32 %v3407, %v3471
        %v3473 = vpop.f32.mrf.mxu0
        %v3474 = vpop.f32.mrf.mxu0
        %v3475 = vadd.f32 %v3410, %v3474
        %v3476 = vpop.f32.mrf.mxu0
        %3477 = vdwg.mxu0
        %v3478 = vadd.f32 %v3448, %v325
        %v3479 = vadd.f32 %v3451, %v326
        %v3480 = vadd.f32 %v3456, %v327
        %v3481 = vadd.f32 %v3459, %v328
        %v3482 = vadd.f32 %v3464, %v329
        %v3483 = vadd.f32 %v3467, %v330
        %v3484 = vadd.f32 %v3472, %v331
        %v3485 = vadd.f32 %v3475, %v332
        %3486 = vst [vmem:[%s299] sm:$0xff] %v3478
        %3487 = vst [vmem:[%s299 + $0x8] sm:$0xff] %v3479
        %3488 = vst [vmem:[%s299 + $0x10] sm:$0xff] %v3480
        %3489 = vst [vmem:[%s299 + $0x18] sm:$0xff] %v3481
        %3490 = vst [vmem:[%s299 + $0x20] sm:$0xff] %v3482
        %3491 = vst [vmem:[%s299 + $0x28] sm:$0xff] %v3483
        %3492 = vst [vmem:[%s299 + $0x30] sm:$0xff] %v3484
        %3493 = vst [vmem:[%s299 + $0x38] sm:$0xff] %v3485
        %s3494 = smul.u32 4, %s19
        %p3495 = scmp.lt.s32.totalorder %s3494, 7
        %s3496 = scalar_select %p3495, %s3494, 7
        %s3497 = smul.addr %s3496, 2
        %s3498 = smul.addr %s3497, 8
        %s3499 = scalar_lea.vmem %s7, %s3498
        // Predicated region
        $region53: #{rbgroup_forward_nchw.1} parent=47 // pred_check
          %p3500 = pneg %p189
        $region54: #{rbgroup_forward_nchw.1} parent=47 // pred_check_branch
          %3502 = sbr.rel (%p3500) target = $region56
        $region55: #{rbgroup_forward_nchw.1} parent=47 // pred_region
          %s3503 = smul.u32 4, %s19
        $region56: #{rbgroup_forward_nchw.1} parent=47 // pred_fallthru
          _
      $region48: #{rbgroup_forward_nchw.1} parent=5 // pred_fallthru
        _
      %p3504 = scmp.le.s32.totalorder 2, %s14
      // Predicated region
      $region57: #{rbgroup_forward_nchw.1} parent=5 // pred_check
        %p3505 = pneg %p3504
      $region58: #{rbgroup_forward_nchw.1} parent=5 // pred_check_branch
        %3507 = sbr.rel (%p3505) target = $region60
      $region59: #{rbgroup_forward_nchw.1} parent=5 // pred_region
        %s3508 = ssub.s32 %s14, 2
        // Predicated region
        $region61: #{rbgroup_forward_nchw.1} parent=59 // pred_check
          %p3509 = pneg %p195
        $region62: #{rbgroup_forward_nchw.1} parent=59 // pred_check_branch
          %3511 = sbr.rel (%p3509) target = $region64
        $region63: #{rbgroup_forward_nchw.1} parent=59 // pred_region
          %s3512 = smul.u32 4, %s20
          %p3513 = scmp.lt.s32.totalorder %s3512, 7
          %s3514 = scalar_select %p3513, %s3512, 7
          %s3515 = smul.addr %s3514, 2
          %s3516 = smul.addr %s3515, 8
          %s3517 = scalar_lea.vmem %s7, %s3516
        $region64: #{rbgroup_forward_nchw.1} parent=59 // pred_fallthru
          _
      $region60: #{rbgroup_forward_nchw.1} parent=5 // pred_fallthru
        _
    $region6: #{rbgroup_forward_nchw.1} parent=1 // loop_footer
      %s18 = sadd.s32 1, %s14
    $region7: #{rbgroup_forward_nchw.1} parent=1 // loop_footer_branch
      %13 = sbr.rel target = $region3
    $region8: #{rbgroup_forward_nchw.1} parent=1 // loop_exit
      _
    %3518 = vsyncpa [#allocation3], 1
    %s3519 = scalar_lea.sflag [#allocation3], 1
    %3520 = vsyncpa %s3519, 1

</llo_original>
